<compile_context>
chip_gen: v5e
topology: v5e:2x2
jax: 0.10.0
libtpu: 0.0.40
codegen_flags: <defaults>
</compile_context>

<pallas_src>
import functools
import math

import jax
import jax.numpy as jnp
from jax.experimental import pallas as pl
from jax.experimental.pallas import tpu as pltpu

LN_EPS = 1e-5  # torch.nn.LayerNorm default


def _round_up(a, b):
    return (a + b - 1) // b * b


def _pick_tile(total, preferred, quantum):
    """Largest multiple of `quantum` <= preferred that divides `total` (else total)."""
    t = min(_round_up(preferred, quantum), total)
    t -= t % quantum
    while t > quantum and total % t:
        t -= quantum
    if t <= 0 or total % t:
        return total
    return t


def _nbytes(shape, dtype):
    return math.prod(shape) * jnp.dtype(dtype).itemsize


def _vmem_budget(block_bytes, scratch_bytes):
    # double-buffered blocks + scratch + headroom, derived from the tile budget
    return int(min(max(2 * block_bytes + scratch_bytes + (4 << 20), 16 << 20),
                   100 << 20))


# ---------------------------------------------------------------------------
# One-time parameter preparation (outside the per-forward path).
# ---------------------------------------------------------------------------
def prepare_block_params(params, *, num_heads, mxu_dtype=jnp.bfloat16,
                         mlp_tile_h=512):
    """Casts matmul weights to the MXU feed dtype, splits W_qkv into Q/KV,
    reshapes W_proj head-major, pads the MLP hidden dim to a tile multiple
    (GELU(0)=0 and zero fc2 rows -> no effect), and pre-reshapes 1-D params."""
    D, three_dall = params["w_qkv"].shape
    d_all = three_dall // 3
    hd = d_all // num_heads
    f32 = jnp.float32

    w_qkv = params["w_qkv"].astype(mxu_dtype)
    b_qkv = params["b_qkv"].astype(f32)

    hidden = params["w_fc1"].shape[1]
    th = max(128, min(_round_up(mlp_tile_h, 128), _round_up(hidden, 128)))
    h_pad = _round_up(hidden, th)
    w_fc1 = params["w_fc1"].astype(mxu_dtype)
    b_fc1 = params["b_fc1"].astype(f32)
    w_fc2 = params["w_fc2"].astype(mxu_dtype)
    if h_pad != hidden:
        w_fc1 = jnp.pad(w_fc1, ((0, 0), (0, h_pad - hidden)))
        b_fc1 = jnp.pad(b_fc1, ((0, h_pad - hidden),))
        w_fc2 = jnp.pad(w_fc2, ((0, h_pad - hidden), (0, 0)))

    return {
        "num_heads": num_heads,
        "ln1_g": params["ln1_g"].astype(f32).reshape(1, D),
        "ln1_b": params["ln1_b"].astype(f32).reshape(1, D),
        "w_q": w_qkv[:, :d_all],                       # (D, d_all) bf16
        "b_q": b_qkv[:d_all].reshape(1, d_all),
        "w_kv": w_qkv[:, d_all:],                      # (D, 2*d_all) bf16
        "b_kv": b_qkv[d_all:].reshape(1, 2 * d_all),
        "w_proj_h": params["w_proj"].astype(mxu_dtype).reshape(num_heads, hd, D),
        "b_proj": params["b_proj"].astype(f32).reshape(1, D),
        "gamma_1": params["gamma_1"].astype(f32).reshape(1, D),
        "ln2_g": params["ln2_g"].astype(f32).reshape(1, D),
        "ln2_b": params["ln2_b"].astype(f32).reshape(1, D),
        "w_fc1": w_fc1,                                # (D, h_pad) bf16
        "b_fc1": b_fc1.reshape(1, h_pad),
        "w_fc2": w_fc2,                                # (h_pad, D) bf16
        "b_fc2": params["b_fc2"].astype(f32).reshape(1, D),
        "gamma_2": params["gamma_2"].astype(f32).reshape(1, D),
        "mlp_tile_h": th,
    }


# ---------------------------------------------------------------------------
# Attention sub-block:  out = x + gamma_1 * proj(softmax(scale * q k^T) v)
# Grid = (batch, query tiles).  K/V (head-major, MXU feed dtype) are computed
# once per batch element at qt==0 and stay resident in VMEM scratch.
# ---------------------------------------------------------------------------
def _attn_block_kernel(xq_ref, xf_ref, g_ref, b_ref, wq_ref, bq_ref,
                       wkv_ref, bkv_ref, wph_ref, bp_ref, gamma1_ref,
                       o_ref, k_scr, v_scr, q_scr,
                       *, num_heads, head_dim, scale):
    qt = pl.program_id(1)
    d_all = num_heads * head_dim
    feed = k_scr.dtype                                  # MXU feed dtype (bf16)

    def layer_norm(x):
        mu = jnp.mean(x, axis=-1, keepdims=True)
        var = jnp.mean(jnp.square(x - mu), axis=-1, keepdims=True)
        xn = (x - mu) * jax.lax.rsqrt(var + LN_EPS)
        return xn * g_ref[...].astype(jnp.float32) + b_ref[...].astype(jnp.float32)

    # Once per batch element: LN1 over the full sequence, K/V projection,
    # head split into resident head-major scratches (done outside the hot loop).
    @pl.when(qt == 0)
    def _compute_kv():
        xn = layer_norm(xf_ref[0].astype(jnp.float32))                  # (N, D)
        kv = jnp.dot(xn.astype(feed), wkv_ref[...],
                     preferred_element_type=jnp.float32)                # (N, 2*d_all)
        kv = kv + bkv_ref[...].astype(jnp.float32)
        for h in range(num_heads):
            k_scr[h] = kv[:, h * head_dim:(h + 1) * head_dim].astype(feed)
            v_scr[h] = kv[:, d_all + h * head_dim:
                          d_all + (h + 1) * head_dim].astype(feed)

    # Per query tile: LN1 + Q projection for this tile's rows, then batched
    # head attention with deferred softmax normalization, then projection.
    xq = xq_ref[0].astype(jnp.float32)                                  # (tq, D)
    xqn = layer_norm(xq)
    q = jnp.dot(xqn.astype(feed), wq_ref[...],
                preferred_element_type=jnp.float32)                     # (tq, d_all)
    q = (q + bq_ref[...].astype(jnp.float32)) * scale
    for h in range(num_heads):
        q_scr[h] = q[:, h * head_dim:(h + 1) * head_dim].astype(feed)

    qh = q_scr[...]                                                     # (H, tq, hd)
    kh = k_scr[...]                                                     # (H, N, hd)
    vh = v_scr[...]                                                     # (H, N, hd)

    s = jnp.einsum('hqd,hkd->hqk', qh, kh,
                   preferred_element_type=jnp.float32)                  # (H, tq, N)
    m = jnp.max(s, axis=-1, keepdims=True)
    e = jnp.exp(s - m)
    denom = jnp.sum(e, axis=-1, keepdims=True)                          # (H, tq, 1)
    o = jnp.einsum('hqk,hkd->hqd', e.astype(feed), vh,
                   preferred_element_type=jnp.float32)                  # (H, tq, hd)
    o = o * pl.reciprocal(denom, approx=True)          # deferred normalization (EUP)

    # Head-batched output projection, summed over heads (no lane-dim concat).
    yh = jnp.einsum('hqd,hdc->hqc', o.astype(feed), wph_ref[...],
                    preferred_element_type=jnp.float32)                 # (H, tq, D)
    y = jnp.sum(yh, axis=0)
    y = (y + bp_ref[...].astype(jnp.float32)) * gamma1_ref[...].astype(jnp.float32)

    o_ref[0] = (xq + y).astype(o_ref.dtype)                             # residual


def attention_block_pallas(x, prep, *, tq=128):
    B, N, D = x.shape
    num_heads, head_dim, _ = prep["w_proj_h"].shape
    d_all = num_heads * head_dim
    scale = float(head_dim) ** -0.5
    feed = prep["w_q"].dtype

    tq = _pick_tile(N, tq, 8)
    grid = (B, N // tq)

    kern = functools.partial(_attn_block_kernel, num_heads=num_heads,
                             head_dim=head_dim, scale=scale)
    const2 = lambda b, q: (0, 0)

    blk = (_nbytes((1, tq, D), x.dtype) + _nbytes((1, N, D), x.dtype)
           + _nbytes((D, d_all), feed) + _nbytes((D, 2 * d_all), feed)
           + _nbytes((num_heads, head_dim, D), feed)
           + _nbytes((1, 3 * d_all), jnp.float32)
           + 5 * _nbytes((1, D), jnp.float32)
           + _nbytes((1, tq, D), x.dtype))
    lane_hd = max(head_dim, 128)   # scratch planes are lane-padded to 128
    scr = (2 * _nbytes((num_heads, N, lane_hd), feed)
           + _nbytes((num_heads, tq, lane_hd), feed))
    vmem_limit = _vmem_budget(blk, scr)

    return pl.pallas_call(
        kern,
        out_shape=jax.ShapeDtypeStruct((B, N, D), x.dtype),
        grid_spec=pltpu.PrefetchScalarGridSpec(
            num_scalar_prefetch=0,
            grid=grid,
            in_specs=[
                pl.BlockSpec((1, tq, D), lambda b, q: (b, q, 0)),   # x query rows
                pl.BlockSpec((1, N, D), lambda b, q: (b, 0, 0)),    # x full (K/V source; DMA once per b)
                pl.BlockSpec((1, D), const2),                       # ln1 gamma
                pl.BlockSpec((1, D), const2),                       # ln1 beta
                pl.BlockSpec((D, d_all), const2),                   # W_q
                pl.BlockSpec((1, d_all), const2),                   # b_q
                pl.BlockSpec((D, 2 * d_all), const2),               # W_kv
                pl.BlockSpec((1, 2 * d_all), const2),               # b_kv
                pl.BlockSpec((num_heads, head_dim, D),
                             lambda b, q: (0, 0, 0)),               # W_proj (head-major)
                pl.BlockSpec((1, D), const2),                       # b_proj
                pl.BlockSpec((1, D), const2),                       # gamma_1
            ],
            out_specs=pl.BlockSpec((1, tq, D), lambda b, q: (b, q, 0)),
            scratch_shapes=[
                pltpu.VMEM((num_heads, N, head_dim), feed),   # K (resident per batch)
                pltpu.VMEM((num_heads, N, head_dim), feed),   # V
                pltpu.VMEM((num_heads, tq, head_dim), feed),  # Q tile (head-major)
            ],
        ),
        compiler_params=pltpu.CompilerParams(
            dimension_semantics=("parallel", "arbitrary"),
            vmem_limit_bytes=vmem_limit),
    )(x, x, prep["ln1_g"], prep["ln1_b"], prep["w_q"], prep["b_q"],
      prep["w_kv"], prep["b_kv"], prep["w_proj_h"], prep["b_proj"],
      prep["gamma_1"])


# ---------------------------------------------------------------------------
# MLP sub-block:  out = x + gamma_2 * (GELU(LayerNorm2(x) @ W1 + b1) @ W2 + b2)
# Grid = (row tiles, hidden tiles).  Hidden axis is a reduction ("arbitrary")
# accumulated into a (tm, D) f32 VMEM scratch; LN2(x) is cached in the MXU
# feed dtype and reused across hidden steps.
# ---------------------------------------------------------------------------
def _mlp_block_kernel(x_ref, g_ref, b_ref, w1_ref, b1_ref, w2_ref, b2_ref,
                      gamma2_ref, o_ref, acc_ref, xn_ref):
    h_idx = pl.program_id(1)

    @pl.when(h_idx == 0)
    def _init():
        x = x_ref[...].astype(jnp.float32)
        mu = jnp.mean(x, axis=-1, keepdims=True)
        var = jnp.mean(jnp.square(x - mu), axis=-1, keepdims=True)
        xn = (x - mu) * jax.lax.rsqrt(var + LN_EPS)
        xn = xn * g_ref[...].astype(jnp.float32) + b_ref[...].astype(jnp.float32)
        xn_ref[...] = xn.astype(xn_ref.dtype)          # cast once; feed dtype
        acc_ref[...] = jnp.zeros_like(acc_ref)

    # fc1 hidden chunk -> bias -> exact GELU -> fc2 chunk, f32 accumulation.
    hblk = jnp.dot(xn_ref[...], w1_ref[...], preferred_element_type=jnp.float32)
    hblk = hblk + b1_ref[...].astype(jnp.float32)
    # matches nn.GELU default (exact erf).  tanh variant would run on the EUP
    # but changes numerics, so it is not used here.
    hblk = jax.nn.gelu(hblk, approximate=False)
    acc_ref[...] += jnp.dot(hblk.astype(w2_ref.dtype), w2_ref[...],
                            preferred_element_type=jnp.float32)

    @pl.when(h_idx == pl.num_programs(1) - 1)
    def _finalize():
        y = acc_ref[...] + b2_ref[...].astype(jnp.float32)
        y = y * gamma2_ref[...].astype(jnp.float32)
        o_ref[...] = (x_ref[...].astype(jnp.float32) + y).astype(o_ref.dtype)


def mlp_block_pallas(x, prep, *, tm=256):
    """x: (..., D) -> (..., D).  tm ~256 for v6e/v7x (use ~128 on v5e)."""
    orig_shape = x.shape
    D = orig_shape[-1]
    w1, w2 = prep["w_fc1"], prep["w_fc2"]
    H = w1.shape[1]
    th = prep["mlp_tile_h"]
    assert H % th == 0, "hidden dim must be pre-padded by prepare_block_params"
    feed = w1.dtype

    x2 = x.reshape(-1, D)
    m = x2.shape[0]
    tm = min(_round_up(tm, 8), _round_up(m, 8))
    m_pad = _round_up(m, tm)
    if m_pad != m:
        x2 = jnp.pad(x2, ((0, m_pad - m), (0, 0)))

    grid = (m_pad // tm, H // th)

    blk = (_nbytes((tm, D), x.dtype) + _nbytes((D, th), feed)
           + _nbytes((th, D), feed) + _nbytes((1, th), jnp.float32)
           + 5 * _nbytes((1, D), jnp.float32) + _nbytes((tm, D), x.dtype))
    scr = _nbytes((tm, D), jnp.float32) + _nbytes((tm, D), feed)
    vmem_limit = _vmem_budget(blk, scr)

    out = pl.pallas_call(
        _mlp_block_kernel,
        out_shape=jax.ShapeDtypeStruct((m_pad, D), x.dtype),
        grid_spec=pltpu.PrefetchScalarGridSpec(
            num_scalar_prefetch=0,
            grid=grid,
            in_specs=[
                pl.BlockSpec((tm, D), lambda i, h: (i, 0)),   # x rows (resident over h)
                pl.BlockSpec((1, D), lambda i, h: (0, 0)),    # ln2 gamma
                pl.BlockSpec((1, D), lambda i, h: (0, 0)),    # ln2 beta
                pl.BlockSpec((D, th), lambda i, h: (0, h)),   # W1 hidden chunk
                pl.BlockSpec((1, th), lambda i, h: (0, h)),   # b1 hidden chunk
                pl.BlockSpec((th, D), lambda i, h: (h, 0)),   # W2 hidden chunk
                pl.BlockSpec((1, D), lambda i, h: (0, 0)),    # b2
                pl.BlockSpec((1, D), lambda i, h: (0, 0)),    # gamma_2
            ],
            out_specs=pl.BlockSpec((tm, D), lambda i, h: (i, 0)),
            scratch_shapes=[pltpu.VMEM((tm, D), jnp.float32),  # fc2 accumulator
                            pltpu.VMEM((tm, D), feed)],        # cached LN2(x), feed dtype
        ),
        compiler_params=pltpu.CompilerParams(
            dimension_semantics=("parallel", "arbitrary"),
            vmem_limit_bytes=vmem_limit),
    )(x2, prep["ln2_g"], prep["ln2_b"], w1, prep["b_fc1"], w2,
      prep["b_fc2"], prep["gamma_2"])

    return out[:m].reshape(orig_shape)


def block_forward_pallas(x, prep, *, tq=128, tm=256):
    x = attention_block_pallas(x, prep, tq=tq)
    x = mlp_block_pallas(x, prep, tm=tm)
    return x


# ---------------------------------------------------------------------------
# Pure-JAX f32 reference (mirrors the PyTorch Block forward, default path).
# ---------------------------------------------------------------------------
def block_reference(x, params, *, num_heads):
    def ln(v, g, b):
        mu = v.mean(axis=-1, keepdims=True)
        var = ((v - mu) ** 2).mean(axis=-1, keepdims=True)
        return (v - mu) / jnp.sqrt(var + LN_EPS) * g + b

    B, N, D = x.shape
    d_all = params["w_proj"].shape[0]
    hd = d_all // num_heads
    scale = float(hd) ** -0.5

    xn = ln(x, params["ln1_g"], params["ln1_b"])
    qkv = xn @ params["w_qkv"] + params["b_qkv"]
    q, k, v = jnp.split(qkv, 3, axis=-1)

    def heads(t):
        return t.reshape(B, N, num_heads, hd).transpose(0, 2, 1, 3)

    q, k, v = heads(q) * scale, heads(k), heads(v)
    attn = jax.nn.softmax(q @ jnp.swapaxes(k, -1, -2), axis=-1)
    o = (attn @ v).transpose(0, 2, 1, 3).reshape(B, N, d_all)
    o = o @ params["w_proj"] + params["b_proj"]
    x = x + params["gamma_1"] * o

    xn2 = ln(x, params["ln2_g"], params["ln2_b"])
    h = jax.nn.gelu(xn2 @ params["w_fc1"] + params["b_fc1"], approximate=False)
    m = h @ params["w_fc2"] + params["b_fc2"]
    return x + params["gamma_2"] * m


if __name__ == "__main__":
    # Small, lane-friendly shapes consistent with Block: tokens (B, N, dim).
    # N=256 with tq=128 exercises the query-tile grid axis; HIDDEN=512 with
    # mlp_tile_h=256 exercises the hidden-reduction accumulator path.
    B, N, D = 2, 256, 128
    NUM_HEADS = 2                       # head_dim = 64
    HIDDEN = int(D * 4.0)               # mlp_ratio = 4.0
    INIT_VALUES = 0.1                   # Block(init_values=0.1) -> gamma path

    key = jax.random.PRNGKey(0)
    ks = jax.random.split(key, 16)

    x = jax.random.normal(ks[0], (B, N, D), dtype=jnp.float32)

    def linear_w(k, fan_in, shape):
        return jax.random.normal(k, shape, dtype=jnp.float32) / jnp.sqrt(fan_in)

    d_all = D  # attn_head_dim=None -> all_head_dim == dim
    q_bias = 0.02 * jax.random.normal(ks[1], (d_all,), dtype=jnp.float32)
    v_bias = 0.02 * jax.random.normal(ks[2], (d_all,), dtype=jnp.float32)

    params = {
        "ln1_g": 1.0 + 0.1 * jax.random.normal(ks[3], (D,), dtype=jnp.float32),
        "ln1_b": 0.02 * jax.random.normal(ks[4], (D,), dtype=jnp.float32),
        "w_qkv": linear_w(ks[5], D, (D, 3 * d_all)),
        # qkv_bias=True: bias = cat(q_bias, zeros_like(v_bias), v_bias)
        "b_qkv": jnp.concatenate([q_bias, jnp.zeros((d_all,), jnp.float32), v_bias]),
        "w_proj": linear_w(ks[6], d_all, (d_all, D)),
        "b_proj": 0.02 * jax.random.normal(ks[7], (D,), dtype=jnp.float32),
        "ln2_g": 1.0 + 0.1 * jax.random.normal(ks[8], (D,), dtype=jnp.float32),
        "ln2_b": 0.02 * jax.random.normal(ks[9], (D,), dtype=jnp.float32),
        "w_fc1": linear_w(ks[10], D, (D, HIDDEN)),
        "b_fc1": 0.02 * jax.random.normal(ks[11], (HIDDEN,), dtype=jnp.float32),
        "w_fc2": linear_w(ks[12], HIDDEN, (HIDDEN, D)),
        "b_fc2": 0.02 * jax.random.normal(ks[13], (D,), dtype=jnp.float32),
        "gamma_1": INIT_VALUES * jnp.ones((D,), jnp.float32),
        "gamma_2": INIT_VALUES * jnp.ones((D,), jnp.float32),
    }

    # One-time prep: bf16 MXU weights, Q/KV split, head-major W_proj,
    # hidden-dim padding, (1, D) reshapes.
    prep = prepare_block_params(params, num_heads=NUM_HEADS,
                                mxu_dtype=jnp.bfloat16, mlp_tile_h=256)

    y = block_forward_pallas(x, prep, tq=128, tm=256)
    y = jax.block_until_ready(y)

    with jax.default_matmul_precision("highest"):
        y_ref = block_reference(x, params, num_heads=NUM_HEADS)

    assert y.shape == (B, N, D)
    max_err = float(jnp.max(jnp.abs(y - y_ref)))
    # bf16 MXU feeds + approx reciprocal in the softmax epilogue -> slightly
    # wider tolerance than the all-f32 variant.
    assert jnp.allclose(y, y_ref, atol=5e-2, rtol=5e-2), \
        f"mismatch vs reference, max abs err = {max_err}"

    print("KERNEL_OK")
</pallas_src>

<mosaic_0001>
module attributes {stable_mosaic.version = 11 : i64} {
  func.func @_attn_block_kernel(%arg0: i32, %arg1: i32, %arg2: memref<1x128x128xf32, #tpu.memory_space<vmem>>, %arg3: memref<1x256x128xf32, #tpu.memory_space<vmem>>, %arg4: memref<1x128xf32, #tpu.memory_space<vmem>>, %arg5: memref<1x128xf32, #tpu.memory_space<vmem>>, %arg6: memref<128x128xbf16, #tpu.memory_space<vmem>>, %arg7: memref<1x128xf32, #tpu.memory_space<vmem>>, %arg8: memref<128x256xbf16, #tpu.memory_space<vmem>>, %arg9: memref<1x256xf32, #tpu.memory_space<vmem>>, %arg10: memref<2x64x128xbf16, #tpu.memory_space<vmem>>, %arg11: memref<1x128xf32, #tpu.memory_space<vmem>>, %arg12: memref<1x128xf32, #tpu.memory_space<vmem>>, %arg13: memref<1x128x128xf32, #tpu.memory_space<vmem>>, %arg14: memref<2x256x64xbf16, #tpu.memory_space<vmem>>, %arg15: memref<2x256x64xbf16, #tpu.memory_space<vmem>>, %arg16: memref<2x128x64xbf16, #tpu.memory_space<vmem>>) attributes {dimension_semantics = [#tpu.dimension_semantics<parallel>, #tpu.dimension_semantics<arbitrary>], iteration_bounds = array<i64: 2, 2>, scalar_prefetch = 0 : i64, scratch_operands = 3 : i64, tpu.core_type = #tpu.core_type<tc>, window_params = [{transform_indices = @transform_0, window_bounds = array<i64: 1, 128, 128>}, {transform_indices = @transform_1, window_bounds = array<i64: 1, 256, 128>}, {pipeline_mode = #tpu.pipeline_mode<synchronous>, transform_indices = @transform_2, window_bounds = array<i64: 1, 128>}, {pipeline_mode = #tpu.pipeline_mode<synchronous>, transform_indices = @transform_3, window_bounds = array<i64: 1, 128>}, {pipeline_mode = #tpu.pipeline_mode<synchronous>, transform_indices = @transform_4, window_bounds = array<i64: 128, 128>}, {pipeline_mode = #tpu.pipeline_mode<synchronous>, transform_indices = @transform_5, window_bounds = array<i64: 1, 128>}, {pipeline_mode = #tpu.pipeline_mode<synchronous>, transform_indices = @transform_6, window_bounds = array<i64: 128, 256>}, {pipeline_mode = #tpu.pipeline_mode<synchronous>, transform_indices = @transform_7, window_bounds = array<i64: 1, 256>}, {pipeline_mode = #tpu.pipeline_mode<synchronous>, transform_indices = @transform_8, window_bounds = array<i64: 2, 64, 128>}, {pipeline_mode = #tpu.pipeline_mode<synchronous>, transform_indices = @transform_9, window_bounds = array<i64: 1, 128>}, {pipeline_mode = #tpu.pipeline_mode<synchronous>, transform_indices = @transform_10, window_bounds = array<i64: 1, 128>}, {transform_indices = @transform_11, window_bounds = array<i64: 1, 128, 128>}]} {
    %c0_i32 = arith.constant 0 : i32
    %0 = arith.cmpi eq, %arg1, %c0_i32 : i32
    %1 = arith.extui %0 : i1 to i32
    %c0_i32_0 = arith.constant 0 : i32
    %2 = arith.cmpi ne, %1, %c0_i32_0 : i32
    scf.if %2 {
      %c0_47 = arith.constant 0 : index
      %c0_48 = arith.constant 0 : index
      %c0_49 = arith.constant 0 : index
      %77 = vector.load %arg3[%c0_47, %c0_48, %c0_49] : memref<1x256x128xf32, #tpu.memory_space<vmem>>, vector<1x256x128xf32>
      %78 = vector.shape_cast %77 : vector<1x256x128xf32> to vector<256x128xf32>
      %cst_50 = arith.constant dense<0.000000e+00> : vector<256xf32>
      %79 = vector.multi_reduction <add>, %78, %cst_50 [1] : vector<256x128xf32> to vector<256xf32>
      %80 = vector.shape_cast %79 : vector<256xf32> to vector<256x1xf32>
      %cst_51 = arith.constant 1.280000e+02 : f32
      %81 = vector.broadcast %cst_51 : f32 to vector<256x1xf32>
      %82 = arith.divf %80, %81 : vector<256x1xf32>
      %83 = vector.broadcast %82 : vector<256x1xf32> to vector<256x128xf32>
      %84 = arith.subf %78, %83 : vector<256x128xf32>
      %85 = arith.mulf %84, %84 : vector<256x128xf32>
      %cst_52 = arith.constant dense<0.000000e+00> : vector<256xf32>
      %86 = vector.multi_reduction <add>, %85, %cst_52 [1] : vector<256x128xf32> to vector<256xf32>
      %87 = vector.shape_cast %86 : vector<256xf32> to vector<256x1xf32>
      %cst_53 = arith.constant 1.280000e+02 : f32
      %88 = vector.broadcast %cst_53 : f32 to vector<256x1xf32>
      %89 = arith.divf %87, %88 : vector<256x1xf32>
      %90 = vector.broadcast %82 : vector<256x1xf32> to vector<256x128xf32>
      %91 = arith.subf %78, %90 : vector<256x128xf32>
      %cst_54 = arith.constant 9.99999974E-6 : f32
      %92 = vector.broadcast %cst_54 : f32 to vector<256x1xf32>
      %93 = arith.addf %89, %92 : vector<256x1xf32>
      %94 = math.rsqrt %93 : vector<256x1xf32>
      %95 = vector.broadcast %94 : vector<256x1xf32> to vector<256x128xf32>
      %96 = arith.mulf %91, %95 : vector<256x128xf32>
      %c0_55 = arith.constant 0 : index
      %c0_56 = arith.constant 0 : index
      %97 = vector.load %arg4[%c0_55, %c0_56] : memref<1x128xf32, #tpu.memory_space<vmem>>, vector<1x128xf32>
      %98 = vector.broadcast %97 : vector<1x128xf32> to vector<256x128xf32>
      %99 = arith.mulf %96, %98 : vector<256x128xf32>
      %c0_57 = arith.constant 0 : index
      %c0_58 = arith.constant 0 : index
      %100 = vector.load %arg5[%c0_57, %c0_58] : memref<1x128xf32, #tpu.memory_space<vmem>>, vector<1x128xf32>
      %101 = vector.broadcast %100 : vector<1x128xf32> to vector<256x128xf32>
      %102 = arith.addf %99, %101 : vector<256x128xf32>
      %103 = arith.truncf %102 : vector<256x128xf32> to vector<256x128xbf16>
      %c0_59 = arith.constant 0 : index
      %c0_60 = arith.constant 0 : index
      %104 = vector.load %arg8[%c0_59, %c0_60] : memref<128x256xbf16, #tpu.memory_space<vmem>>, vector<128x256xbf16>
      %cst_61 = arith.constant dense<0.000000e+00> : vector<256x256xf32>
      %105 = tpu.matmul %103, %104, %cst_61 {dimension_numbers = #tpu.dot_dimension_numbers<[1], [0], [0], [1], [0, 0, 1, 1], [], []>} : vector<256x128xbf16>, vector<128x256xbf16>, vector<256x256xf32> -> vector<256x256xf32>
      %c0_62 = arith.constant 0 : index
      %c0_63 = arith.constant 0 : index
      %106 = vector.load %arg9[%c0_62, %c0_63] : memref<1x256xf32, #tpu.memory_space<vmem>>, vector<1x256xf32>
      %107 = vector.broadcast %106 : vector<1x256xf32> to vector<256x256xf32>
      %108 = arith.addf %105, %107 : vector<256x256xf32>
      %109 = vector.extract_strided_slice %108 {offsets = [0, 0], sizes = [256, 64], strides = [1, 1]} : vector<256x256xf32> to vector<256x64xf32>
      %110 = arith.truncf %109 : vector<256x64xf32> to vector<256x64xbf16>
      %c0_64 = arith.constant 0 : index
      %c0_65 = arith.constant 0 : index
      %c0_66 = arith.constant 0 : index
      %111 = vector.load %arg14[%c0_64, %c0_65, %c0_66] : memref<2x256x64xbf16, #tpu.memory_space<vmem>>, vector<1x256x64xbf16>
      %112 = vector.shape_cast %111 : vector<1x256x64xbf16> to vector<256x64xbf16>
      %113 = vector.shape_cast %110 : vector<256x64xbf16> to vector<1x256x64xbf16>
      tpu.vector_store %arg14[%c0_64, %c0_65, %c0_66], %113 {strides = array<i32>} : memref<2x256x64xbf16, #tpu.memory_space<vmem>>, vector<1x256x64xbf16>,
      %114 = vector.extract_strided_slice %108 {offsets = [0, 128], sizes = [256, 64], strides = [1, 1]} : vector<256x256xf32> to vector<256x64xf32>
      %115 = arith.truncf %114 : vector<256x64xf32> to vector<256x64xbf16>
      %c0_67 = arith.constant 0 : index
      %c0_68 = arith.constant 0 : index
      %c0_69 = arith.constant 0 : index
      %116 = vector.load %arg15[%c0_67, %c0_68, %c0_69] : memref<2x256x64xbf16, #tpu.memory_space<vmem>>, vector<1x256x64xbf16>
      %117 = vector.shape_cast %116 : vector<1x256x64xbf16> to vector<256x64xbf16>
      %118 = vector.shape_cast %115 : vector<256x64xbf16> to vector<1x256x64xbf16>
      tpu.vector_store %arg15[%c0_67, %c0_68, %c0_69], %118 {strides = array<i32>} : memref<2x256x64xbf16, #tpu.memory_space<vmem>>, vector<1x256x64xbf16>,
      %119 = vector.extract_strided_slice %108 {offsets = [0, 64], sizes = [256, 64], strides = [1, 1]} : vector<256x256xf32> to vector<256x64xf32>
      %120 = arith.truncf %119 : vector<256x64xf32> to vector<256x64xbf16>
      %c1_70 = arith.constant 1 : index
      %c0_71 = arith.constant 0 : index
      %c0_72 = arith.constant 0 : index
      %121 = vector.load %arg14[%c1_70, %c0_71, %c0_72] : memref<2x256x64xbf16, #tpu.memory_space<vmem>>, vector<1x256x64xbf16>
      %122 = vector.shape_cast %121 : vector<1x256x64xbf16> to vector<256x64xbf16>
      %123 = vector.shape_cast %120 : vector<256x64xbf16> to vector<1x256x64xbf16>
      tpu.vector_store %arg14[%c1_70, %c0_71, %c0_72], %123 {strides = array<i32>} : memref<2x256x64xbf16, #tpu.memory_space<vmem>>, vector<1x256x64xbf16>,
      %124 = vector.extract_strided_slice %108 {offsets = [0, 192], sizes = [256, 64], strides = [1, 1]} : vector<256x256xf32> to vector<256x64xf32>
      %125 = arith.truncf %124 : vector<256x64xf32> to vector<256x64xbf16>
      %c1_73 = arith.constant 1 : index
      %c0_74 = arith.constant 0 : index
      %c0_75 = arith.constant 0 : index
      %126 = vector.load %arg15[%c1_73, %c0_74, %c0_75] : memref<2x256x64xbf16, #tpu.memory_space<vmem>>, vector<1x256x64xbf16>
      %127 = vector.shape_cast %126 : vector<1x256x64xbf16> to vector<256x64xbf16>
      %128 = vector.shape_cast %125 : vector<256x64xbf16> to vector<1x256x64xbf16>
      tpu.vector_store %arg15[%c1_73, %c0_74, %c0_75], %128 {strides = array<i32>} : memref<2x256x64xbf16, #tpu.memory_space<vmem>>, vector<1x256x64xbf16>,
    } else {
    }
    %c0 = arith.constant 0 : index
    %c0_1 = arith.constant 0 : index
    %c0_2 = arith.constant 0 : index
    %3 = vector.load %arg2[%c0, %c0_1, %c0_2] : memref<1x128x128xf32, #tpu.memory_space<vmem>>, vector<1x128x128xf32>
    %4 = vector.shape_cast %3 : vector<1x128x128xf32> to vector<128x128xf32>
    %cst = arith.constant dense<0.000000e+00> : vector<128xf32>
    %5 = vector.multi_reduction <add>, %4, %cst [1] : vector<128x128xf32> to vector<128xf32>
    %6 = vector.shape_cast %5 : vector<128xf32> to vector<128x1xf32>
    %cst_3 = arith.constant 1.280000e+02 : f32
    %7 = vector.broadcast %cst_3 : f32 to vector<128x1xf32>
    %8 = arith.divf %6, %7 : vector<128x1xf32>
    %9 = vector.broadcast %8 : vector<128x1xf32> to vector<128x128xf32>
    %10 = arith.subf %4, %9 : vector<128x128xf32>
    %11 = arith.mulf %10, %10 : vector<128x128xf32>
    %cst_4 = arith.constant dense<0.000000e+00> : vector<128xf32>
    %12 = vector.multi_reduction <add>, %11, %cst_4 [1] : vector<128x128xf32> to vector<128xf32>
    %13 = vector.shape_cast %12 : vector<128xf32> to vector<128x1xf32>
    %cst_5 = arith.constant 1.280000e+02 : f32
    %14 = vector.broadcast %cst_5 : f32 to vector<128x1xf32>
    %15 = arith.divf %13, %14 : vector<128x1xf32>
    %16 = vector.broadcast %8 : vector<128x1xf32> to vector<128x128xf32>
    %17 = arith.subf %4, %16 : vector<128x128xf32>
    %cst_6 = arith.constant 9.99999974E-6 : f32
    %18 = vector.broadcast %cst_6 : f32 to vector<128x1xf32>
    %19 = arith.addf %15, %18 : vector<128x1xf32>
    %20 = math.rsqrt %19 : vector<128x1xf32>
    %21 = vector.broadcast %20 : vector<128x1xf32> to vector<128x128xf32>
    %22 = arith.mulf %17, %21 : vector<128x128xf32>
    %c0_7 = arith.constant 0 : index
    %c0_8 = arith.constant 0 : index
    %23 = vector.load %arg4[%c0_7, %c0_8] : memref<1x128xf32, #tpu.memory_space<vmem>>, vector<1x128xf32>
    %24 = vector.broadcast %23 : vector<1x128xf32> to vector<128x128xf32>
    %25 = arith.mulf %22, %24 : vector<128x128xf32>
    %c0_9 = arith.constant 0 : index
    %c0_10 = arith.constant 0 : index
    %26 = vector.load %arg5[%c0_9, %c0_10] : memref<1x128xf32, #tpu.memory_space<vmem>>, vector<1x128xf32>
    %27 = vector.broadcast %26 : vector<1x128xf32> to vector<128x128xf32>
    %28 = arith.addf %25, %27 : vector<128x128xf32>
    %29 = arith.truncf %28 : vector<128x128xf32> to vector<128x128xbf16>
    %c0_11 = arith.constant 0 : index
    %c0_12 = arith.constant 0 : index
    %30 = vector.load %arg6[%c0_11, %c0_12] : memref<128x128xbf16, #tpu.memory_space<vmem>>, vector<128x128xbf16>
    %cst_13 = arith.constant dense<0.000000e+00> : vector<128x128xf32>
    %31 = tpu.matmul %29, %30, %cst_13 {dimension_numbers = #tpu.dot_dimension_numbers<[1], [0], [0], [1], [0, 0, 1, 1], [], []>} : vector<128x128xbf16>, vector<128x128xbf16>, vector<128x128xf32> -> vector<128x128xf32>
    %c0_14 = arith.constant 0 : index
    %c0_15 = arith.constant 0 : index
    %32 = vector.load %arg7[%c0_14, %c0_15] : memref<1x128xf32, #tpu.memory_space<vmem>>, vector<1x128xf32>
    %33 = vector.broadcast %32 : vector<1x128xf32> to vector<128x128xf32>
    %34 = arith.addf %31, %33 : vector<128x128xf32>
    %cst_16 = arith.constant 1.250000e-01 : f32
    %35 = vector.broadcast %cst_16 : f32 to vector<128x128xf32>
    %36 = arith.mulf %34, %35 : vector<128x128xf32>
    %37 = vector.extract_strided_slice %36 {offsets = [0, 0], sizes = [128, 64], strides = [1, 1]} : vector<128x128xf32> to vector<128x64xf32>
    %38 = arith.truncf %37 : vector<128x64xf32> to vector<128x64xbf16>
    %c0_17 = arith.constant 0 : index
    %c0_18 = arith.constant 0 : index
    %c0_19 = arith.constant 0 : index
    %39 = vector.load %arg16[%c0_17, %c0_18, %c0_19] : memref<2x128x64xbf16, #tpu.memory_space<vmem>>, vector<1x128x64xbf16>
    %40 = vector.shape_cast %39 : vector<1x128x64xbf16> to vector<128x64xbf16>
    %41 = vector.shape_cast %38 : vector<128x64xbf16> to vector<1x128x64xbf16>
    tpu.vector_store %arg16[%c0_17, %c0_18, %c0_19], %41 {strides = array<i32>} : memref<2x128x64xbf16, #tpu.memory_space<vmem>>, vector<1x128x64xbf16>,
    %42 = vector.extract_strided_slice %36 {offsets = [0, 64], sizes = [128, 64], strides = [1, 1]} : vector<128x128xf32> to vector<128x64xf32>
    %43 = arith.truncf %42 : vector<128x64xf32> to vector<128x64xbf16>
    %c1 = arith.constant 1 : index
    %c0_20 = arith.constant 0 : index
    %c0_21 = arith.constant 0 : index
    %44 = vector.load %arg16[%c1, %c0_20, %c0_21] : memref<2x128x64xbf16, #tpu.memory_space<vmem>>, vector<1x128x64xbf16>
    %45 = vector.shape_cast %44 : vector<1x128x64xbf16> to vector<128x64xbf16>
    %46 = vector.shape_cast %43 : vector<128x64xbf16> to vector<1x128x64xbf16>
    tpu.vector_store %arg16[%c1, %c0_20, %c0_21], %46 {strides = array<i32>} : memref<2x128x64xbf16, #tpu.memory_space<vmem>>, vector<1x128x64xbf16>,
    %c0_22 = arith.constant 0 : index
    %c0_23 = arith.constant 0 : index
    %c0_24 = arith.constant 0 : index
    %47 = vector.load %arg16[%c0_22, %c0_23, %c0_24] : memref<2x128x64xbf16, #tpu.memory_space<vmem>>, vector<2x128x64xbf16>
    %c0_25 = arith.constant 0 : index
    %c0_26 = arith.constant 0 : index
    %c0_27 = arith.constant 0 : index
    %48 = vector.load %arg14[%c0_25, %c0_26, %c0_27] : memref<2x256x64xbf16, #tpu.memory_space<vmem>>, vector<2x256x64xbf16>
    %c0_28 = arith.constant 0 : index
    %c0_29 = arith.constant 0 : index
    %c0_30 = arith.constant 0 : index
    %49 = vector.load %arg15[%c0_28, %c0_29, %c0_30] : memref<2x256x64xbf16, #tpu.memory_space<vmem>>, vector<2x256x64xbf16>
    "tpu.trace_start"() <{level = 10 : i32, message = "hqd,hkd->hqk"}> : () -> ()
    %cst_31 = arith.constant dense<0.000000e+00> : vector<2x128x256xf32>
    %50 = tpu.matmul %47, %48, %cst_31 {dimension_numbers = #tpu.dot_dimension_numbers<[2], [2], [1], [1], [0, 0, 0, 1, 1, 1], [0], [0]>} : vector<2x128x64xbf16>, vector<2x256x64xbf16>, vector<2x128x256xf32> -> vector<2x128x256xf32>
    "tpu.trace_stop"() : () -> ()
    %cst_32 = arith.constant dense<0xFF800000> : vector<2x128xf32>
    %51 = vector.multi_reduction <maximumf>, %50, %cst_32 [2] : vector<2x128x256xf32> to vector<2x128xf32>
    %52 = vector.shape_cast %51 : vector<2x128xf32> to vector<2x128x1xf32>
    %53 = vector.broadcast %52 : vector<2x128x1xf32> to vector<2x128x256xf32>
    %54 = arith.subf %50, %53 : vector<2x128x256xf32>
    %55 = math.exp %54 : vector<2x128x256xf32>
    %cst_33 = arith.constant dense<0.000000e+00> : vector<2x128xf32>
    %56 = vector.multi_reduction <add>, %55, %cst_33 [2] : vector<2x128x256xf32> to vector<2x128xf32>
    %57 = vector.shape_cast %56 : vector<2x128xf32> to vector<2x128x1xf32>
    %58 = arith.truncf %55 : vector<2x128x256xf32> to vector<2x128x256xbf16>
    "tpu.trace_start"() <{level = 10 : i32, message = "hqk,hkd->hqd"}> : () -> ()
    %cst_34 = arith.constant dense<0.000000e+00> : vector<2x128x64xf32>
    %59 = tpu.matmul %58, %49, %cst_34 {dimension_numbers = #tpu.dot_dimension_numbers<[2], [1], [1], [2], [0, 0, 0, 1, 1, 2], [0], [0]>} : vector<2x128x256xbf16>, vector<2x256x64xbf16>, vector<2x128x64xf32> -> vector<2x128x64xf32>
    "tpu.trace_stop"() : () -> ()
    %60 = tpu.reciprocal %57 {approx = true} : vector<2x128x1xf32> -> vector<2x128x1xf32>
    %61 = vector.broadcast %60 : vector<2x128x1xf32> to vector<2x128x64xf32>
    %62 = arith.mulf %59, %61 : vector<2x128x64xf32>
    %63 = arith.truncf %62 : vector<2x128x64xf32> to vector<2x128x64xbf16>
    %c0_35 = arith.constant 0 : index
    %c0_36 = arith.constant 0 : index
    %c0_37 = arith.constant 0 : index
    %64 = vector.load %arg10[%c0_35, %c0_36, %c0_37] : memref<2x64x128xbf16, #tpu.memory_space<vmem>>, vector<2x64x128xbf16>
    "tpu.trace_start"() <{level = 10 : i32, message = "hqd,hdc->hqc"}> : () -> ()
    %cst_38 = arith.constant dense<0.000000e+00> : vector<2x128x128xf32>
    %65 = tpu.matmul %63, %64, %cst_38 {dimension_numbers = #tpu.dot_dimension_numbers<[2], [1], [1], [2], [0, 0, 0, 1, 1, 2], [0], [0]>} : vector<2x128x64xbf16>, vector<2x64x128xbf16>, vector<2x128x128xf32> -> vector<2x128x128xf32>
    "tpu.trace_stop"() : () -> ()
    %cst_39 = arith.constant dense<0.000000e+00> : vector<128x128xf32>
    %66 = vector.multi_reduction <add>, %65, %cst_39 [0] : vector<2x128x128xf32> to vector<128x128xf32>
    %c0_40 = arith.constant 0 : index
    %c0_41 = arith.constant 0 : index
    %67 = vector.load %arg11[%c0_40, %c0_41] : memref<1x128xf32, #tpu.memory_space<vmem>>, vector<1x128xf32>
    %68 = vector.broadcast %67 : vector<1x128xf32> to vector<128x128xf32>
    %69 = arith.addf %66, %68 : vector<128x128xf32>
    %c0_42 = arith.constant 0 : index
    %c0_43 = arith.constant 0 : index
    %70 = vector.load %arg12[%c0_42, %c0_43] : memref<1x128xf32, #tpu.memory_space<vmem>>, vector<1x128xf32>
    %71 = vector.broadcast %70 : vector<1x128xf32> to vector<128x128xf32>
    %72 = arith.mulf %69, %71 : vector<128x128xf32>
    %73 = arith.addf %4, %72 : vector<128x128xf32>
    %c0_44 = arith.constant 0 : index
    %c0_45 = arith.constant 0 : index
    %c0_46 = arith.constant 0 : index
    %74 = vector.load %arg13[%c0_44, %c0_45, %c0_46] : memref<1x128x128xf32, #tpu.memory_space<vmem>>, vector<1x128x128xf32>
    %75 = vector.shape_cast %74 : vector<1x128x128xf32> to vector<128x128xf32>
    %76 = vector.shape_cast %73 : vector<128x128xf32> to vector<1x128x128xf32>
    tpu.vector_store %arg13[%c0_44, %c0_45, %c0_46], %76 {strides = array<i32>} : memref<1x128x128xf32, #tpu.memory_space<vmem>>, vector<1x128x128xf32>,
    return
  }
  func.func @transform_0(%arg0: i32, %arg1: i32) -> (i32, i32, i32) {
    %c0_i32 = arith.constant 0 : i32
    %c0_i32_0 = arith.constant 0 : i32
    return %arg0, %arg1, %c0_i32 : i32, i32, i32
  }
  func.func @transform_1(%arg0: i32, %arg1: i32) -> (i32, i32, i32) {
    %c0_i32 = arith.constant 0 : i32
    %c0_i32_0 = arith.constant 0 : i32
    %c0_i32_1 = arith.constant 0 : i32
    return %arg0, %c0_i32, %c0_i32_0 : i32, i32, i32
  }
  func.func @transform_2(%arg0: i32, %arg1: i32) -> (i32, i32) {
    %c0_i32 = arith.constant 0 : i32
    %c0_i32_0 = arith.constant 0 : i32
    %c0_i32_1 = arith.constant 0 : i32
    return %c0_i32, %c0_i32_0 : i32, i32
  }
  func.func @transform_3(%arg0: i32, %arg1: i32) -> (i32, i32) {
    %c0_i32 = arith.constant 0 : i32
    %c0_i32_0 = arith.constant 0 : i32
    %c0_i32_1 = arith.constant 0 : i32
    return %c0_i32, %c0_i32_0 : i32, i32
  }
  func.func @transform_4(%arg0: i32, %arg1: i32) -> (i32, i32) {
    %c0_i32 = arith.constant 0 : i32
    %c0_i32_0 = arith.constant 0 : i32
    %c0_i32_1 = arith.constant 0 : i32
    return %c0_i32, %c0_i32_0 : i32, i32
  }
  func.func @transform_5(%arg0: i32, %arg1: i32) -> (i32, i32) {
    %c0_i32 = arith.constant 0 : i32
    %c0_i32_0 = arith.constant 0 : i32
    %c0_i32_1 = arith.constant 0 : i32
    return %c0_i32, %c0_i32_0 : i32, i32
  }
  func.func @transform_6(%arg0: i32, %arg1: i32) -> (i32, i32) {
    %c0_i32 = arith.constant 0 : i32
    %c0_i32_0 = arith.constant 0 : i32
    %c0_i32_1 = arith.constant 0 : i32
    return %c0_i32, %c0_i32_0 : i32, i32
  }
  func.func @transform_7(%arg0: i32, %arg1: i32) -> (i32, i32) {
    %c0_i32 = arith.constant 0 : i32
    %c0_i32_0 = arith.constant 0 : i32
    %c0_i32_1 = arith.constant 0 : i32
    return %c0_i32, %c0_i32_0 : i32, i32
  }
  func.func @transform_8(%arg0: i32, %arg1: i32) -> (i32, i32, i32) {
    %c0_i32 = arith.constant 0 : i32
    %c0_i32_0 = arith.constant 0 : i32
    %c0_i32_1 = arith.constant 0 : i32
    %c0_i32_2 = arith.constant 0 : i32
    return %c0_i32, %c0_i32_0, %c0_i32_1 : i32, i32, i32
  }
  func.func @transform_9(%arg0: i32, %arg1: i32) -> (i32, i32) {
    %c0_i32 = arith.constant 0 : i32
    %c0_i32_0 = arith.constant 0 : i32
    %c0_i32_1 = arith.constant 0 : i32
    return %c0_i32, %c0_i32_0 : i32, i32
  }
  func.func @transform_10(%arg0: i32, %arg1: i32) -> (i32, i32) {
    %c0_i32 = arith.constant 0 : i32
    %c0_i32_0 = arith.constant 0 : i32
    %c0_i32_1 = arith.constant 0 : i32
    return %c0_i32, %c0_i32_0 : i32, i32
  }
  func.func @transform_11(%arg0: i32, %arg1: i32) -> (i32, i32, i32) {
    %c0_i32 = arith.constant 0 : i32
    %c0_i32_0 = arith.constant 0 : i32
    return %arg0, %arg1, %c0_i32 : i32, i32, i32
  }
}

</mosaic_0001>

<llo_original>
// kernel: tpu_custom_call.1
$region0: #{tpu_custom_call.1}
  #allocation0 [shape = 'u32[]', space=smem, size = 0x4, offset = 0x4, fixed_abs, tag = 'smem constant byte address 0x4 - core index']
  #allocation1 [shape = 'u32[72,128]{1,0:T(1,128)}', space=vmem, size = 0x9000, scoped, tag = 'internal scratch']
  #allocation2 [shape = 'bf16[2,256,64]{2,1,0:T(8,128)(2,1)}', space=vmem, size = 0x20000, scoped, tag = 'scratch operand']
  #allocation3 [shape = 'bf16[2,256,64]{2,1,0:T(8,128)(2,1)}', space=vmem, size = 0x20000, scoped, tag = 'scratch operand']
  #allocation4 [shape = 'bf16[2,128,64]{2,1,0:T(8,128)(2,1)}', space=vmem, size = 0x10000, scoped, tag = 'scratch operand']
  %s0 = inlined_call_operand.hbm [shape: f32[2,256,128], index: 0, kind: input, shape index: {}]
  %s1 = inlined_call_operand.hbm [shape: f32[2,256,128], index: 1, kind: input, shape index: {}]
  %s2 = inlined_call_operand.vmem [shape: f32[1,128], index: 2, kind: input, shape index: {}]
  %s3 = inlined_call_operand.hbm [shape: f32[1,128], index: 3, kind: input, shape index: {}]
  %s4 = inlined_call_operand.hbm [shape: bf16[128,128], index: 4, kind: input, shape index: {}]
  %s5 = inlined_call_operand.vmem [shape: f32[1,128], index: 5, kind: input, shape index: {}]
  %s6 = inlined_call_operand.hbm [shape: bf16[128,256], index: 6, kind: input, shape index: {}]
  %s7 = inlined_call_operand.vmem [shape: f32[1,256], index: 7, kind: input, shape index: {}]
  %s8 = inlined_call_operand.hbm [shape: bf16[2,64,128], index: 8, kind: input, shape index: {}]
  %s9 = inlined_call_operand.vmem [shape: f32[1,128], index: 9, kind: input, shape index: {}]
  %s10 = inlined_call_operand.vmem [shape: f32[1,128], index: 10, kind: input, shape index: {}]
  %s11 = inlined_call_operand.hbm [shape: f32[2,256,128], index: 11, kind: output, shape index: {}]
  %s12 = sld [smem:[#allocation0]]
  $region105: #{tpu_custom_call.1} parent=0
    _
  %s14 = ssub.s32 1, %s12
  %s15 = scalar_select 0, %s14, %s12
  $region1: #{tpu_custom_call.1} parent=0
    #allocation5 [shape = 'u8[131072]{0}', space=vmem, size = 0x20000, scoped, tag = 'input window, operand 0']
    #allocation6 [shape = 's32[2]{0}', space=sflag, size = 0x8, scoped, tag = 'scoped memory for tpu_custom_call.1']
    #allocation7 [shape = 's32[2]{0}', space=sflag, size = 0x8, scoped, tag = 'scoped memory for tpu_custom_call.1']
    #allocation8 [shape = 'u8[262144]{0}', space=vmem, size = 0x40000, scoped, tag = 'input window, operand 1']
    #allocation9 [shape = 's32[2]{0}', space=sflag, size = 0x8, scoped, tag = 'scoped memory for tpu_custom_call.1']
    #allocation10 [shape = 'u8[512]{0}', space=vmem, size = 0x400, scoped, tag = 'input window, operand 3, single buffered']
    #allocation11 [shape = 'u8[32768]{0}', space=vmem, size = 0x8000, scoped, tag = 'input window, operand 4, single buffered']
    #allocation12 [shape = 's32[1]{0}', space=sflag, size = 0x4, scoped, tag = 'scoped memory for tpu_custom_call.1']
    #allocation13 [shape = 'u8[65536]{0}', space=vmem, size = 0x10000, scoped, tag = 'input window, operand 6, single buffered']
    #allocation14 [shape = 'u8[32768]{0}', space=vmem, size = 0x8000, scoped, tag = 'input window, operand 8, single buffered']
    #allocation15 [shape = 's32[1]{0}', space=sflag, size = 0x4, scoped, tag = 'scoped memory for tpu_custom_call.1']
    #allocation16 [shape = 'u8[131072]{0}', space=vmem, size = 0x20000, scoped, tag = 'output window, operand 0']
    %16 = vsyncpa [#allocation6], 0
    %s17 = scalar_lea.sflag [#allocation6], 1
    %18 = vsyncpa %s17, 0
    %19 = vsyncpa [#allocation9], 0
    %s20 = scalar_lea.sflag [#allocation9], 1
    %21 = vsyncpa %s20, 0
    %22 = vsyncpa [#allocation12], 0
    %23 = vsyncpa [#allocation15], 0
    %24 = vsyncpa [#allocation7], 0
    %s25 = scalar_lea.sflag [#allocation7], 1
    %26 = vsyncpa %s25, 0
    loop: start=0, step=1, limit=6
    $region2: #{tpu_custom_call.1} parent=1 // loop_pre_header
      _
    $region3: #{tpu_custom_call.1} parent=1 // loop_header
      %s28 = sphi 0, %s32
      %p29 = scmp.ge.s32.totalorder %s28, 6
      %s35 = sphi 0, %s47
      %s36 = sphi 0, %s43
      %s37 = sphi 0, %s35
      %s38 = sphi 0, %s36
      %s39 = sphi 0, %s37
      %s40 = sphi 0, %s38
      %s52 = sphi 0, %s54
      %s55 = sphi 0, %s52
      %s56 = sphi 0, %s55
      %s72 = sphi 0, %s56
      %s78 = sphi 0, %s80
      %s81 = sphi 0, %s78
      %s82 = sphi 0, %s81
      %s98 = sphi 0, %s82
      %s102 = sphi 0, %s102
      %s104 = sphi 0, %s102
      %s105 = sphi 0, %s104
      %s119 = sphi 0, %s105
      %s123 = sphi 0, %s123
      %s125 = sphi 0, %s123
      %s126 = sphi 0, %s125
      %s140 = sphi 0, %s126
      %s144 = sphi 0, %s144
      %s146 = sphi 0, %s144
      %s147 = sphi 0, %s146
      %s161 = sphi 0, %s147
      %s165 = sphi 0, %s165
      %s167 = sphi 0, %s165
      %s168 = sphi 0, %s167
      %s182 = sphi 0, %s168
      %s186 = sphi 0, %s186
      %s188 = sphi 0, %s186
      %s189 = sphi 0, %s188
      %s203 = sphi 0, %s189
      %s207 = sphi 0, %s207
      %s209 = sphi 0, %s207
      %s210 = sphi 0, %s209
      %s224 = sphi 0, %s210
      %s228 = sphi 0, %s228
      %s230 = sphi 0, %s228
      %s231 = sphi 0, %s230
      %s245 = sphi 0, %s231
      %s249 = sphi 0, %s249
      %s251 = sphi 0, %s249
      %s252 = sphi 0, %s251
      %s266 = sphi 0, %s252
      %s270 = sphi 0, %s270
      %s272 = sphi 0, %s270
      %s273 = sphi 0, %s272
      %s287 = sphi 0, %s273
      %s295 = sphi 0, %s297
      %s298 = sphi 0, %s295
      %s299 = sphi 0, %s298
      %s315 = sphi 0, %s299
    $region4: #{tpu_custom_call.1} parent=1 // loop_header_branch
      %31 = sbr.rel (%p29) target = $region8
    $region5: #{tpu_custom_call.1} parent=1 // loop_body
      %s33 = ssub.s32 %s28, 1
      %s34 = ssub.s32 %s28, 2
      %s41 = sadd.s32 1, %s36
      %p42 = scmp.ge.s32.totalorder %s41, 2
      %s43 = scalar_select %p42, 0, %s41
      %s44 = sadd.s32 1, %s35
      %s45 = scalar_select %p42, %s44, %s35
      %p46 = scmp.ge.s32.totalorder %s45, 2
      %s47 = scalar_select %p46, 0, %s45
      %s48 = ssub.s32 %s35, %s47
      %s49 = ssub.s32 %s36, %s43
      %s50 = sor.u32 %s48, %s49
      %p51 = scmp.eq.s32.totalorder %s50, 0
      %s53 = sadd.s32 %s52, 1
      %s54 = scalar_select %p51, %s52, %s53
      %p57 = pneg %p51
      %p58 = scmp.eq.s32.totalorder %s28, 3
      %p59 = por %p57, %p58
      %p60 = scmp.ne.s32.totalorder %s52, %s55
      %p61 = scmp.eq.s32.totalorder %s28, 0
      %p62 = por %p60, %p61
      %p63 = scmp.ne.s32.totalorder %s52, %s55
      %p64 = scmp.eq.s32.totalorder %s33, 3
      %p65 = por %p63, %p64
      %p66 = scmp.ne.s32.totalorder %s55, %s56
      %p67 = scmp.eq.s32.totalorder %s33, 0
      %p68 = por %p66, %p67
      %p69 = scmp.ne.s32.totalorder %s55, %s56
      %p70 = scmp.eq.s32.totalorder %s34, 3
      %p71 = por %p69, %p70
      %p73 = scmp.ne.s32.totalorder %s56, %s72
      %p74 = scmp.eq.s32.totalorder %s34, 0
      %p75 = por %p73, %p74
      %s76 = ssub.s32 %s35, %s47
      %p77 = scmp.eq.s32.totalorder %s76, 0
      %s79 = sadd.s32 %s78, 1
      %s80 = scalar_select %p77, %s78, %s79
      %p83 = pneg %p77
      %p84 = scmp.eq.s32.totalorder %s28, 3
      %p85 = por %p83, %p84
      %p86 = scmp.ne.s32.totalorder %s78, %s81
      %p87 = scmp.eq.s32.totalorder %s28, 0
      %p88 = por %p86, %p87
      %p89 = scmp.ne.s32.totalorder %s78, %s81
      %p90 = scmp.eq.s32.totalorder %s33, 3
      %p91 = por %p89, %p90
      %p92 = scmp.ne.s32.totalorder %s81, %s82
      %p93 = scmp.eq.s32.totalorder %s33, 0
      %p94 = por %p92, %p93
      %p95 = scmp.ne.s32.totalorder %s81, %s82
      %p96 = scmp.eq.s32.totalorder %s34, 3
      %p97 = por %p95, %p96
      %p99 = scmp.ne.s32.totalorder %s82, %s98
      %p100 = scmp.eq.s32.totalorder %s34, 0
      %p101 = por %p99, %p100
      %s103 = sadd.s32 %s102, 1
      %p106 = scmp.eq.s32.totalorder %s28, 3
      %p107 = scmp.ne.s32.totalorder %s102, %s104
      %p108 = scmp.eq.s32.totalorder %s28, 0
      %p109 = por %p107, %p108
      %p110 = scmp.ne.s32.totalorder %s102, %s104
      %p111 = scmp.eq.s32.totalorder %s33, 3
      %p112 = por %p110, %p111
      %p113 = scmp.ne.s32.totalorder %s104, %s105
      %p114 = scmp.eq.s32.totalorder %s33, 0
      %p115 = por %p113, %p114
      %p116 = scmp.ne.s32.totalorder %s104, %s105
      %p117 = scmp.eq.s32.totalorder %s34, 3
      %p118 = por %p116, %p117
      %p120 = scmp.ne.s32.totalorder %s105, %s119
      %p121 = scmp.eq.s32.totalorder %s34, 0
      %p122 = por %p120, %p121
      %s124 = sadd.s32 %s123, 1
      %p127 = scmp.eq.s32.totalorder %s28, 3
      %p128 = scmp.ne.s32.totalorder %s123, %s125
      %p129 = scmp.eq.s32.totalorder %s28, 0
      %p130 = por %p128, %p129
      %p131 = scmp.ne.s32.totalorder %s123, %s125
      %p132 = scmp.eq.s32.totalorder %s33, 3
      %p133 = por %p131, %p132
      %p134 = scmp.ne.s32.totalorder %s125, %s126
      %p135 = scmp.eq.s32.totalorder %s33, 0
      %p136 = por %p134, %p135
      %p137 = scmp.ne.s32.totalorder %s125, %s126
      %p138 = scmp.eq.s32.totalorder %s34, 3
      %p139 = por %p137, %p138
      %p141 = scmp.ne.s32.totalorder %s126, %s140
      %p142 = scmp.eq.s32.totalorder %s34, 0
      %p143 = por %p141, %p142
      %s145 = sadd.s32 %s144, 1
      %p148 = scmp.eq.s32.totalorder %s28, 3
      %p149 = scmp.ne.s32.totalorder %s144, %s146
      %p150 = scmp.eq.s32.totalorder %s28, 0
      %p151 = por %p149, %p150
      %p152 = scmp.ne.s32.totalorder %s144, %s146
      %p153 = scmp.eq.s32.totalorder %s33, 3
      %p154 = por %p152, %p153
      %p155 = scmp.ne.s32.totalorder %s146, %s147
      %p156 = scmp.eq.s32.totalorder %s33, 0
      %p157 = por %p155, %p156
      %p158 = scmp.ne.s32.totalorder %s146, %s147
      %p159 = scmp.eq.s32.totalorder %s34, 3
      %p160 = por %p158, %p159
      %p162 = scmp.ne.s32.totalorder %s147, %s161
      %p163 = scmp.eq.s32.totalorder %s34, 0
      %p164 = por %p162, %p163
      %s166 = sadd.s32 %s165, 1
      %p169 = scmp.eq.s32.totalorder %s28, 3
      %p170 = scmp.ne.s32.totalorder %s165, %s167
      %p171 = scmp.eq.s32.totalorder %s28, 0
      %p172 = por %p170, %p171
      %p173 = scmp.ne.s32.totalorder %s165, %s167
      %p174 = scmp.eq.s32.totalorder %s33, 3
      %p175 = por %p173, %p174
      %p176 = scmp.ne.s32.totalorder %s167, %s168
      %p177 = scmp.eq.s32.totalorder %s33, 0
      %p178 = por %p176, %p177
      %p179 = scmp.ne.s32.totalorder %s167, %s168
      %p180 = scmp.eq.s32.totalorder %s34, 3
      %p181 = por %p179, %p180
      %p183 = scmp.ne.s32.totalorder %s168, %s182
      %p184 = scmp.eq.s32.totalorder %s34, 0
      %p185 = por %p183, %p184
      %s187 = sadd.s32 %s186, 1
      %p190 = scmp.eq.s32.totalorder %s28, 3
      %p191 = scmp.ne.s32.totalorder %s186, %s188
      %p192 = scmp.eq.s32.totalorder %s28, 0
      %p193 = por %p191, %p192
      %p194 = scmp.ne.s32.totalorder %s186, %s188
      %p195 = scmp.eq.s32.totalorder %s33, 3
      %p196 = por %p194, %p195
      %p197 = scmp.ne.s32.totalorder %s188, %s189
      %p198 = scmp.eq.s32.totalorder %s33, 0
      %p199 = por %p197, %p198
      %p200 = scmp.ne.s32.totalorder %s188, %s189
      %p201 = scmp.eq.s32.totalorder %s34, 3
      %p202 = por %p200, %p201
      %p204 = scmp.ne.s32.totalorder %s189, %s203
      %p205 = scmp.eq.s32.totalorder %s34, 0
      %p206 = por %p204, %p205
      %s208 = sadd.s32 %s207, 1
      %p211 = scmp.eq.s32.totalorder %s28, 3
      %p212 = scmp.ne.s32.totalorder %s207, %s209
      %p213 = scmp.eq.s32.totalorder %s28, 0
      %p214 = por %p212, %p213
      %p215 = scmp.ne.s32.totalorder %s207, %s209
      %p216 = scmp.eq.s32.totalorder %s33, 3
      %p217 = por %p215, %p216
      %p218 = scmp.ne.s32.totalorder %s209, %s210
      %p219 = scmp.eq.s32.totalorder %s33, 0
      %p220 = por %p218, %p219
      %p221 = scmp.ne.s32.totalorder %s209, %s210
      %p222 = scmp.eq.s32.totalorder %s34, 3
      %p223 = por %p221, %p222
      %p225 = scmp.ne.s32.totalorder %s210, %s224
      %p226 = scmp.eq.s32.totalorder %s34, 0
      %p227 = por %p225, %p226
      %s229 = sadd.s32 %s228, 1
      %p232 = scmp.eq.s32.totalorder %s28, 3
      %p233 = scmp.ne.s32.totalorder %s228, %s230
      %p234 = scmp.eq.s32.totalorder %s28, 0
      %p235 = por %p233, %p234
      %p236 = scmp.ne.s32.totalorder %s228, %s230
      %p237 = scmp.eq.s32.totalorder %s33, 3
      %p238 = por %p236, %p237
      %p239 = scmp.ne.s32.totalorder %s230, %s231
      %p240 = scmp.eq.s32.totalorder %s33, 0
      %p241 = por %p239, %p240
      %p242 = scmp.ne.s32.totalorder %s230, %s231
      %p243 = scmp.eq.s32.totalorder %s34, 3
      %p244 = por %p242, %p243
      %p246 = scmp.ne.s32.totalorder %s231, %s245
      %p247 = scmp.eq.s32.totalorder %s34, 0
      %p248 = por %p246, %p247
      %s250 = sadd.s32 %s249, 1
      %p253 = scmp.eq.s32.totalorder %s28, 3
      %p254 = scmp.ne.s32.totalorder %s249, %s251
      %p255 = scmp.eq.s32.totalorder %s28, 0
      %p256 = por %p254, %p255
      %p257 = scmp.ne.s32.totalorder %s249, %s251
      %p258 = scmp.eq.s32.totalorder %s33, 3
      %p259 = por %p257, %p258
      %p260 = scmp.ne.s32.totalorder %s251, %s252
      %p261 = scmp.eq.s32.totalorder %s33, 0
      %p262 = por %p260, %p261
      %p263 = scmp.ne.s32.totalorder %s251, %s252
      %p264 = scmp.eq.s32.totalorder %s34, 3
      %p265 = por %p263, %p264
      %p267 = scmp.ne.s32.totalorder %s252, %s266
      %p268 = scmp.eq.s32.totalorder %s34, 0
      %p269 = por %p267, %p268
      %s271 = sadd.s32 %s270, 1
      %p274 = scmp.eq.s32.totalorder %s28, 3
      %p275 = scmp.ne.s32.totalorder %s270, %s272
      %p276 = scmp.eq.s32.totalorder %s28, 0
      %p277 = por %p275, %p276
      %p278 = scmp.ne.s32.totalorder %s270, %s272
      %p279 = scmp.eq.s32.totalorder %s33, 3
      %p280 = por %p278, %p279
      %p281 = scmp.ne.s32.totalorder %s272, %s273
      %p282 = scmp.eq.s32.totalorder %s33, 0
      %p283 = por %p281, %p282
      %p284 = scmp.ne.s32.totalorder %s272, %s273
      %p285 = scmp.eq.s32.totalorder %s34, 3
      %p286 = por %p284, %p285
      %p288 = scmp.ne.s32.totalorder %s273, %s287
      %p289 = scmp.eq.s32.totalorder %s34, 0
      %p290 = por %p288, %p289
      %s291 = ssub.s32 %s35, %s47
      %s292 = ssub.s32 %s36, %s43
      %s293 = sor.u32 %s291, %s292
      %p294 = scmp.eq.s32.totalorder %s293, 0
      %s296 = sadd.s32 %s295, 1
      %s297 = scalar_select %p294, %s295, %s296
      %p300 = pneg %p294
      %p301 = scmp.eq.s32.totalorder %s28, 3
      %p302 = por %p300, %p301
      %p303 = scmp.ne.s32.totalorder %s295, %s298
      %p304 = scmp.eq.s32.totalorder %s28, 0
      %p305 = por %p303, %p304
      %p306 = scmp.ne.s32.totalorder %s295, %s298
      %p307 = scmp.eq.s32.totalorder %s33, 3
      %p308 = por %p306, %p307
      %p309 = scmp.ne.s32.totalorder %s298, %s299
      %p310 = scmp.eq.s32.totalorder %s33, 0
      %p311 = por %p309, %p310
      %p312 = scmp.ne.s32.totalorder %s298, %s299
      %p313 = scmp.eq.s32.totalorder %s34, 3
      %p314 = por %p312, %p313
      %p316 = scmp.ne.s32.totalorder %s299, %s315
      %p317 = scmp.eq.s32.totalorder %s34, 0
      %p318 = por %p316, %p317
      %p319 = scmp.le.s32.totalorder 1, %s28
      %p320 = scmp.lt.s32.totalorder %s28, 5
      %p321 = pnand %p319, %p320
      %p322 = pneg %p321
      // Predicated region
      $region9: #{tpu_custom_call.1} parent=5 // pred_check
        _
      $region10: #{tpu_custom_call.1} parent=5 // pred_check_branch
        %324 = sbr.rel (%p321) target = $region12
      $region11: #{tpu_custom_call.1} parent=5 // pred_region
        %s325 = ssub.s32 %s28, 1
        // Predicated region
        $region13: #{tpu_custom_call.1} parent=11 // pred_check
          %p326 = pneg %p115
        $region14: #{tpu_custom_call.1} parent=11 // pred_check_branch
          %328 = sbr.rel (%p326) target = $region16
        $region15: #{tpu_custom_call.1} parent=11 // pred_region
          _
        $region16: #{tpu_custom_call.1} parent=11 // pred_fallthru
          _
        // Predicated region
        $region17: #{tpu_custom_call.1} parent=11 // pred_check
          %p329 = pneg %p136
        $region18: #{tpu_custom_call.1} parent=11 // pred_check_branch
          %331 = sbr.rel (%p329) target = $region20
        $region19: #{tpu_custom_call.1} parent=11 // pred_region
          %333 = vsyncadd [#allocation9], 0
          %s335 = sshll.u32 %s3, 4
          %s336 = int_to_ptr.hbm [resolvable:$true] %s335
          %s337 = sshll.u32 [#allocation10], 4
          %s338 = int_to_ptr.vmem [resolvable:$true] %s337
          %340 = dma.hbm_to_vmem [thread:$0]  %s336, 16, %s338, [#allocation9]
        $region20: #{tpu_custom_call.1} parent=11 // pred_fallthru
          _
        // Predicated region
        $region21: #{tpu_custom_call.1} parent=11 // pred_check
          %p341 = pneg %p157
        $region22: #{tpu_custom_call.1} parent=11 // pred_check_branch
          %343 = sbr.rel (%p341) target = $region24
        $region23: #{tpu_custom_call.1} parent=11 // pred_region
          %345 = vsyncadd [#allocation12], 0
          %s346 = sshll.u32 %s4, 4
          %s347 = int_to_ptr.hbm [resolvable:$true] %s346
          %s348 = sshll.u32 [#allocation11], 4
          %s349 = int_to_ptr.vmem [resolvable:$true] %s348
          %354 = dma.hbm_to_vmem [thread:$0]  %s347, 1024, %s349, [#allocation12], 64, 64, 4
        $region24: #{tpu_custom_call.1} parent=11 // pred_fallthru
          _
        // Predicated region
        $region25: #{tpu_custom_call.1} parent=11 // pred_check
          %p355 = pneg %p178
        $region26: #{tpu_custom_call.1} parent=11 // pred_check_branch
          %357 = sbr.rel (%p355) target = $region28
        $region27: #{tpu_custom_call.1} parent=11 // pred_region
          _
        $region28: #{tpu_custom_call.1} parent=11 // pred_fallthru
          _
        // Predicated region
        $region29: #{tpu_custom_call.1} parent=11 // pred_check
          %p358 = pneg %p199
        $region30: #{tpu_custom_call.1} parent=11 // pred_check_branch
          %360 = sbr.rel (%p358) target = $region32
        $region31: #{tpu_custom_call.1} parent=11 // pred_region
          %362 = vsyncadd [#allocation12], 0
          %s363 = sshll.u32 %s6, 4
          %s364 = int_to_ptr.hbm [resolvable:$true] %s363
          %s365 = sshll.u32 [#allocation13], 4
          %s366 = int_to_ptr.vmem [resolvable:$true] %s365
          %371 = dma.hbm_to_vmem [thread:$0]  %s364, 2048, %s366, [#allocation12], 128, 128, 8
        $region32: #{tpu_custom_call.1} parent=11 // pred_fallthru
          _
        // Predicated region
        $region33: #{tpu_custom_call.1} parent=11 // pred_check
          %p372 = pneg %p220
        $region34: #{tpu_custom_call.1} parent=11 // pred_check_branch
          %374 = sbr.rel (%p372) target = $region36
        $region35: #{tpu_custom_call.1} parent=11 // pred_region
          _
        $region36: #{tpu_custom_call.1} parent=11 // pred_fallthru
          _
        // Predicated region
        $region37: #{tpu_custom_call.1} parent=11 // pred_check
          %p375 = pneg %p241
        $region38: #{tpu_custom_call.1} parent=11 // pred_check_branch
          %377 = sbr.rel (%p375) target = $region40
        $region39: #{tpu_custom_call.1} parent=11 // pred_region
          %379 = vsyncadd [#allocation15], 0
          %s380 = sshll.u32 %s8, 4
          %s381 = int_to_ptr.hbm [resolvable:$true] %s380
          %s382 = sshll.u32 [#allocation14], 4
          %s383 = int_to_ptr.vmem [resolvable:$true] %s382
          %388 = dma.hbm_to_vmem [thread:$0]  %s381, 1024, %s383, [#allocation15], 64, 64, 4
        $region40: #{tpu_custom_call.1} parent=11 // pred_fallthru
          _
        // Predicated region
        $region41: #{tpu_custom_call.1} parent=11 // pred_check
          %p389 = pneg %p262
        $region42: #{tpu_custom_call.1} parent=11 // pred_check_branch
          %391 = sbr.rel (%p389) target = $region44
        $region43: #{tpu_custom_call.1} parent=11 // pred_region
          _
        $region44: #{tpu_custom_call.1} parent=11 // pred_fallthru
          _
        // Predicated region
        $region45: #{tpu_custom_call.1} parent=11 // pred_check
          %p392 = pneg %p283
        $region46: #{tpu_custom_call.1} parent=11 // pred_check_branch
          %394 = sbr.rel (%p392) target = $region48
        $region47: #{tpu_custom_call.1} parent=11 // pred_region
          _
        $region48: #{tpu_custom_call.1} parent=11 // pred_fallthru
          _
      $region12: #{tpu_custom_call.1} parent=5 // pred_fallthru
        _
      %p395 = scmp.lt.s32.totalorder %s28, 4
      // Predicated region
      $region49: #{tpu_custom_call.1} parent=5 // pred_check
        %p396 = pneg %p395
      $region50: #{tpu_custom_call.1} parent=5 // pred_check_branch
        %398 = sbr.rel (%p396) target = $region52
      $region51: #{tpu_custom_call.1} parent=5 // pred_region
        // Predicated region
        $region53: #{tpu_custom_call.1} parent=51 // pred_check
          %p399 = pneg %p62
        $region54: #{tpu_custom_call.1} parent=51 // pred_check_branch
          %401 = sbr.rel (%p399) target = $region56
        $region55: #{tpu_custom_call.1} parent=51 // pred_region
          %s402 = sand.u32 %s52, 1
          %s403 = scalar_lea.sflag [#allocation6], %s402
          %s404 = sand.u32 %s52, 1
          %s405 = smul.addr %s404, 128
          %s406 = scalar_lea.vmem [#allocation5], %s405
          %s407 = smul.u32 16, %s36
          %409 = vsyncadd %s403, 0
          %s410 = smul.addr %s35, 32
          %s411 = sadd.s32 %s407, %s410
          %s412 = smul.addr %s411, 8
          %s413 = scalar_lea.hbm %s0, %s412
          %s414 = sshll.u32 %s413, 4
          %s415 = int_to_ptr.hbm [resolvable:$true] %s414
          %s416 = sshll.u32 %s406, 4
          %s417 = int_to_ptr.vmem [resolvable:$true] %s416
          %422 = dma.hbm_to_vmem [thread:$0]  %s415, 2048, %s417, %s403, 128, 128, 8
        $region56: #{tpu_custom_call.1} parent=51 // pred_fallthru
          _
        // Predicated region
        $region57: #{tpu_custom_call.1} parent=51 // pred_check
          %p423 = pneg %p88
        $region58: #{tpu_custom_call.1} parent=51 // pred_check_branch
          %425 = sbr.rel (%p423) target = $region60
        $region59: #{tpu_custom_call.1} parent=51 // pred_region
          %s426 = sand.u32 %s28, 1
          %s427 = scalar_lea.sflag [#allocation9], %s426
          %s428 = sand.u32 %s78, 1
          %s429 = smul.addr %s428, 256
          %s430 = scalar_lea.vmem [#allocation8], %s429
          %432 = vsyncadd %s427, 0
          %s433 = smul.addr %s35, 32
          %s434 = smul.addr %s433, 8
          %s435 = scalar_lea.hbm %s1, %s434
          %s436 = sshll.u32 %s435, 4
          %s437 = int_to_ptr.hbm [resolvable:$true] %s436
          %s438 = sshll.u32 %s430, 4
          %s439 = int_to_ptr.vmem [resolvable:$true] %s438
          %444 = dma.hbm_to_vmem [thread:$0]  %s437, 4096, %s439, %s427, 128, 128, 8
        $region60: #{tpu_custom_call.1} parent=51 // pred_fallthru
          _
      $region52: #{tpu_custom_call.1} parent=5 // pred_fallthru
        _
      %p445 = scmp.le.s32.totalorder 1, %s28
      %p446 = scmp.lt.s32.totalorder %s28, 5
      %p447 = pnand %p445, %p446
      %p448 = pneg %p447
      // Predicated region
      $region61: #{tpu_custom_call.1} parent=5 // pred_check
        _
      $region62: #{tpu_custom_call.1} parent=5 // pred_check_branch
        %450 = sbr.rel (%p447) target = $region64
      $region63: #{tpu_custom_call.1} parent=5 // pred_region
        %s451 = ssub.s32 %s28, 1
        %s452 = sand.u32 %s55, 1
        %s453 = scalar_lea.sflag [#allocation6], %s452
        %s454 = sand.u32 %s55, 1
        %s455 = smul.addr %s454, 128
        %s456 = scalar_lea.vmem [#allocation5], %s455
        // Predicated region
        $region65: #{tpu_custom_call.1} parent=63 // pred_check
          %p457 = pneg %p68
        $region66: #{tpu_custom_call.1} parent=63 // pred_check_branch
          %459 = sbr.rel (%p457) target = $region68
        $region67: #{tpu_custom_call.1} parent=63 // pred_region
          %461 = dma.done %s453, 2048
        $region68: #{tpu_custom_call.1} parent=63 // pred_fallthru
          _
        %s462 = sand.u32 %s33, 1
        %s463 = scalar_lea.sflag [#allocation9], %s462
        %s464 = sand.u32 %s81, 1
        %s465 = smul.addr %s464, 256
        %s466 = scalar_lea.vmem [#allocation8], %s465
        // Predicated region
        $region69: #{tpu_custom_call.1} parent=63 // pred_check
          %p467 = pneg %p94
        $region70: #{tpu_custom_call.1} parent=63 // pred_check_branch
          %469 = sbr.rel (%p467) target = $region72
        $region71: #{tpu_custom_call.1} parent=63 // pred_region
          %471 = dma.done %s463, 4096
        $region72: #{tpu_custom_call.1} parent=63 // pred_fallthru
          _
        // Predicated region
        $region73: #{tpu_custom_call.1} parent=63 // pred_check
          %p472 = pneg %p136
        $region74: #{tpu_custom_call.1} parent=63 // pred_check_branch
          %474 = sbr.rel (%p472) target = $region76
        $region75: #{tpu_custom_call.1} parent=63 // pred_region
          %476 = dma.done [#allocation9], 16
        $region76: #{tpu_custom_call.1} parent=63 // pred_fallthru
          _
        // Predicated region
        $region77: #{tpu_custom_call.1} parent=63 // pred_check
          %p477 = pneg %p157
        $region78: #{tpu_custom_call.1} parent=63 // pred_check_branch
          %479 = sbr.rel (%p477) target = $region80
        $region79: #{tpu_custom_call.1} parent=63 // pred_region
          %481 = dma.done [#allocation12], 1024
        $region80: #{tpu_custom_call.1} parent=63 // pred_fallthru
          _
        // Predicated region
        $region81: #{tpu_custom_call.1} parent=63 // pred_check
          %p482 = pneg %p199
        $region82: #{tpu_custom_call.1} parent=63 // pred_check_branch
          %484 = sbr.rel (%p482) target = $region84
        $region83: #{tpu_custom_call.1} parent=63 // pred_region
          %486 = dma.done [#allocation12], 2048
        $region84: #{tpu_custom_call.1} parent=63 // pred_fallthru
          _
        // Predicated region
        $region85: #{tpu_custom_call.1} parent=63 // pred_check
          %p487 = pneg %p241
        $region86: #{tpu_custom_call.1} parent=63 // pred_check_branch
          %489 = sbr.rel (%p487) target = $region88
        $region87: #{tpu_custom_call.1} parent=63 // pred_region
          %491 = dma.done [#allocation15], 1024
        $region88: #{tpu_custom_call.1} parent=63 // pred_fallthru
          _
        %s492 = sand.u32 %s55, 1
        %s493 = scalar_lea.sflag [#allocation6], %s492
        %s494 = sand.u32 %s55, 1
        %s495 = smul.addr %s494, 128
        %s496 = scalar_lea.vmem [#allocation5], %s495
        %p497 = pneg %p68
        %p498 = pneg %p65
        %s499 = sand.u32 %s33, 1
        %s500 = scalar_lea.sflag [#allocation9], %s499
        %s501 = sand.u32 %s81, 1
        %s502 = smul.addr %s501, 256
        %s503 = scalar_lea.vmem [#allocation8], %s502
        %p504 = pneg %p94
        %p505 = pneg %p91
        %p506 = pneg %p115
        %p507 = pneg %p112
        %p508 = pneg %p136
        %p509 = pneg %p133
        %p510 = pneg %p157
        %p511 = pneg %p154
        %p512 = pneg %p178
        %p513 = pneg %p175
        %p514 = pneg %p199
        %p515 = pneg %p196
        %p516 = pneg %p220
        %p517 = pneg %p217
        %p518 = pneg %p241
        %p519 = pneg %p238
        %p520 = pneg %p262
        %p521 = pneg %p259
        %p522 = pneg %p283
        %p523 = pneg %p280
        %p524 = pneg %p311
        %p525 = pneg %p308
        %s526 = sand.u32 %s298, 1
        %s527 = scalar_lea.sflag [#allocation7], %s526
        %s528 = sand.u32 %s298, 1
        %s529 = smul.addr %s528, 128
        %s530 = scalar_lea.vmem [#allocation16], %s529
        %s531 = smul.u32 16, %s38
        %s532 = smul.u32 16, %s38
        %p534 = scmp.eq.s32.totalorder %s38, 0
        // Predicated region
        $region89: #{tpu_custom_call.1} parent=63 // pred_check
          %p535 = pneg %p534
        $region90: #{tpu_custom_call.1} parent=63 // pred_check_branch
          %537 = sbr.rel (%p535) target = $region92
        $region91: #{tpu_custom_call.1} parent=63 // pred_region
          %v538 = vld [vmem:[%s466] sm:$0xff]
          %v539 = vld [vmem:[%s466 + $0x8] sm:$0xff]
          %v540 = vld [vmem:[%s466 + $0x10] sm:$0xff]
          %v541 = vld [vmem:[%s466 + $0x18] sm:$0xff]
          %v542 = vld [vmem:[%s466 + $0x20] sm:$0xff]
          %v543 = vld [vmem:[%s466 + $0x28] sm:$0xff]
          %v544 = vld [vmem:[%s466 + $0x30] sm:$0xff]
          %v545 = vld [vmem:[%s466 + $0x38] sm:$0xff]
          %v546 = vld [vmem:[%s466 + $0x40] sm:$0xff]
          %v547 = vld [vmem:[%s466 + $0x48] sm:$0xff]
          %v548 = vld [vmem:[%s466 + $0x50] sm:$0xff]
          %v549 = vld [vmem:[%s466 + $0x58] sm:$0xff]
          %v550 = vld [vmem:[%s466 + $0x60] sm:$0xff]
          %v551 = vld [vmem:[%s466 + $0x68] sm:$0xff]
          %v552 = vld [vmem:[%s466 + $0x70] sm:$0xff]
          %v553 = vld [vmem:[%s466 + $0x78] sm:$0xff]
          %v554 = vld [vmem:[%s466 + $0x80] sm:$0xff]
          %v555 = vld [vmem:[%s466 + $0x88] sm:$0xff]
          %v556 = vld [vmem:[%s466 + $0x90] sm:$0xff]
          %v557 = vld [vmem:[%s466 + $0x98] sm:$0xff]
          %v558 = vld [vmem:[%s466 + $0xa0] sm:$0xff]
          %v559 = vld [vmem:[%s466 + $0xa8] sm:$0xff]
          %v560 = vld [vmem:[%s466 + $0xb0] sm:$0xff]
          %v561 = vld [vmem:[%s466 + $0xb8] sm:$0xff]
          %v562 = vld [vmem:[%s466 + $0xc0] sm:$0xff]
          %v563 = vld [vmem:[%s466 + $0xc8] sm:$0xff]
          %v564 = vld [vmem:[%s466 + $0xd0] sm:$0xff]
          %v565 = vld [vmem:[%s466 + $0xd8] sm:$0xff]
          %v566 = vld [vmem:[%s466 + $0xe0] sm:$0xff]
          %v567 = vld [vmem:[%s466 + $0xe8] sm:$0xff]
          %v568 = vld [vmem:[%s466 + $0xf0] sm:$0xff]
          %v569 = vld [vmem:[%s466 + $0xf8] sm:$0xff]
          %570 = vadd.xlane.f32.xlu0 %v538
          %v571 = vpop.xlane.xlu0 %570
          %572 = vadd.xlane.f32.xlu0 %v539
          %v573 = vpop.xlane.xlu0 %572
          %574 = vadd.xlane.f32.xlu0 %v540
          %v575 = vpop.xlane.xlu0 %574
          %576 = vadd.xlane.f32.xlu0 %v541
          %v577 = vpop.xlane.xlu0 %576
          %578 = vadd.xlane.f32.xlu0 %v542
          %v579 = vpop.xlane.xlu0 %578
          %580 = vadd.xlane.f32.xlu0 %v543
          %v581 = vpop.xlane.xlu0 %580
          %582 = vadd.xlane.f32.xlu0 %v544
          %v583 = vpop.xlane.xlu0 %582
          %584 = vadd.xlane.f32.xlu0 %v545
          %v585 = vpop.xlane.xlu0 %584
          %586 = vadd.xlane.f32.xlu0 %v546
          %v587 = vpop.xlane.xlu0 %586
          %588 = vadd.xlane.f32.xlu0 %v547
          %v589 = vpop.xlane.xlu0 %588
          %590 = vadd.xlane.f32.xlu0 %v548
          %v591 = vpop.xlane.xlu0 %590
          %592 = vadd.xlane.f32.xlu0 %v549
          %v593 = vpop.xlane.xlu0 %592
          %594 = vadd.xlane.f32.xlu0 %v550
          %v595 = vpop.xlane.xlu0 %594
          %596 = vadd.xlane.f32.xlu0 %v551
          %v597 = vpop.xlane.xlu0 %596
          %598 = vadd.xlane.f32.xlu0 %v552
          %v599 = vpop.xlane.xlu0 %598
          %600 = vadd.xlane.f32.xlu0 %v553
          %v601 = vpop.xlane.xlu0 %600
          %602 = vadd.xlane.f32.xlu0 %v554
          %v603 = vpop.xlane.xlu0 %602
          %604 = vadd.xlane.f32.xlu0 %v555
          %v605 = vpop.xlane.xlu0 %604
          %606 = vadd.xlane.f32.xlu0 %v556
          %v607 = vpop.xlane.xlu0 %606
          %608 = vadd.xlane.f32.xlu0 %v557
          %v609 = vpop.xlane.xlu0 %608
          %610 = vadd.xlane.f32.xlu0 %v558
          %v611 = vpop.xlane.xlu0 %610
          %612 = vadd.xlane.f32.xlu0 %v559
          %v613 = vpop.xlane.xlu0 %612
          %614 = vadd.xlane.f32.xlu0 %v560
          %v615 = vpop.xlane.xlu0 %614
          %616 = vadd.xlane.f32.xlu0 %v561
          %v617 = vpop.xlane.xlu0 %616
          %618 = vadd.xlane.f32.xlu0 %v562
          %v619 = vpop.xlane.xlu0 %618
          %620 = vadd.xlane.f32.xlu0 %v563
          %v621 = vpop.xlane.xlu0 %620
          %622 = vadd.xlane.f32.xlu0 %v564
          %v623 = vpop.xlane.xlu0 %622
          %624 = vadd.xlane.f32.xlu0 %v565
          %v625 = vpop.xlane.xlu0 %624
          %626 = vadd.xlane.f32.xlu0 %v566
          %v627 = vpop.xlane.xlu0 %626
          %628 = vadd.xlane.f32.xlu0 %v567
          %v629 = vpop.xlane.xlu0 %628
          %630 = vadd.xlane.f32.xlu0 %v568
          %v631 = vpop.xlane.xlu0 %630
          %632 = vadd.xlane.f32.xlu0 %v569
          %v633 = vpop.xlane.xlu0 %632
          %v634 = vrcp.pop 128.0
          %v635 = vmul.f32 128.0, %v634
          %v636 = vsub.f32 1.0, %v635
          %v637 = vmul.f32 %v634, %v636
          %v638 = vadd.f32 %v634, %v637
          %vm639 = vweird.f32 %v634
          %v640 = vsel %vm639, %v634, %v638
          %v641 = vmul.f32 %v571, %v640
          %v642 = vmul.f32 %v573, %v640
          %v643 = vmul.f32 %v575, %v640
          %v644 = vmul.f32 %v577, %v640
          %v645 = vmul.f32 %v579, %v640
          %v646 = vmul.f32 %v581, %v640
          %v647 = vmul.f32 %v583, %v640
          %v648 = vmul.f32 %v585, %v640
          %v649 = vmul.f32 %v587, %v640
          %v650 = vmul.f32 %v589, %v640
          %v651 = vmul.f32 %v591, %v640
          %v652 = vmul.f32 %v593, %v640
          %v653 = vmul.f32 %v595, %v640
          %v654 = vmul.f32 %v597, %v640
          %v655 = vmul.f32 %v599, %v640
          %v656 = vmul.f32 %v601, %v640
          %v657 = vmul.f32 %v603, %v640
          %v658 = vmul.f32 %v605, %v640
          %v659 = vmul.f32 %v607, %v640
          %v660 = vmul.f32 %v609, %v640
          %v661 = vmul.f32 %v611, %v640
          %v662 = vmul.f32 %v613, %v640
          %v663 = vmul.f32 %v615, %v640
          %v664 = vmul.f32 %v617, %v640
          %v665 = vmul.f32 %v619, %v640
          %v666 = vmul.f32 %v621, %v640
          %v667 = vmul.f32 %v623, %v640
          %v668 = vmul.f32 %v625, %v640
          %v669 = vmul.f32 %v627, %v640
          %v670 = vmul.f32 %v629, %v640
          %v671 = vmul.f32 %v631, %v640
          %v672 = vmul.f32 %v633, %v640
          %v673 = vsub.f32 %v538, %v641
          %v674 = vsub.f32 %v539, %v642
          %v675 = vsub.f32 %v540, %v643
          %v676 = vsub.f32 %v541, %v644
          %v677 = vsub.f32 %v542, %v645
          %v678 = vsub.f32 %v543, %v646
          %v679 = vsub.f32 %v544, %v647
          %v680 = vsub.f32 %v545, %v648
          %v681 = vsub.f32 %v546, %v649
          %v682 = vsub.f32 %v547, %v650
          %v683 = vsub.f32 %v548, %v651
          %v684 = vsub.f32 %v549, %v652
          %v685 = vsub.f32 %v550, %v653
          %v686 = vsub.f32 %v551, %v654
          %v687 = vsub.f32 %v552, %v655
          %v688 = vsub.f32 %v553, %v656
          %v689 = vsub.f32 %v554, %v657
          %v690 = vsub.f32 %v555, %v658
          %v691 = vsub.f32 %v556, %v659
          %v692 = vsub.f32 %v557, %v660
          %v693 = vsub.f32 %v558, %v661
          %v694 = vsub.f32 %v559, %v662
          %v695 = vsub.f32 %v560, %v663
          %v696 = vsub.f32 %v561, %v664
          %v697 = vsub.f32 %v562, %v665
          %v698 = vsub.f32 %v563, %v666
          %v699 = vsub.f32 %v564, %v667
          %v700 = vsub.f32 %v565, %v668
          %v701 = vsub.f32 %v566, %v669
          %v702 = vsub.f32 %v567, %v670
          %v703 = vsub.f32 %v568, %v671
          %v704 = vsub.f32 %v569, %v672
          %v705 = vmul.f32 %v673, %v673
          %v706 = vmul.f32 %v674, %v674
          %v707 = vmul.f32 %v675, %v675
          %v708 = vmul.f32 %v676, %v676
          %v709 = vmul.f32 %v677, %v677
          %v710 = vmul.f32 %v678, %v678
          %v711 = vmul.f32 %v679, %v679
          %v712 = vmul.f32 %v680, %v680
          %v713 = vmul.f32 %v681, %v681
          %v714 = vmul.f32 %v682, %v682
          %v715 = vmul.f32 %v683, %v683
          %v716 = vmul.f32 %v684, %v684
          %v717 = vmul.f32 %v685, %v685
          %v718 = vmul.f32 %v686, %v686
          %v719 = vmul.f32 %v687, %v687
          %v720 = vmul.f32 %v688, %v688
          %v721 = vmul.f32 %v689, %v689
          %v722 = vmul.f32 %v690, %v690
          %v723 = vmul.f32 %v691, %v691
          %v724 = vmul.f32 %v692, %v692
          %v725 = vmul.f32 %v693, %v693
          %v726 = vmul.f32 %v694, %v694
          %v727 = vmul.f32 %v695, %v695
          %v728 = vmul.f32 %v696, %v696
          %v729 = vmul.f32 %v697, %v697
          %v730 = vmul.f32 %v698, %v698
          %v731 = vmul.f32 %v699, %v699
          %v732 = vmul.f32 %v700, %v700
          %v733 = vmul.f32 %v701, %v701
          %v734 = vmul.f32 %v702, %v702
          %v735 = vmul.f32 %v703, %v703
          %v736 = vmul.f32 %v704, %v704
          %737 = vadd.xlane.f32.xlu0 %v705
          %v738 = vpop.xlane.xlu0 %737
          %739 = vadd.xlane.f32.xlu0 %v706
          %v740 = vpop.xlane.xlu0 %739
          %741 = vadd.xlane.f32.xlu0 %v707
          %v742 = vpop.xlane.xlu0 %741
          %743 = vadd.xlane.f32.xlu0 %v708
          %v744 = vpop.xlane.xlu0 %743
          %745 = vadd.xlane.f32.xlu0 %v709
          %v746 = vpop.xlane.xlu0 %745
          %747 = vadd.xlane.f32.xlu0 %v710
          %v748 = vpop.xlane.xlu0 %747
          %749 = vadd.xlane.f32.xlu0 %v711
          %v750 = vpop.xlane.xlu0 %749
          %751 = vadd.xlane.f32.xlu0 %v712
          %v752 = vpop.xlane.xlu0 %751
          %753 = vadd.xlane.f32.xlu0 %v713
          %v754 = vpop.xlane.xlu0 %753
          %755 = vadd.xlane.f32.xlu0 %v714
          %v756 = vpop.xlane.xlu0 %755
          %757 = vadd.xlane.f32.xlu0 %v715
          %v758 = vpop.xlane.xlu0 %757
          %759 = vadd.xlane.f32.xlu0 %v716
          %v760 = vpop.xlane.xlu0 %759
          %761 = vadd.xlane.f32.xlu0 %v717
          %v762 = vpop.xlane.xlu0 %761
          %763 = vadd.xlane.f32.xlu0 %v718
          %v764 = vpop.xlane.xlu0 %763
          %765 = vadd.xlane.f32.xlu0 %v719
          %v766 = vpop.xlane.xlu0 %765
          %767 = vadd.xlane.f32.xlu0 %v720
          %v768 = vpop.xlane.xlu0 %767
          %769 = vadd.xlane.f32.xlu0 %v721
          %v770 = vpop.xlane.xlu0 %769
          %771 = vadd.xlane.f32.xlu0 %v722
          %v772 = vpop.xlane.xlu0 %771
          %773 = vadd.xlane.f32.xlu0 %v723
          %v774 = vpop.xlane.xlu0 %773
          %775 = vadd.xlane.f32.xlu0 %v724
          %v776 = vpop.xlane.xlu0 %775
          %777 = vadd.xlane.f32.xlu0 %v725
          %v778 = vpop.xlane.xlu0 %777
          %779 = vadd.xlane.f32.xlu0 %v726
          %v780 = vpop.xlane.xlu0 %779
          %781 = vadd.xlane.f32.xlu0 %v727
          %v782 = vpop.xlane.xlu0 %781
          %783 = vadd.xlane.f32.xlu0 %v728
          %v784 = vpop.xlane.xlu0 %783
          %785 = vadd.xlane.f32.xlu0 %v729
          %v786 = vpop.xlane.xlu0 %785
          %787 = vadd.xlane.f32.xlu0 %v730
          %v788 = vpop.xlane.xlu0 %787
          %789 = vadd.xlane.f32.xlu0 %v731
          %v790 = vpop.xlane.xlu0 %789
          %791 = vadd.xlane.f32.xlu0 %v732
          %v792 = vpop.xlane.xlu0 %791
          %793 = vadd.xlane.f32.xlu0 %v733
          %v794 = vpop.xlane.xlu0 %793
          %795 = vadd.xlane.f32.xlu0 %v734
          %v796 = vpop.xlane.xlu0 %795
          %797 = vadd.xlane.f32.xlu0 %v735
          %v798 = vpop.xlane.xlu0 %797
          %799 = vadd.xlane.f32.xlu0 %v736
          %v800 = vpop.xlane.xlu0 %799
          %v801 = vmul.f32 %v738, %v640
          %v802 = vmul.f32 %v740, %v640
          %v803 = vmul.f32 %v742, %v640
          %v804 = vmul.f32 %v744, %v640
          %v805 = vmul.f32 %v746, %v640
          %v806 = vmul.f32 %v748, %v640
          %v807 = vmul.f32 %v750, %v640
          %v808 = vmul.f32 %v752, %v640
          %v809 = vmul.f32 %v754, %v640
          %v810 = vmul.f32 %v756, %v640
          %v811 = vmul.f32 %v758, %v640
          %v812 = vmul.f32 %v760, %v640
          %v813 = vmul.f32 %v762, %v640
          %v814 = vmul.f32 %v764, %v640
          %v815 = vmul.f32 %v766, %v640
          %v816 = vmul.f32 %v768, %v640
          %v817 = vmul.f32 %v770, %v640
          %v818 = vmul.f32 %v772, %v640
          %v819 = vmul.f32 %v774, %v640
          %v820 = vmul.f32 %v776, %v640
          %v821 = vmul.f32 %v778, %v640
          %v822 = vmul.f32 %v780, %v640
          %v823 = vmul.f32 %v782, %v640
          %v824 = vmul.f32 %v784, %v640
          %v825 = vmul.f32 %v786, %v640
          %v826 = vmul.f32 %v788, %v640
          %v827 = vmul.f32 %v790, %v640
          %v828 = vmul.f32 %v792, %v640
          %v829 = vmul.f32 %v794, %v640
          %v830 = vmul.f32 %v796, %v640
          %v831 = vmul.f32 %v798, %v640
          %v832 = vmul.f32 %v800, %v640
          %v833 = vadd.f32 %v801, 1e-05
          %v834 = vadd.f32 %v802, 1e-05
          %v835 = vadd.f32 %v803, 1e-05
          %v836 = vadd.f32 %v804, 1e-05
          %v837 = vadd.f32 %v805, 1e-05
          %v838 = vadd.f32 %v806, 1e-05
          %v839 = vadd.f32 %v807, 1e-05
          %v840 = vadd.f32 %v808, 1e-05
          %v841 = vadd.f32 %v809, 1e-05
          %v842 = vadd.f32 %v810, 1e-05
          %v843 = vadd.f32 %v811, 1e-05
          %v844 = vadd.f32 %v812, 1e-05
          %v845 = vadd.f32 %v813, 1e-05
          %v846 = vadd.f32 %v814, 1e-05
          %v847 = vadd.f32 %v815, 1e-05
          %v848 = vadd.f32 %v816, 1e-05
          %v849 = vadd.f32 %v817, 1e-05
          %v850 = vadd.f32 %v818, 1e-05
          %v851 = vadd.f32 %v819, 1e-05
          %v852 = vadd.f32 %v820, 1e-05
          %v853 = vadd.f32 %v821, 1e-05
          %v854 = vadd.f32 %v822, 1e-05
          %v855 = vadd.f32 %v823, 1e-05
          %v856 = vadd.f32 %v824, 1e-05
          %v857 = vadd.f32 %v825, 1e-05
          %v858 = vadd.f32 %v826, 1e-05
          %v859 = vadd.f32 %v827, 1e-05
          %v860 = vadd.f32 %v828, 1e-05
          %v861 = vadd.f32 %v829, 1e-05
          %v862 = vadd.f32 %v830, 1e-05
          %v863 = vadd.f32 %v831, 1e-05
          %v864 = vadd.f32 %v832, 1e-05
          %v865 = vrsqrt.pop %v833
          %v866 = vmul.f32 %v865, %v833
          %v867 = vmul.f32 %v866, %v865
          %v868 = vmul.f32 0.5, %v867
          %v869 = vsub.f32 1.5, %v868
          %v870 = vmul.f32 %v865, %v869
          %vm871 = vweird.f32 %v833
          %vm872 = vweird.f32 %v865
          %vm873 = vmor %vm871, %vm872
          %v874 = vsel %vm873, %v865, %v870
          %v875 = vrsqrt.pop %v834
          %v876 = vmul.f32 %v875, %v834
          %v877 = vmul.f32 %v876, %v875
          %v878 = vmul.f32 0.5, %v877
          %v879 = vsub.f32 1.5, %v878
          %v880 = vmul.f32 %v875, %v879
          %vm881 = vweird.f32 %v834
          %vm882 = vweird.f32 %v875
          %vm883 = vmor %vm881, %vm882
          %v884 = vsel %vm883, %v875, %v880
          %v885 = vrsqrt.pop %v835
          %v886 = vmul.f32 %v885, %v835
          %v887 = vmul.f32 %v886, %v885
          %v888 = vmul.f32 0.5, %v887
          %v889 = vsub.f32 1.5, %v888
          %v890 = vmul.f32 %v885, %v889
          %vm891 = vweird.f32 %v835
          %vm892 = vweird.f32 %v885
          %vm893 = vmor %vm891, %vm892
          %v894 = vsel %vm893, %v885, %v890
          %v895 = vrsqrt.pop %v836
          %v896 = vmul.f32 %v895, %v836
          %v897 = vmul.f32 %v896, %v895
          %v898 = vmul.f32 0.5, %v897
          %v899 = vsub.f32 1.5, %v898
          %v900 = vmul.f32 %v895, %v899
          %vm901 = vweird.f32 %v836
          %vm902 = vweird.f32 %v895
          %vm903 = vmor %vm901, %vm902
          %v904 = vsel %vm903, %v895, %v900
          %v905 = vrsqrt.pop %v837
          %v906 = vmul.f32 %v905, %v837
          %v907 = vmul.f32 %v906, %v905
          %v908 = vmul.f32 0.5, %v907
          %v909 = vsub.f32 1.5, %v908
          %v910 = vmul.f32 %v905, %v909
          %vm911 = vweird.f32 %v837
          %vm912 = vweird.f32 %v905
          %vm913 = vmor %vm911, %vm912
          %v914 = vsel %vm913, %v905, %v910
          %v915 = vrsqrt.pop %v838
          %v916 = vmul.f32 %v915, %v838
          %v917 = vmul.f32 %v916, %v915
          %v918 = vmul.f32 0.5, %v917
          %v919 = vsub.f32 1.5, %v918
          %v920 = vmul.f32 %v915, %v919
          %vm921 = vweird.f32 %v838
          %vm922 = vweird.f32 %v915
          %vm923 = vmor %vm921, %vm922
          %v924 = vsel %vm923, %v915, %v920
          %v925 = vrsqrt.pop %v839
          %v926 = vmul.f32 %v925, %v839
          %v927 = vmul.f32 %v926, %v925
          %v928 = vmul.f32 0.5, %v927
          %v929 = vsub.f32 1.5, %v928
          %v930 = vmul.f32 %v925, %v929
          %vm931 = vweird.f32 %v839
          %vm932 = vweird.f32 %v925
          %vm933 = vmor %vm931, %vm932
          %v934 = vsel %vm933, %v925, %v930
          %v935 = vrsqrt.pop %v840
          %v936 = vmul.f32 %v935, %v840
          %v937 = vmul.f32 %v936, %v935
          %v938 = vmul.f32 0.5, %v937
          %v939 = vsub.f32 1.5, %v938
          %v940 = vmul.f32 %v935, %v939
          %vm941 = vweird.f32 %v840
          %vm942 = vweird.f32 %v935
          %vm943 = vmor %vm941, %vm942
          %v944 = vsel %vm943, %v935, %v940
          %v945 = vrsqrt.pop %v841
          %v946 = vmul.f32 %v945, %v841
          %v947 = vmul.f32 %v946, %v945
          %v948 = vmul.f32 0.5, %v947
          %v949 = vsub.f32 1.5, %v948
          %v950 = vmul.f32 %v945, %v949
          %vm951 = vweird.f32 %v841
          %vm952 = vweird.f32 %v945
          %vm953 = vmor %vm951, %vm952
          %v954 = vsel %vm953, %v945, %v950
          %v955 = vrsqrt.pop %v842
          %v956 = vmul.f32 %v955, %v842
          %v957 = vmul.f32 %v956, %v955
          %v958 = vmul.f32 0.5, %v957
          %v959 = vsub.f32 1.5, %v958
          %v960 = vmul.f32 %v955, %v959
          %vm961 = vweird.f32 %v842
          %vm962 = vweird.f32 %v955
          %vm963 = vmor %vm961, %vm962
          %v964 = vsel %vm963, %v955, %v960
          %v965 = vrsqrt.pop %v843
          %v966 = vmul.f32 %v965, %v843
          %v967 = vmul.f32 %v966, %v965
          %v968 = vmul.f32 0.5, %v967
          %v969 = vsub.f32 1.5, %v968
          %v970 = vmul.f32 %v965, %v969
          %vm971 = vweird.f32 %v843
          %vm972 = vweird.f32 %v965
          %vm973 = vmor %vm971, %vm972
          %v974 = vsel %vm973, %v965, %v970
          %v975 = vrsqrt.pop %v844
          %v976 = vmul.f32 %v975, %v844
          %v977 = vmul.f32 %v976, %v975
          %v978 = vmul.f32 0.5, %v977
          %v979 = vsub.f32 1.5, %v978
          %v980 = vmul.f32 %v975, %v979
          %vm981 = vweird.f32 %v844
          %vm982 = vweird.f32 %v975
          %vm983 = vmor %vm981, %vm982
          %v984 = vsel %vm983, %v975, %v980
          %v985 = vrsqrt.pop %v845
          %v986 = vmul.f32 %v985, %v845
          %v987 = vmul.f32 %v986, %v985
          %v988 = vmul.f32 0.5, %v987
          %v989 = vsub.f32 1.5, %v988
          %v990 = vmul.f32 %v985, %v989
          %vm991 = vweird.f32 %v845
          %vm992 = vweird.f32 %v985
          %vm993 = vmor %vm991, %vm992
          %v994 = vsel %vm993, %v985, %v990
          %v995 = vrsqrt.pop %v846
          %v996 = vmul.f32 %v995, %v846
          %v997 = vmul.f32 %v996, %v995
          %v998 = vmul.f32 0.5, %v997
          %v999 = vsub.f32 1.5, %v998
          %v1000 = vmul.f32 %v995, %v999
          %vm1001 = vweird.f32 %v846
          %vm1002 = vweird.f32 %v995
          %vm1003 = vmor %vm1001, %vm1002
          %v1004 = vsel %vm1003, %v995, %v1000
          %v1005 = vrsqrt.pop %v847
          %v1006 = vmul.f32 %v1005, %v847
          %v1007 = vmul.f32 %v1006, %v1005
          %v1008 = vmul.f32 0.5, %v1007
          %v1009 = vsub.f32 1.5, %v1008
          %v1010 = vmul.f32 %v1005, %v1009
          %vm1011 = vweird.f32 %v847
          %vm1012 = vweird.f32 %v1005
          %vm1013 = vmor %vm1011, %vm1012
          %v1014 = vsel %vm1013, %v1005, %v1010
          %v1015 = vrsqrt.pop %v848
          %v1016 = vmul.f32 %v1015, %v848
          %v1017 = vmul.f32 %v1016, %v1015
          %v1018 = vmul.f32 0.5, %v1017
          %v1019 = vsub.f32 1.5, %v1018
          %v1020 = vmul.f32 %v1015, %v1019
          %vm1021 = vweird.f32 %v848
          %vm1022 = vweird.f32 %v1015
          %vm1023 = vmor %vm1021, %vm1022
          %v1024 = vsel %vm1023, %v1015, %v1020
          %v1025 = vrsqrt.pop %v849
          %v1026 = vmul.f32 %v1025, %v849
          %v1027 = vmul.f32 %v1026, %v1025
          %v1028 = vmul.f32 0.5, %v1027
          %v1029 = vsub.f32 1.5, %v1028
          %v1030 = vmul.f32 %v1025, %v1029
          %vm1031 = vweird.f32 %v849
          %vm1032 = vweird.f32 %v1025
          %vm1033 = vmor %vm1031, %vm1032
          %v1034 = vsel %vm1033, %v1025, %v1030
          %v1035 = vrsqrt.pop %v850
          %v1036 = vmul.f32 %v1035, %v850
          %v1037 = vmul.f32 %v1036, %v1035
          %v1038 = vmul.f32 0.5, %v1037
          %v1039 = vsub.f32 1.5, %v1038
          %v1040 = vmul.f32 %v1035, %v1039
          %vm1041 = vweird.f32 %v850
          %vm1042 = vweird.f32 %v1035
          %vm1043 = vmor %vm1041, %vm1042
          %v1044 = vsel %vm1043, %v1035, %v1040
          %v1045 = vrsqrt.pop %v851
          %v1046 = vmul.f32 %v1045, %v851
          %v1047 = vmul.f32 %v1046, %v1045
          %v1048 = vmul.f32 0.5, %v1047
          %v1049 = vsub.f32 1.5, %v1048
          %v1050 = vmul.f32 %v1045, %v1049
          %vm1051 = vweird.f32 %v851
          %vm1052 = vweird.f32 %v1045
          %vm1053 = vmor %vm1051, %vm1052
          %v1054 = vsel %vm1053, %v1045, %v1050
          %v1055 = vrsqrt.pop %v852
          %v1056 = vmul.f32 %v1055, %v852
          %v1057 = vmul.f32 %v1056, %v1055
          %v1058 = vmul.f32 0.5, %v1057
          %v1059 = vsub.f32 1.5, %v1058
          %v1060 = vmul.f32 %v1055, %v1059
          %vm1061 = vweird.f32 %v852
          %vm1062 = vweird.f32 %v1055
          %vm1063 = vmor %vm1061, %vm1062
          %v1064 = vsel %vm1063, %v1055, %v1060
          %v1065 = vrsqrt.pop %v853
          %v1066 = vmul.f32 %v1065, %v853
          %v1067 = vmul.f32 %v1066, %v1065
          %v1068 = vmul.f32 0.5, %v1067
          %v1069 = vsub.f32 1.5, %v1068
          %v1070 = vmul.f32 %v1065, %v1069
          %vm1071 = vweird.f32 %v853
          %vm1072 = vweird.f32 %v1065
          %vm1073 = vmor %vm1071, %vm1072
          %v1074 = vsel %vm1073, %v1065, %v1070
          %v1075 = vrsqrt.pop %v854
          %v1076 = vmul.f32 %v1075, %v854
          %v1077 = vmul.f32 %v1076, %v1075
          %v1078 = vmul.f32 0.5, %v1077
          %v1079 = vsub.f32 1.5, %v1078
          %v1080 = vmul.f32 %v1075, %v1079
          %vm1081 = vweird.f32 %v854
          %vm1082 = vweird.f32 %v1075
          %vm1083 = vmor %vm1081, %vm1082
          %v1084 = vsel %vm1083, %v1075, %v1080
          %v1085 = vrsqrt.pop %v855
          %v1086 = vmul.f32 %v1085, %v855
          %v1087 = vmul.f32 %v1086, %v1085
          %v1088 = vmul.f32 0.5, %v1087
          %v1089 = vsub.f32 1.5, %v1088
          %v1090 = vmul.f32 %v1085, %v1089
          %vm1091 = vweird.f32 %v855
          %vm1092 = vweird.f32 %v1085
          %vm1093 = vmor %vm1091, %vm1092
          %v1094 = vsel %vm1093, %v1085, %v1090
          %v1095 = vrsqrt.pop %v856
          %v1096 = vmul.f32 %v1095, %v856
          %v1097 = vmul.f32 %v1096, %v1095
          %v1098 = vmul.f32 0.5, %v1097
          %v1099 = vsub.f32 1.5, %v1098
          %v1100 = vmul.f32 %v1095, %v1099
          %vm1101 = vweird.f32 %v856
          %vm1102 = vweird.f32 %v1095
          %vm1103 = vmor %vm1101, %vm1102
          %v1104 = vsel %vm1103, %v1095, %v1100
          %v1105 = vrsqrt.pop %v857
          %v1106 = vmul.f32 %v1105, %v857
          %v1107 = vmul.f32 %v1106, %v1105
          %v1108 = vmul.f32 0.5, %v1107
          %v1109 = vsub.f32 1.5, %v1108
          %v1110 = vmul.f32 %v1105, %v1109
          %vm1111 = vweird.f32 %v857
          %vm1112 = vweird.f32 %v1105
          %vm1113 = vmor %vm1111, %vm1112
          %v1114 = vsel %vm1113, %v1105, %v1110
          %v1115 = vrsqrt.pop %v858
          %v1116 = vmul.f32 %v1115, %v858
          %v1117 = vmul.f32 %v1116, %v1115
          %v1118 = vmul.f32 0.5, %v1117
          %v1119 = vsub.f32 1.5, %v1118
          %v1120 = vmul.f32 %v1115, %v1119
          %vm1121 = vweird.f32 %v858
          %vm1122 = vweird.f32 %v1115
          %vm1123 = vmor %vm1121, %vm1122
          %v1124 = vsel %vm1123, %v1115, %v1120
          %v1125 = vrsqrt.pop %v859
          %v1126 = vmul.f32 %v1125, %v859
          %v1127 = vmul.f32 %v1126, %v1125
          %v1128 = vmul.f32 0.5, %v1127
          %v1129 = vsub.f32 1.5, %v1128
          %v1130 = vmul.f32 %v1125, %v1129
          %vm1131 = vweird.f32 %v859
          %vm1132 = vweird.f32 %v1125
          %vm1133 = vmor %vm1131, %vm1132
          %v1134 = vsel %vm1133, %v1125, %v1130
          %v1135 = vrsqrt.pop %v860
          %v1136 = vmul.f32 %v1135, %v860
          %v1137 = vmul.f32 %v1136, %v1135
          %v1138 = vmul.f32 0.5, %v1137
          %v1139 = vsub.f32 1.5, %v1138
          %v1140 = vmul.f32 %v1135, %v1139
          %vm1141 = vweird.f32 %v860
          %vm1142 = vweird.f32 %v1135
          %vm1143 = vmor %vm1141, %vm1142
          %v1144 = vsel %vm1143, %v1135, %v1140
          %v1145 = vrsqrt.pop %v861
          %v1146 = vmul.f32 %v1145, %v861
          %v1147 = vmul.f32 %v1146, %v1145
          %v1148 = vmul.f32 0.5, %v1147
          %v1149 = vsub.f32 1.5, %v1148
          %v1150 = vmul.f32 %v1145, %v1149
          %vm1151 = vweird.f32 %v861
          %vm1152 = vweird.f32 %v1145
          %vm1153 = vmor %vm1151, %vm1152
          %v1154 = vsel %vm1153, %v1145, %v1150
          %v1155 = vrsqrt.pop %v862
          %v1156 = vmul.f32 %v1155, %v862
          %v1157 = vmul.f32 %v1156, %v1155
          %v1158 = vmul.f32 0.5, %v1157
          %v1159 = vsub.f32 1.5, %v1158
          %v1160 = vmul.f32 %v1155, %v1159
          %vm1161 = vweird.f32 %v862
          %vm1162 = vweird.f32 %v1155
          %vm1163 = vmor %vm1161, %vm1162
          %v1164 = vsel %vm1163, %v1155, %v1160
          %v1165 = vrsqrt.pop %v863
          %v1166 = vmul.f32 %v1165, %v863
          %v1167 = vmul.f32 %v1166, %v1165
          %v1168 = vmul.f32 0.5, %v1167
          %v1169 = vsub.f32 1.5, %v1168
          %v1170 = vmul.f32 %v1165, %v1169
          %vm1171 = vweird.f32 %v863
          %vm1172 = vweird.f32 %v1165
          %vm1173 = vmor %vm1171, %vm1172
          %v1174 = vsel %vm1173, %v1165, %v1170
          %v1175 = vrsqrt.pop %v864
          %v1176 = vmul.f32 %v1175, %v864
          %v1177 = vmul.f32 %v1176, %v1175
          %v1178 = vmul.f32 0.5, %v1177
          %v1179 = vsub.f32 1.5, %v1178
          %v1180 = vmul.f32 %v1175, %v1179
          %vm1181 = vweird.f32 %v864
          %vm1182 = vweird.f32 %v1175
          %vm1183 = vmor %vm1181, %vm1182
          %v1184 = vsel %vm1183, %v1175, %v1180
          %v1185 = vmul.f32 %v673, %v874
          %v1186 = vmul.f32 %v674, %v884
          %v1187 = vmul.f32 %v675, %v894
          %v1188 = vmul.f32 %v676, %v904
          %v1189 = vmul.f32 %v677, %v914
          %v1190 = vmul.f32 %v678, %v924
          %v1191 = vmul.f32 %v679, %v934
          %v1192 = vmul.f32 %v680, %v944
          %v1193 = vmul.f32 %v681, %v954
          %v1194 = vmul.f32 %v682, %v964
          %v1195 = vmul.f32 %v683, %v974
          %v1196 = vmul.f32 %v684, %v984
          %v1197 = vmul.f32 %v685, %v994
          %v1198 = vmul.f32 %v686, %v1004
          %v1199 = vmul.f32 %v687, %v1014
          %v1200 = vmul.f32 %v688, %v1024
          %v1201 = vmul.f32 %v689, %v1034
          %v1202 = vmul.f32 %v690, %v1044
          %v1203 = vmul.f32 %v691, %v1054
          %v1204 = vmul.f32 %v692, %v1064
          %v1205 = vmul.f32 %v693, %v1074
          %v1206 = vmul.f32 %v694, %v1084
          %v1207 = vmul.f32 %v695, %v1094
          %v1208 = vmul.f32 %v696, %v1104
          %v1209 = vmul.f32 %v697, %v1114
          %v1210 = vmul.f32 %v698, %v1124
          %v1211 = vmul.f32 %v699, %v1134
          %v1212 = vmul.f32 %v700, %v1144
          %v1213 = vmul.f32 %v701, %v1154
          %v1214 = vmul.f32 %v702, %v1164
          %v1215 = vmul.f32 %v703, %v1174
          %v1216 = vmul.f32 %v704, %v1184
          %v1217 = vld [vmem:[%s2] sm:$0x1]
          %v1219 = vperm.slane %v1217, 0
          %v1221 = vmul.f32 %v1185, %v1219
          %v1222 = vmul.f32 %v1186, %v1219
          %v1223 = vmul.f32 %v1187, %v1219
          %v1224 = vmul.f32 %v1188, %v1219
          %v1225 = vmul.f32 %v1189, %v1219
          %v1226 = vmul.f32 %v1190, %v1219
          %v1227 = vmul.f32 %v1191, %v1219
          %v1228 = vmul.f32 %v1192, %v1219
          %v1229 = vmul.f32 %v1193, %v1219
          %v1230 = vmul.f32 %v1194, %v1219
          %v1231 = vmul.f32 %v1195, %v1219
          %v1232 = vmul.f32 %v1196, %v1219
          %v1233 = vmul.f32 %v1197, %v1219
          %v1234 = vmul.f32 %v1198, %v1219
          %v1235 = vmul.f32 %v1199, %v1219
          %v1236 = vmul.f32 %v1200, %v1219
          %v1237 = vmul.f32 %v1201, %v1219
          %v1238 = vmul.f32 %v1202, %v1219
          %v1239 = vmul.f32 %v1203, %v1219
          %v1240 = vmul.f32 %v1204, %v1219
          %v1241 = vmul.f32 %v1205, %v1219
          %v1242 = vmul.f32 %v1206, %v1219
          %v1243 = vmul.f32 %v1207, %v1219
          %v1244 = vmul.f32 %v1208, %v1219
          %v1245 = vmul.f32 %v1209, %v1219
          %v1246 = vmul.f32 %v1210, %v1219
          %v1247 = vmul.f32 %v1211, %v1219
          %v1248 = vmul.f32 %v1212, %v1219
          %v1249 = vmul.f32 %v1213, %v1219
          %v1250 = vmul.f32 %v1214, %v1219
          %v1251 = vmul.f32 %v1215, %v1219
          %v1252 = vmul.f32 %v1216, %v1219
          %v1253 = vld [vmem:[#allocation10] sm:$0x1]
          %v1255 = vperm.slane %v1253, 0
          %v1257 = vadd.f32 %v1221, %v1255
          %v1258 = vadd.f32 %v1222, %v1255
          %v1259 = vadd.f32 %v1223, %v1255
          %v1260 = vadd.f32 %v1224, %v1255
          %v1261 = vadd.f32 %v1225, %v1255
          %v1262 = vadd.f32 %v1226, %v1255
          %v1263 = vadd.f32 %v1227, %v1255
          %v1264 = vadd.f32 %v1228, %v1255
          %v1265 = vadd.f32 %v1229, %v1255
          %v1266 = vadd.f32 %v1230, %v1255
          %v1267 = vadd.f32 %v1231, %v1255
          %v1268 = vadd.f32 %v1232, %v1255
          %v1269 = vadd.f32 %v1233, %v1255
          %v1270 = vadd.f32 %v1234, %v1255
          %v1271 = vadd.f32 %v1235, %v1255
          %v1272 = vadd.f32 %v1236, %v1255
          %v1273 = vadd.f32 %v1237, %v1255
          %v1274 = vadd.f32 %v1238, %v1255
          %v1275 = vadd.f32 %v1239, %v1255
          %v1276 = vadd.f32 %v1240, %v1255
          %v1277 = vadd.f32 %v1241, %v1255
          %v1278 = vadd.f32 %v1242, %v1255
          %v1279 = vadd.f32 %v1243, %v1255
          %v1280 = vadd.f32 %v1244, %v1255
          %v1281 = vadd.f32 %v1245, %v1255
          %v1282 = vadd.f32 %v1246, %v1255
          %v1283 = vadd.f32 %v1247, %v1255
          %v1284 = vadd.f32 %v1248, %v1255
          %v1285 = vadd.f32 %v1249, %v1255
          %v1286 = vadd.f32 %v1250, %v1255
          %v1287 = vadd.f32 %v1251, %v1255
          %v1288 = vadd.f32 %v1252, %v1255
          %v1289 = vpack.c.bf16 %v1258, %v1257
          %v1290 = vpack.c.bf16 %v1260, %v1259
          %v1291 = vpack.c.bf16 %v1262, %v1261
          %v1292 = vpack.c.bf16 %v1264, %v1263
          %v1293 = vpack.c.bf16 %v1266, %v1265
          %v1294 = vpack.c.bf16 %v1268, %v1267
          %v1295 = vpack.c.bf16 %v1270, %v1269
          %v1296 = vpack.c.bf16 %v1272, %v1271
          %v1297 = vpack.c.bf16 %v1274, %v1273
          %v1298 = vpack.c.bf16 %v1276, %v1275
          %v1299 = vpack.c.bf16 %v1278, %v1277
          %v1300 = vpack.c.bf16 %v1280, %v1279
          %v1301 = vpack.c.bf16 %v1282, %v1281
          %v1302 = vpack.c.bf16 %v1284, %v1283
          %v1303 = vpack.c.bf16 %v1286, %v1285
          %v1304 = vpack.c.bf16 %v1288, %v1287
          %v1305 = vld [vmem:[#allocation13] sm:$0xff]
          %v1306 = vld [vmem:[#allocation13 + $0x8] sm:$0xff]
          %v1307 = vld [vmem:[#allocation13 + $0x10] sm:$0xff]
          %v1308 = vld [vmem:[#allocation13 + $0x18] sm:$0xff]
          %v1309 = vld [vmem:[#allocation13 + $0x20] sm:$0xff]
          %v1310 = vld [vmem:[#allocation13 + $0x28] sm:$0xff]
          %v1311 = vld [vmem:[#allocation13 + $0x30] sm:$0xff]
          %v1312 = vld [vmem:[#allocation13 + $0x38] sm:$0xff]
          %v1313 = vld [vmem:[#allocation13 + $0x40] sm:$0xff]
          %v1314 = vld [vmem:[#allocation13 + $0x48] sm:$0xff]
          %v1315 = vld [vmem:[#allocation13 + $0x50] sm:$0xff]
          %v1316 = vld [vmem:[#allocation13 + $0x58] sm:$0xff]
          %v1317 = vld [vmem:[#allocation13 + $0x60] sm:$0xff]
          %v1318 = vld [vmem:[#allocation13 + $0x68] sm:$0xff]
          %v1319 = vld [vmem:[#allocation13 + $0x70] sm:$0xff]
          %v1320 = vld [vmem:[#allocation13 + $0x78] sm:$0xff]
          %v1321 = vld [vmem:[%s7] sm:$0x3]
          %v1323 = vperm.slane %v1321, 0
          %v1324 = vperm.slane %v1321, 1
          %v1343 = vunpack.c.l.b16 %v1305
          %v1344 = vunpack.c.h.b16 %v1305
          %v1345 = vunpack.c.l.b16 %v1306
          %v1346 = vunpack.c.h.b16 %v1306
          %v1347 = vunpack.c.l.b16 %v1307
          %v1348 = vunpack.c.h.b16 %v1307
          %v1349 = vunpack.c.l.b16 %v1308
          %v1350 = vunpack.c.h.b16 %v1308
          %v1351 = vunpack.c.l.b16 %v1309
          %v1352 = vunpack.c.h.b16 %v1309
          %v1353 = vunpack.c.l.b16 %v1310
          %v1354 = vunpack.c.h.b16 %v1310
          %v1355 = vunpack.c.l.b16 %v1311
          %v1356 = vunpack.c.h.b16 %v1311
          %v1357 = vunpack.c.l.b16 %v1312
          %v1358 = vunpack.c.h.b16 %v1312
          %v1359 = vunpack.c.l.b16 %v1313
          %v1360 = vunpack.c.h.b16 %v1313
          %v1361 = vunpack.c.l.b16 %v1314
          %v1362 = vunpack.c.h.b16 %v1314
          %v1363 = vunpack.c.l.b16 %v1315
          %v1364 = vunpack.c.h.b16 %v1315
          %v1365 = vunpack.c.l.b16 %v1316
          %v1366 = vunpack.c.h.b16 %v1316
          %v1367 = vunpack.c.l.b16 %v1317
          %v1368 = vunpack.c.h.b16 %v1317
          %v1369 = vunpack.c.l.b16 %v1318
          %v1370 = vunpack.c.h.b16 %v1318
          %v1371 = vunpack.c.l.b16 %v1319
          %v1372 = vunpack.c.h.b16 %v1319
          %v1373 = vunpack.c.l.b16 %v1320
          %v1374 = vunpack.c.h.b16 %v1320
          %v1375 = vpack.c.b16 %v1345, %v1343
          %v1376 = vpack.c.b16 %v1346, %v1344
          %v1377 = vpack.c.b16 %v1349, %v1347
          %v1378 = vpack.c.b16 %v1350, %v1348
          %v1379 = vpack.c.b16 %v1353, %v1351
          %v1380 = vpack.c.b16 %v1354, %v1352
          %v1381 = vpack.c.b16 %v1357, %v1355
          %v1382 = vpack.c.b16 %v1358, %v1356
          %v1383 = vpack.c.b16 %v1361, %v1359
          %v1384 = vpack.c.b16 %v1362, %v1360
          %v1385 = vpack.c.b16 %v1365, %v1363
          %v1386 = vpack.c.b16 %v1366, %v1364
          %v1387 = vpack.c.b16 %v1369, %v1367
          %v1388 = vpack.c.b16 %v1370, %v1368
          %v1389 = vpack.c.b16 %v1373, %v1371
          %v1390 = vpack.c.b16 %v1374, %v1372
          %1407 = vmatpush.bf16.msra.mxu0 %v1389
          %1408 = vmatpush.bf16.msra.mxu0 %v1387
          %1409 = vmatpush.bf16.msra.mxu0 %v1385
          %1410 = vmatpush.bf16.msra.mxu0 %v1383
          %1411 = vmatpush.bf16.msra.mxu0 %v1381
          %1412 = vmatpush.bf16.msra.mxu0 %v1379
          %1413 = vmatpush.bf16.msra.mxu0 %v1377
          %1414 = vmatpush.bf16.msra.mxu0 %v1375
          %1415 = vmatmul.bf16.gmra.mxu0 %v1289
          %v1416 = vpop.f32.mrf.mxu0
          %v1417 = vadd.f32 %v1323, %v1416
          %v1418 = vpop.f32.mrf.mxu0
          %v1419 = vadd.f32 %v1323, %v1418
          %1420 = vmatmul.bf16.gmra.mxu0 %v1290
          %v1421 = vpop.f32.mrf.mxu0
          %v1422 = vadd.f32 %v1323, %v1421
          %v1423 = vpop.f32.mrf.mxu0
          %v1424 = vadd.f32 %v1323, %v1423
          %1425 = vmatmul.bf16.gmra.mxu0 %v1291
          %v1426 = vpop.f32.mrf.mxu0
          %v1427 = vadd.f32 %v1323, %v1426
          %v1428 = vpop.f32.mrf.mxu0
          %v1429 = vadd.f32 %v1323, %v1428
          %1430 = vmatmul.bf16.gmra.mxu0 %v1292
          %v1431 = vpop.f32.mrf.mxu0
          %v1432 = vadd.f32 %v1323, %v1431
          %v1433 = vpop.f32.mrf.mxu0
          %v1434 = vadd.f32 %v1323, %v1433
          %1435 = vmatmul.bf16.gmra.mxu0 %v1293
          %v1436 = vpop.f32.mrf.mxu0
          %v1437 = vadd.f32 %v1323, %v1436
          %v1438 = vpop.f32.mrf.mxu0
          %v1439 = vadd.f32 %v1323, %v1438
          %1440 = vmatmul.bf16.gmra.mxu0 %v1294
          %v1441 = vpop.f32.mrf.mxu0
          %v1442 = vadd.f32 %v1323, %v1441
          %v1443 = vpop.f32.mrf.mxu0
          %v1444 = vadd.f32 %v1323, %v1443
          %1445 = vmatmul.bf16.gmra.mxu0 %v1295
          %v1446 = vpop.f32.mrf.mxu0
          %v1447 = vadd.f32 %v1323, %v1446
          %v1448 = vpop.f32.mrf.mxu0
          %v1449 = vadd.f32 %v1323, %v1448
          %1450 = vmatmul.bf16.gmra.mxu0 %v1296
          %v1451 = vpop.f32.mrf.mxu0
          %v1452 = vadd.f32 %v1323, %v1451
          %v1453 = vpop.f32.mrf.mxu0
          %v1454 = vadd.f32 %v1323, %v1453
          %1455 = vmatmul.bf16.gmra.mxu0 %v1297
          %v1456 = vpop.f32.mrf.mxu0
          %v1457 = vadd.f32 %v1323, %v1456
          %v1458 = vpop.f32.mrf.mxu0
          %v1459 = vadd.f32 %v1323, %v1458
          %1460 = vmatmul.bf16.gmra.mxu0 %v1298
          %v1461 = vpop.f32.mrf.mxu0
          %v1462 = vadd.f32 %v1323, %v1461
          %v1463 = vpop.f32.mrf.mxu0
          %v1464 = vadd.f32 %v1323, %v1463
          %1465 = vmatmul.bf16.gmra.mxu0 %v1299
          %v1466 = vpop.f32.mrf.mxu0
          %v1467 = vadd.f32 %v1323, %v1466
          %v1468 = vpop.f32.mrf.mxu0
          %v1469 = vadd.f32 %v1323, %v1468
          %1470 = vmatmul.bf16.gmra.mxu0 %v1300
          %v1471 = vpop.f32.mrf.mxu0
          %v1472 = vadd.f32 %v1323, %v1471
          %v1473 = vpop.f32.mrf.mxu0
          %v1474 = vadd.f32 %v1323, %v1473
          %1475 = vmatmul.bf16.gmra.mxu0 %v1301
          %v1476 = vpop.f32.mrf.mxu0
          %v1477 = vadd.f32 %v1323, %v1476
          %v1478 = vpop.f32.mrf.mxu0
          %v1479 = vadd.f32 %v1323, %v1478
          %1480 = vmatmul.bf16.gmra.mxu0 %v1302
          %v1481 = vpop.f32.mrf.mxu0
          %v1482 = vadd.f32 %v1323, %v1481
          %v1483 = vpop.f32.mrf.mxu0
          %v1484 = vadd.f32 %v1323, %v1483
          %1485 = vmatmul.bf16.gmra.mxu0 %v1303
          %v1486 = vpop.f32.mrf.mxu0
          %v1487 = vadd.f32 %v1323, %v1486
          %v1488 = vpop.f32.mrf.mxu0
          %v1489 = vadd.f32 %v1323, %v1488
          %1490 = vmatmul.bf16.gmra.mxu0 %v1304
          %v1491 = vpop.f32.mrf.mxu0
          %v1492 = vadd.f32 %v1323, %v1491
          %v1493 = vpop.f32.mrf.mxu0
          %v1494 = vadd.f32 %v1323, %v1493
          %1495 = vdwg.mxu0
          %1496 = vmatpush.bf16.msra.mxu0 %v1390
          %1497 = vmatpush.bf16.msra.mxu0 %v1388
          %1498 = vmatpush.bf16.msra.mxu0 %v1386
          %1499 = vmatpush.bf16.msra.mxu0 %v1384
          %1500 = vmatpush.bf16.msra.mxu0 %v1382
          %1501 = vmatpush.bf16.msra.mxu0 %v1380
          %1502 = vmatpush.bf16.msra.mxu0 %v1378
          %1503 = vmatpush.bf16.msra.mxu0 %v1376
          %1504 = vmatmul.bf16.gmra.mxu0 %v1289
          %v1505 = vpop.f32.mrf.mxu0
          %v1506 = vadd.f32 %v1324, %v1505
          %v1507 = vpop.f32.mrf.mxu0
          %v1508 = vadd.f32 %v1324, %v1507
          %1509 = vmatmul.bf16.gmra.mxu0 %v1290
          %v1510 = vpop.f32.mrf.mxu0
          %v1511 = vadd.f32 %v1324, %v1510
          %v1512 = vpop.f32.mrf.mxu0
          %v1513 = vadd.f32 %v1324, %v1512
          %1514 = vmatmul.bf16.gmra.mxu0 %v1291
          %v1515 = vpop.f32.mrf.mxu0
          %v1516 = vadd.f32 %v1324, %v1515
          %v1517 = vpop.f32.mrf.mxu0
          %v1518 = vadd.f32 %v1324, %v1517
          %1519 = vmatmul.bf16.gmra.mxu0 %v1292
          %v1520 = vpop.f32.mrf.mxu0
          %v1521 = vadd.f32 %v1324, %v1520
          %v1522 = vpop.f32.mrf.mxu0
          %v1523 = vadd.f32 %v1324, %v1522
          %1524 = vmatmul.bf16.gmra.mxu0 %v1293
          %v1525 = vpop.f32.mrf.mxu0
          %v1526 = vadd.f32 %v1324, %v1525
          %v1527 = vpop.f32.mrf.mxu0
          %v1528 = vadd.f32 %v1324, %v1527
          %1529 = vmatmul.bf16.gmra.mxu0 %v1294
          %v1530 = vpop.f32.mrf.mxu0
          %v1531 = vadd.f32 %v1324, %v1530
          %v1532 = vpop.f32.mrf.mxu0
          %v1533 = vadd.f32 %v1324, %v1532
          %1534 = vmatmul.bf16.gmra.mxu0 %v1295
          %v1535 = vpop.f32.mrf.mxu0
          %v1536 = vadd.f32 %v1324, %v1535
          %v1537 = vpop.f32.mrf.mxu0
          %v1538 = vadd.f32 %v1324, %v1537
          %1539 = vmatmul.bf16.gmra.mxu0 %v1296
          %v1540 = vpop.f32.mrf.mxu0
          %v1541 = vadd.f32 %v1324, %v1540
          %v1542 = vpop.f32.mrf.mxu0
          %v1543 = vadd.f32 %v1324, %v1542
          %1544 = vmatmul.bf16.gmra.mxu0 %v1297
          %v1545 = vpop.f32.mrf.mxu0
          %v1546 = vadd.f32 %v1324, %v1545
          %v1547 = vpop.f32.mrf.mxu0
          %v1548 = vadd.f32 %v1324, %v1547
          %1549 = vmatmul.bf16.gmra.mxu0 %v1298
          %v1550 = vpop.f32.mrf.mxu0
          %v1551 = vadd.f32 %v1324, %v1550
          %v1552 = vpop.f32.mrf.mxu0
          %v1553 = vadd.f32 %v1324, %v1552
          %1554 = vmatmul.bf16.gmra.mxu0 %v1299
          %v1555 = vpop.f32.mrf.mxu0
          %v1556 = vadd.f32 %v1324, %v1555
          %v1557 = vpop.f32.mrf.mxu0
          %v1558 = vadd.f32 %v1324, %v1557
          %1559 = vmatmul.bf16.gmra.mxu0 %v1300
          %v1560 = vpop.f32.mrf.mxu0
          %v1561 = vadd.f32 %v1324, %v1560
          %v1562 = vpop.f32.mrf.mxu0
          %v1563 = vadd.f32 %v1324, %v1562
          %1564 = vmatmul.bf16.gmra.mxu0 %v1301
          %v1565 = vpop.f32.mrf.mxu0
          %v1566 = vadd.f32 %v1324, %v1565
          %v1567 = vpop.f32.mrf.mxu0
          %v1568 = vadd.f32 %v1324, %v1567
          %1569 = vmatmul.bf16.gmra.mxu0 %v1302
          %v1570 = vpop.f32.mrf.mxu0
          %v1571 = vadd.f32 %v1324, %v1570
          %v1572 = vpop.f32.mrf.mxu0
          %v1573 = vadd.f32 %v1324, %v1572
          %1574 = vmatmul.bf16.gmra.mxu0 %v1303
          %v1575 = vpop.f32.mrf.mxu0
          %v1576 = vadd.f32 %v1324, %v1575
          %v1577 = vpop.f32.mrf.mxu0
          %v1578 = vadd.f32 %v1324, %v1577
          %1579 = vmatmul.bf16.gmra.mxu0 %v1304
          %v1580 = vpop.f32.mrf.mxu0
          %v1581 = vadd.f32 %v1324, %v1580
          %v1582 = vpop.f32.mrf.mxu0
          %v1583 = vadd.f32 %v1324, %v1582
          %1584 = vdwg.mxu0
          %v1585 = vpack.c.bf16 %v1417, %v1417
          %v1586 = vpack.c.bf16 %v1419, %v1419
          %v1587 = vpack.c.bf16 %v1422, %v1422
          %v1588 = vpack.c.bf16 %v1424, %v1424
          %v1589 = vpack.c.bf16 %v1427, %v1427
          %v1590 = vpack.c.bf16 %v1429, %v1429
          %v1591 = vpack.c.bf16 %v1432, %v1432
          %v1592 = vpack.c.bf16 %v1434, %v1434
          %v1593 = vpack.c.bf16 %v1437, %v1437
          %v1594 = vpack.c.bf16 %v1439, %v1439
          %v1595 = vpack.c.bf16 %v1442, %v1442
          %v1596 = vpack.c.bf16 %v1444, %v1444
          %v1597 = vpack.c.bf16 %v1447, %v1447
          %v1598 = vpack.c.bf16 %v1449, %v1449
          %v1599 = vpack.c.bf16 %v1452, %v1452
          %v1600 = vpack.c.bf16 %v1454, %v1454
          %v1601 = vpack.c.bf16 %v1457, %v1457
          %v1602 = vpack.c.bf16 %v1459, %v1459
          %v1603 = vpack.c.bf16 %v1462, %v1462
          %v1604 = vpack.c.bf16 %v1464, %v1464
          %v1605 = vpack.c.bf16 %v1467, %v1467
          %v1606 = vpack.c.bf16 %v1469, %v1469
          %v1607 = vpack.c.bf16 %v1472, %v1472
          %v1608 = vpack.c.bf16 %v1474, %v1474
          %v1609 = vpack.c.bf16 %v1477, %v1477
          %v1610 = vpack.c.bf16 %v1479, %v1479
          %v1611 = vpack.c.bf16 %v1482, %v1482
          %v1612 = vpack.c.bf16 %v1484, %v1484
          %v1613 = vpack.c.bf16 %v1487, %v1487
          %v1614 = vpack.c.bf16 %v1489, %v1489
          %v1615 = vpack.c.bf16 %v1492, %v1492
          %v1616 = vpack.c.bf16 %v1494, %v1494
          %vm1617 = vcmask 519168
          %1618 = vst.msk [vmem:[#allocation2] sm:$0xf] %vm1617, %v1585
          %1619 = vst.msk [vmem:[#allocation2 + $0x4] sm:$0xf] %vm1617, %v1586
          %1620 = vst.msk [vmem:[#allocation2 + $0x8] sm:$0xf] %vm1617, %v1587
          %1621 = vst.msk [vmem:[#allocation2 + $0xc] sm:$0xf] %vm1617, %v1588
          %1622 = vst.msk [vmem:[#allocation2 + $0x10] sm:$0xf] %vm1617, %v1589
          %1623 = vst.msk [vmem:[#allocation2 + $0x14] sm:$0xf] %vm1617, %v1590
          %1624 = vst.msk [vmem:[#allocation2 + $0x18] sm:$0xf] %vm1617, %v1591
          %1625 = vst.msk [vmem:[#allocation2 + $0x1c] sm:$0xf] %vm1617, %v1592
          %1626 = vst.msk [vmem:[#allocation2 + $0x20] sm:$0xf] %vm1617, %v1593
          %1627 = vst.msk [vmem:[#allocation2 + $0x24] sm:$0xf] %vm1617, %v1594
          %1628 = vst.msk [vmem:[#allocation2 + $0x28] sm:$0xf] %vm1617, %v1595
          %1629 = vst.msk [vmem:[#allocation2 + $0x2c] sm:$0xf] %vm1617, %v1596
          %1630 = vst.msk [vmem:[#allocation2 + $0x30] sm:$0xf] %vm1617, %v1597
          %1631 = vst.msk [vmem:[#allocation2 + $0x34] sm:$0xf] %vm1617, %v1598
          %1632 = vst.msk [vmem:[#allocation2 + $0x38] sm:$0xf] %vm1617, %v1599
          %1633 = vst.msk [vmem:[#allocation2 + $0x3c] sm:$0xf] %vm1617, %v1600
          %1634 = vst.msk [vmem:[#allocation2 + $0x40] sm:$0xf] %vm1617, %v1601
          %1635 = vst.msk [vmem:[#allocation2 + $0x44] sm:$0xf] %vm1617, %v1602
          %1636 = vst.msk [vmem:[#allocation2 + $0x48] sm:$0xf] %vm1617, %v1603
          %1637 = vst.msk [vmem:[#allocation2 + $0x4c] sm:$0xf] %vm1617, %v1604
          %1638 = vst.msk [vmem:[#allocation2 + $0x50] sm:$0xf] %vm1617, %v1605
          %1639 = vst.msk [vmem:[#allocation2 + $0x54] sm:$0xf] %vm1617, %v1606
          %1640 = vst.msk [vmem:[#allocation2 + $0x58] sm:$0xf] %vm1617, %v1607
          %1641 = vst.msk [vmem:[#allocation2 + $0x5c] sm:$0xf] %vm1617, %v1608
          %1642 = vst.msk [vmem:[#allocation2 + $0x60] sm:$0xf] %vm1617, %v1609
          %1643 = vst.msk [vmem:[#allocation2 + $0x64] sm:$0xf] %vm1617, %v1610
          %1644 = vst.msk [vmem:[#allocation2 + $0x68] sm:$0xf] %vm1617, %v1611
          %1645 = vst.msk [vmem:[#allocation2 + $0x6c] sm:$0xf] %vm1617, %v1612
          %1646 = vst.msk [vmem:[#allocation2 + $0x70] sm:$0xf] %vm1617, %v1613
          %1647 = vst.msk [vmem:[#allocation2 + $0x74] sm:$0xf] %vm1617, %v1614
          %1648 = vst.msk [vmem:[#allocation2 + $0x78] sm:$0xf] %vm1617, %v1615
          %1649 = vst.msk [vmem:[#allocation2 + $0x7c] sm:$0xf] %vm1617, %v1616
          %v1650 = vpack.c.bf16 %v1506, %v1506
          %v1651 = vpack.c.bf16 %v1508, %v1508
          %v1652 = vpack.c.bf16 %v1511, %v1511
          %v1653 = vpack.c.bf16 %v1513, %v1513
          %v1654 = vpack.c.bf16 %v1516, %v1516
          %v1655 = vpack.c.bf16 %v1518, %v1518
          %v1656 = vpack.c.bf16 %v1521, %v1521
          %v1657 = vpack.c.bf16 %v1523, %v1523
          %v1658 = vpack.c.bf16 %v1526, %v1526
          %v1659 = vpack.c.bf16 %v1528, %v1528
          %v1660 = vpack.c.bf16 %v1531, %v1531
          %v1661 = vpack.c.bf16 %v1533, %v1533
          %v1662 = vpack.c.bf16 %v1536, %v1536
          %v1663 = vpack.c.bf16 %v1538, %v1538
          %v1664 = vpack.c.bf16 %v1541, %v1541
          %v1665 = vpack.c.bf16 %v1543, %v1543
          %v1666 = vpack.c.bf16 %v1546, %v1546
          %v1667 = vpack.c.bf16 %v1548, %v1548
          %v1668 = vpack.c.bf16 %v1551, %v1551
          %v1669 = vpack.c.bf16 %v1553, %v1553
          %v1670 = vpack.c.bf16 %v1556, %v1556
          %v1671 = vpack.c.bf16 %v1558, %v1558
          %v1672 = vpack.c.bf16 %v1561, %v1561
          %v1673 = vpack.c.bf16 %v1563, %v1563
          %v1674 = vpack.c.bf16 %v1566, %v1566
          %v1675 = vpack.c.bf16 %v1568, %v1568
          %v1676 = vpack.c.bf16 %v1571, %v1571
          %v1677 = vpack.c.bf16 %v1573, %v1573
          %v1678 = vpack.c.bf16 %v1576, %v1576
          %v1679 = vpack.c.bf16 %v1578, %v1578
          %v1680 = vpack.c.bf16 %v1581, %v1581
          %v1681 = vpack.c.bf16 %v1583, %v1583
          %1682 = vst.msk [vmem:[#allocation3] sm:$0xf] %vm1617, %v1650
          %1683 = vst.msk [vmem:[#allocation3 + $0x4] sm:$0xf] %vm1617, %v1651
          %1684 = vst.msk [vmem:[#allocation3 + $0x8] sm:$0xf] %vm1617, %v1652
          %1685 = vst.msk [vmem:[#allocation3 + $0xc] sm:$0xf] %vm1617, %v1653
          %1686 = vst.msk [vmem:[#allocation3 + $0x10] sm:$0xf] %vm1617, %v1654
          %1687 = vst.msk [vmem:[#allocation3 + $0x14] sm:$0xf] %vm1617, %v1655
          %1688 = vst.msk [vmem:[#allocation3 + $0x18] sm:$0xf] %vm1617, %v1656
          %1689 = vst.msk [vmem:[#allocation3 + $0x1c] sm:$0xf] %vm1617, %v1657
          %1690 = vst.msk [vmem:[#allocation3 + $0x20] sm:$0xf] %vm1617, %v1658
          %1691 = vst.msk [vmem:[#allocation3 + $0x24] sm:$0xf] %vm1617, %v1659
          %1692 = vst.msk [vmem:[#allocation3 + $0x28] sm:$0xf] %vm1617, %v1660
          %1693 = vst.msk [vmem:[#allocation3 + $0x2c] sm:$0xf] %vm1617, %v1661
          %1694 = vst.msk [vmem:[#allocation3 + $0x30] sm:$0xf] %vm1617, %v1662
          %1695 = vst.msk [vmem:[#allocation3 + $0x34] sm:$0xf] %vm1617, %v1663
          %1696 = vst.msk [vmem:[#allocation3 + $0x38] sm:$0xf] %vm1617, %v1664
          %1697 = vst.msk [vmem:[#allocation3 + $0x3c] sm:$0xf] %vm1617, %v1665
          %1698 = vst.msk [vmem:[#allocation3 + $0x40] sm:$0xf] %vm1617, %v1666
          %1699 = vst.msk [vmem:[#allocation3 + $0x44] sm:$0xf] %vm1617, %v1667
          %1700 = vst.msk [vmem:[#allocation3 + $0x48] sm:$0xf] %vm1617, %v1668
          %1701 = vst.msk [vmem:[#allocation3 + $0x4c] sm:$0xf] %vm1617, %v1669
          %1702 = vst.msk [vmem:[#allocation3 + $0x50] sm:$0xf] %vm1617, %v1670
          %1703 = vst.msk [vmem:[#allocation3 + $0x54] sm:$0xf] %vm1617, %v1671
          %1704 = vst.msk [vmem:[#allocation3 + $0x58] sm:$0xf] %vm1617, %v1672
          %1705 = vst.msk [vmem:[#allocation3 + $0x5c] sm:$0xf] %vm1617, %v1673
          %1706 = vst.msk [vmem:[#allocation3 + $0x60] sm:$0xf] %vm1617, %v1674
          %1707 = vst.msk [vmem:[#allocation3 + $0x64] sm:$0xf] %vm1617, %v1675
          %1708 = vst.msk [vmem:[#allocation3 + $0x68] sm:$0xf] %vm1617, %v1676
          %1709 = vst.msk [vmem:[#allocation3 + $0x6c] sm:$0xf] %vm1617, %v1677
          %1710 = vst.msk [vmem:[#allocation3 + $0x70] sm:$0xf] %vm1617, %v1678
          %1711 = vst.msk [vmem:[#allocation3 + $0x74] sm:$0xf] %vm1617, %v1679
          %1712 = vst.msk [vmem:[#allocation3 + $0x78] sm:$0xf] %vm1617, %v1680
          %1713 = vst.msk [vmem:[#allocation3 + $0x7c] sm:$0xf] %vm1617, %v1681
          %1746 = vrot.lane.b32.xlu0 %v1585, 64
          %v1747 = vpop.permute.xlu0 %1746
          %1748 = vrot.lane.b32.xlu0 %v1586, 64
          %v1749 = vpop.permute.xlu0 %1748
          %1750 = vrot.lane.b32.xlu0 %v1587, 64
          %v1751 = vpop.permute.xlu0 %1750
          %1752 = vrot.lane.b32.xlu0 %v1588, 64
          %v1753 = vpop.permute.xlu0 %1752
          %1754 = vrot.lane.b32.xlu0 %v1589, 64
          %v1755 = vpop.permute.xlu0 %1754
          %1756 = vrot.lane.b32.xlu0 %v1590, 64
          %v1757 = vpop.permute.xlu0 %1756
          %1758 = vrot.lane.b32.xlu0 %v1591, 64
          %v1759 = vpop.permute.xlu0 %1758
          %1760 = vrot.lane.b32.xlu0 %v1592, 64
          %v1761 = vpop.permute.xlu0 %1760
          %1762 = vrot.lane.b32.xlu0 %v1593, 64
          %v1763 = vpop.permute.xlu0 %1762
          %1764 = vrot.lane.b32.xlu0 %v1594, 64
          %v1765 = vpop.permute.xlu0 %1764
          %1766 = vrot.lane.b32.xlu0 %v1595, 64
          %v1767 = vpop.permute.xlu0 %1766
          %1768 = vrot.lane.b32.xlu0 %v1596, 64
          %v1769 = vpop.permute.xlu0 %1768
          %1770 = vrot.lane.b32.xlu0 %v1597, 64
          %v1771 = vpop.permute.xlu0 %1770
          %1772 = vrot.lane.b32.xlu0 %v1598, 64
          %v1773 = vpop.permute.xlu0 %1772
          %1774 = vrot.lane.b32.xlu0 %v1599, 64
          %v1775 = vpop.permute.xlu0 %1774
          %1776 = vrot.lane.b32.xlu0 %v1600, 64
          %v1777 = vpop.permute.xlu0 %1776
          %1778 = vrot.lane.b32.xlu0 %v1601, 64
          %v1779 = vpop.permute.xlu0 %1778
          %1780 = vrot.lane.b32.xlu0 %v1602, 64
          %v1781 = vpop.permute.xlu0 %1780
          %1782 = vrot.lane.b32.xlu0 %v1603, 64
          %v1783 = vpop.permute.xlu0 %1782
          %1784 = vrot.lane.b32.xlu0 %v1604, 64
          %v1785 = vpop.permute.xlu0 %1784
          %1786 = vrot.lane.b32.xlu0 %v1605, 64
          %v1787 = vpop.permute.xlu0 %1786
          %1788 = vrot.lane.b32.xlu0 %v1606, 64
          %v1789 = vpop.permute.xlu0 %1788
          %1790 = vrot.lane.b32.xlu0 %v1607, 64
          %v1791 = vpop.permute.xlu0 %1790
          %1792 = vrot.lane.b32.xlu0 %v1608, 64
          %v1793 = vpop.permute.xlu0 %1792
          %1794 = vrot.lane.b32.xlu0 %v1609, 64
          %v1795 = vpop.permute.xlu0 %1794
          %1796 = vrot.lane.b32.xlu0 %v1610, 64
          %v1797 = vpop.permute.xlu0 %1796
          %1798 = vrot.lane.b32.xlu0 %v1611, 64
          %v1799 = vpop.permute.xlu0 %1798
          %1800 = vrot.lane.b32.xlu0 %v1612, 64
          %v1801 = vpop.permute.xlu0 %1800
          %1802 = vrot.lane.b32.xlu0 %v1613, 64
          %v1803 = vpop.permute.xlu0 %1802
          %1804 = vrot.lane.b32.xlu0 %v1614, 64
          %v1805 = vpop.permute.xlu0 %1804
          %1806 = vrot.lane.b32.xlu0 %v1615, 64
          %v1807 = vpop.permute.xlu0 %1806
          %1808 = vrot.lane.b32.xlu0 %v1616, 64
          %v1809 = vpop.permute.xlu0 %1808
          %s1842 = scalar_lea.vmem [#allocation2], 128
          %1843 = vst.msk [vmem:[%s1842] sm:$0xf] %vm1617, %v1747
          %1844 = vst.msk [vmem:[%s1842 + $0x4] sm:$0xf] %vm1617, %v1749
          %1845 = vst.msk [vmem:[%s1842 + $0x8] sm:$0xf] %vm1617, %v1751
          %1846 = vst.msk [vmem:[%s1842 + $0xc] sm:$0xf] %vm1617, %v1753
          %1847 = vst.msk [vmem:[%s1842 + $0x10] sm:$0xf] %vm1617, %v1755
          %1848 = vst.msk [vmem:[%s1842 + $0x14] sm:$0xf] %vm1617, %v1757
          %1849 = vst.msk [vmem:[%s1842 + $0x18] sm:$0xf] %vm1617, %v1759
          %1850 = vst.msk [vmem:[%s1842 + $0x1c] sm:$0xf] %vm1617, %v1761
          %1851 = vst.msk [vmem:[%s1842 + $0x20] sm:$0xf] %vm1617, %v1763
          %1852 = vst.msk [vmem:[%s1842 + $0x24] sm:$0xf] %vm1617, %v1765
          %1853 = vst.msk [vmem:[%s1842 + $0x28] sm:$0xf] %vm1617, %v1767
          %1854 = vst.msk [vmem:[%s1842 + $0x2c] sm:$0xf] %vm1617, %v1769
          %1855 = vst.msk [vmem:[%s1842 + $0x30] sm:$0xf] %vm1617, %v1771
          %1856 = vst.msk [vmem:[%s1842 + $0x34] sm:$0xf] %vm1617, %v1773
          %1857 = vst.msk [vmem:[%s1842 + $0x38] sm:$0xf] %vm1617, %v1775
          %1858 = vst.msk [vmem:[%s1842 + $0x3c] sm:$0xf] %vm1617, %v1777
          %1859 = vst.msk [vmem:[%s1842 + $0x40] sm:$0xf] %vm1617, %v1779
          %1860 = vst.msk [vmem:[%s1842 + $0x44] sm:$0xf] %vm1617, %v1781
          %1861 = vst.msk [vmem:[%s1842 + $0x48] sm:$0xf] %vm1617, %v1783
          %1862 = vst.msk [vmem:[%s1842 + $0x4c] sm:$0xf] %vm1617, %v1785
          %1863 = vst.msk [vmem:[%s1842 + $0x50] sm:$0xf] %vm1617, %v1787
          %1864 = vst.msk [vmem:[%s1842 + $0x54] sm:$0xf] %vm1617, %v1789
          %1865 = vst.msk [vmem:[%s1842 + $0x58] sm:$0xf] %vm1617, %v1791
          %1866 = vst.msk [vmem:[%s1842 + $0x5c] sm:$0xf] %vm1617, %v1793
          %1867 = vst.msk [vmem:[%s1842 + $0x60] sm:$0xf] %vm1617, %v1795
          %1868 = vst.msk [vmem:[%s1842 + $0x64] sm:$0xf] %vm1617, %v1797
          %1869 = vst.msk [vmem:[%s1842 + $0x68] sm:$0xf] %vm1617, %v1799
          %1870 = vst.msk [vmem:[%s1842 + $0x6c] sm:$0xf] %vm1617, %v1801
          %1871 = vst.msk [vmem:[%s1842 + $0x70] sm:$0xf] %vm1617, %v1803
          %1872 = vst.msk [vmem:[%s1842 + $0x74] sm:$0xf] %vm1617, %v1805
          %1873 = vst.msk [vmem:[%s1842 + $0x78] sm:$0xf] %vm1617, %v1807
          %1874 = vst.msk [vmem:[%s1842 + $0x7c] sm:$0xf] %vm1617, %v1809
          %1907 = vrot.lane.b32.xlu0 %v1650, 64
          %v1908 = vpop.permute.xlu0 %1907
          %1909 = vrot.lane.b32.xlu0 %v1651, 64
          %v1910 = vpop.permute.xlu0 %1909
          %1911 = vrot.lane.b32.xlu0 %v1652, 64
          %v1912 = vpop.permute.xlu0 %1911
          %1913 = vrot.lane.b32.xlu0 %v1653, 64
          %v1914 = vpop.permute.xlu0 %1913
          %1915 = vrot.lane.b32.xlu0 %v1654, 64
          %v1916 = vpop.permute.xlu0 %1915
          %1917 = vrot.lane.b32.xlu0 %v1655, 64
          %v1918 = vpop.permute.xlu0 %1917
          %1919 = vrot.lane.b32.xlu0 %v1656, 64
          %v1920 = vpop.permute.xlu0 %1919
          %1921 = vrot.lane.b32.xlu0 %v1657, 64
          %v1922 = vpop.permute.xlu0 %1921
          %1923 = vrot.lane.b32.xlu0 %v1658, 64
          %v1924 = vpop.permute.xlu0 %1923
          %1925 = vrot.lane.b32.xlu0 %v1659, 64
          %v1926 = vpop.permute.xlu0 %1925
          %1927 = vrot.lane.b32.xlu0 %v1660, 64
          %v1928 = vpop.permute.xlu0 %1927
          %1929 = vrot.lane.b32.xlu0 %v1661, 64
          %v1930 = vpop.permute.xlu0 %1929
          %1931 = vrot.lane.b32.xlu0 %v1662, 64
          %v1932 = vpop.permute.xlu0 %1931
          %1933 = vrot.lane.b32.xlu0 %v1663, 64
          %v1934 = vpop.permute.xlu0 %1933
          %1935 = vrot.lane.b32.xlu0 %v1664, 64
          %v1936 = vpop.permute.xlu0 %1935
          %1937 = vrot.lane.b32.xlu0 %v1665, 64
          %v1938 = vpop.permute.xlu0 %1937
          %1939 = vrot.lane.b32.xlu0 %v1666, 64
          %v1940 = vpop.permute.xlu0 %1939
          %1941 = vrot.lane.b32.xlu0 %v1667, 64
          %v1942 = vpop.permute.xlu0 %1941
          %1943 = vrot.lane.b32.xlu0 %v1668, 64
          %v1944 = vpop.permute.xlu0 %1943
          %1945 = vrot.lane.b32.xlu0 %v1669, 64
          %v1946 = vpop.permute.xlu0 %1945
          %1947 = vrot.lane.b32.xlu0 %v1670, 64
          %v1948 = vpop.permute.xlu0 %1947
          %1949 = vrot.lane.b32.xlu0 %v1671, 64
          %v1950 = vpop.permute.xlu0 %1949
          %1951 = vrot.lane.b32.xlu0 %v1672, 64
          %v1952 = vpop.permute.xlu0 %1951
          %1953 = vrot.lane.b32.xlu0 %v1673, 64
          %v1954 = vpop.permute.xlu0 %1953
          %1955 = vrot.lane.b32.xlu0 %v1674, 64
          %v1956 = vpop.permute.xlu0 %1955
          %1957 = vrot.lane.b32.xlu0 %v1675, 64
          %v1958 = vpop.permute.xlu0 %1957
          %1959 = vrot.lane.b32.xlu0 %v1676, 64
          %v1960 = vpop.permute.xlu0 %1959
          %1961 = vrot.lane.b32.xlu0 %v1677, 64
          %v1962 = vpop.permute.xlu0 %1961
          %1963 = vrot.lane.b32.xlu0 %v1678, 64
          %v1964 = vpop.permute.xlu0 %1963
          %1965 = vrot.lane.b32.xlu0 %v1679, 64
          %v1966 = vpop.permute.xlu0 %1965
          %1967 = vrot.lane.b32.xlu0 %v1680, 64
          %v1968 = vpop.permute.xlu0 %1967
          %1969 = vrot.lane.b32.xlu0 %v1681, 64
          %v1970 = vpop.permute.xlu0 %1969
          %s2003 = scalar_lea.vmem [#allocation3], 128
          %2004 = vst.msk [vmem:[%s2003] sm:$0xf] %vm1617, %v1908
          %2005 = vst.msk [vmem:[%s2003 + $0x4] sm:$0xf] %vm1617, %v1910
          %2006 = vst.msk [vmem:[%s2003 + $0x8] sm:$0xf] %vm1617, %v1912
          %2007 = vst.msk [vmem:[%s2003 + $0xc] sm:$0xf] %vm1617, %v1914
          %2008 = vst.msk [vmem:[%s2003 + $0x10] sm:$0xf] %vm1617, %v1916
          %2009 = vst.msk [vmem:[%s2003 + $0x14] sm:$0xf] %vm1617, %v1918
          %2010 = vst.msk [vmem:[%s2003 + $0x18] sm:$0xf] %vm1617, %v1920
          %2011 = vst.msk [vmem:[%s2003 + $0x1c] sm:$0xf] %vm1617, %v1922
          %2012 = vst.msk [vmem:[%s2003 + $0x20] sm:$0xf] %vm1617, %v1924
          %2013 = vst.msk [vmem:[%s2003 + $0x24] sm:$0xf] %vm1617, %v1926
          %2014 = vst.msk [vmem:[%s2003 + $0x28] sm:$0xf] %vm1617, %v1928
          %2015 = vst.msk [vmem:[%s2003 + $0x2c] sm:$0xf] %vm1617, %v1930
          %2016 = vst.msk [vmem:[%s2003 + $0x30] sm:$0xf] %vm1617, %v1932
          %2017 = vst.msk [vmem:[%s2003 + $0x34] sm:$0xf] %vm1617, %v1934
          %2018 = vst.msk [vmem:[%s2003 + $0x38] sm:$0xf] %vm1617, %v1936
          %2019 = vst.msk [vmem:[%s2003 + $0x3c] sm:$0xf] %vm1617, %v1938
          %2020 = vst.msk [vmem:[%s2003 + $0x40] sm:$0xf] %vm1617, %v1940
          %2021 = vst.msk [vmem:[%s2003 + $0x44] sm:$0xf] %vm1617, %v1942
          %2022 = vst.msk [vmem:[%s2003 + $0x48] sm:$0xf] %vm1617, %v1944
          %2023 = vst.msk [vmem:[%s2003 + $0x4c] sm:$0xf] %vm1617, %v1946
          %2024 = vst.msk [vmem:[%s2003 + $0x50] sm:$0xf] %vm1617, %v1948
          %2025 = vst.msk [vmem:[%s2003 + $0x54] sm:$0xf] %vm1617, %v1950
          %2026 = vst.msk [vmem:[%s2003 + $0x58] sm:$0xf] %vm1617, %v1952
          %2027 = vst.msk [vmem:[%s2003 + $0x5c] sm:$0xf] %vm1617, %v1954
          %2028 = vst.msk [vmem:[%s2003 + $0x60] sm:$0xf] %vm1617, %v1956
          %2029 = vst.msk [vmem:[%s2003 + $0x64] sm:$0xf] %vm1617, %v1958
          %2030 = vst.msk [vmem:[%s2003 + $0x68] sm:$0xf] %vm1617, %v1960
          %2031 = vst.msk [vmem:[%s2003 + $0x6c] sm:$0xf] %vm1617, %v1962
          %2032 = vst.msk [vmem:[%s2003 + $0x70] sm:$0xf] %vm1617, %v1964
          %2033 = vst.msk [vmem:[%s2003 + $0x74] sm:$0xf] %vm1617, %v1966
          %2034 = vst.msk [vmem:[%s2003 + $0x78] sm:$0xf] %vm1617, %v1968
          %2035 = vst.msk [vmem:[%s2003 + $0x7c] sm:$0xf] %vm1617, %v1970
        $region92: #{tpu_custom_call.1} parent=63 // pred_fallthru
          _
        %v2036 = vld [vmem:[%s456] sm:$0xff]
        %v2037 = vld [vmem:[%s456 + $0x8] sm:$0xff]
        %v2038 = vld [vmem:[%s456 + $0x10] sm:$0xff]
        %v2039 = vld [vmem:[%s456 + $0x18] sm:$0xff]
        %v2040 = vld [vmem:[%s456 + $0x20] sm:$0xff]
        %v2041 = vld [vmem:[%s456 + $0x28] sm:$0xff]
        %v2042 = vld [vmem:[%s456 + $0x30] sm:$0xff]
        %v2043 = vld [vmem:[%s456 + $0x38] sm:$0xff]
        %v2044 = vld [vmem:[%s456 + $0x40] sm:$0xff]
        %v2045 = vld [vmem:[%s456 + $0x48] sm:$0xff]
        %v2046 = vld [vmem:[%s456 + $0x50] sm:$0xff]
        %v2047 = vld [vmem:[%s456 + $0x58] sm:$0xff]
        %v2048 = vld [vmem:[%s456 + $0x60] sm:$0xff]
        %v2049 = vld [vmem:[%s456 + $0x68] sm:$0xff]
        %v2050 = vld [vmem:[%s456 + $0x70] sm:$0xff]
        %v2051 = vld [vmem:[%s456 + $0x78] sm:$0xff]
        %2052 = vadd.xlane.f32.xlu0 %v2036
        %v2053 = vpop.xlane.xlu0 %2052
        %2054 = vadd.xlane.f32.xlu0 %v2037
        %v2055 = vpop.xlane.xlu0 %2054
        %2056 = vadd.xlane.f32.xlu0 %v2038
        %v2057 = vpop.xlane.xlu0 %2056
        %2058 = vadd.xlane.f32.xlu0 %v2039
        %v2059 = vpop.xlane.xlu0 %2058
        %2060 = vadd.xlane.f32.xlu0 %v2040
        %v2061 = vpop.xlane.xlu0 %2060
        %2062 = vadd.xlane.f32.xlu0 %v2041
        %v2063 = vpop.xlane.xlu0 %2062
        %2064 = vadd.xlane.f32.xlu0 %v2042
        %v2065 = vpop.xlane.xlu0 %2064
        %2066 = vadd.xlane.f32.xlu0 %v2043
        %v2067 = vpop.xlane.xlu0 %2066
        %2068 = vadd.xlane.f32.xlu0 %v2044
        %v2069 = vpop.xlane.xlu0 %2068
        %2070 = vadd.xlane.f32.xlu0 %v2045
        %v2071 = vpop.xlane.xlu0 %2070
        %2072 = vadd.xlane.f32.xlu0 %v2046
        %v2073 = vpop.xlane.xlu0 %2072
        %2074 = vadd.xlane.f32.xlu0 %v2047
        %v2075 = vpop.xlane.xlu0 %2074
        %2076 = vadd.xlane.f32.xlu0 %v2048
        %v2077 = vpop.xlane.xlu0 %2076
        %2078 = vadd.xlane.f32.xlu0 %v2049
        %v2079 = vpop.xlane.xlu0 %2078
        %2080 = vadd.xlane.f32.xlu0 %v2050
        %v2081 = vpop.xlane.xlu0 %2080
        %2082 = vadd.xlane.f32.xlu0 %v2051
        %v2083 = vpop.xlane.xlu0 %2082
        %v2084 = vrcp.pop 128.0
        %v2085 = vmul.f32 128.0, %v2084
        %v2086 = vsub.f32 1.0, %v2085
        %v2087 = vmul.f32 %v2084, %v2086
        %v2088 = vadd.f32 %v2084, %v2087
        %vm2089 = vweird.f32 %v2084
        %v2090 = vsel %vm2089, %v2084, %v2088
        %v2091 = vmul.f32 %v2053, %v2090
        %v2092 = vmul.f32 %v2055, %v2090
        %v2093 = vmul.f32 %v2057, %v2090
        %v2094 = vmul.f32 %v2059, %v2090
        %v2095 = vmul.f32 %v2061, %v2090
        %v2096 = vmul.f32 %v2063, %v2090
        %v2097 = vmul.f32 %v2065, %v2090
        %v2098 = vmul.f32 %v2067, %v2090
        %v2099 = vmul.f32 %v2069, %v2090
        %v2100 = vmul.f32 %v2071, %v2090
        %v2101 = vmul.f32 %v2073, %v2090
        %v2102 = vmul.f32 %v2075, %v2090
        %v2103 = vmul.f32 %v2077, %v2090
        %v2104 = vmul.f32 %v2079, %v2090
        %v2105 = vmul.f32 %v2081, %v2090
        %v2106 = vmul.f32 %v2083, %v2090
        %v2107 = vsub.f32 %v2036, %v2091
        %v2108 = vsub.f32 %v2037, %v2092
        %v2109 = vsub.f32 %v2038, %v2093
        %v2110 = vsub.f32 %v2039, %v2094
        %v2111 = vsub.f32 %v2040, %v2095
        %v2112 = vsub.f32 %v2041, %v2096
        %v2113 = vsub.f32 %v2042, %v2097
        %v2114 = vsub.f32 %v2043, %v2098
        %v2115 = vsub.f32 %v2044, %v2099
        %v2116 = vsub.f32 %v2045, %v2100
        %v2117 = vsub.f32 %v2046, %v2101
        %v2118 = vsub.f32 %v2047, %v2102
        %v2119 = vsub.f32 %v2048, %v2103
        %v2120 = vsub.f32 %v2049, %v2104
        %v2121 = vsub.f32 %v2050, %v2105
        %v2122 = vsub.f32 %v2051, %v2106
        %v2123 = vmul.f32 %v2107, %v2107
        %v2124 = vmul.f32 %v2108, %v2108
        %v2125 = vmul.f32 %v2109, %v2109
        %v2126 = vmul.f32 %v2110, %v2110
        %v2127 = vmul.f32 %v2111, %v2111
        %v2128 = vmul.f32 %v2112, %v2112
        %v2129 = vmul.f32 %v2113, %v2113
        %v2130 = vmul.f32 %v2114, %v2114
        %v2131 = vmul.f32 %v2115, %v2115
        %v2132 = vmul.f32 %v2116, %v2116
        %v2133 = vmul.f32 %v2117, %v2117
        %v2134 = vmul.f32 %v2118, %v2118
        %v2135 = vmul.f32 %v2119, %v2119
        %v2136 = vmul.f32 %v2120, %v2120
        %v2137 = vmul.f32 %v2121, %v2121
        %v2138 = vmul.f32 %v2122, %v2122
        %2139 = vadd.xlane.f32.xlu0 %v2123
        %v2140 = vpop.xlane.xlu0 %2139
        %2141 = vadd.xlane.f32.xlu0 %v2124
        %v2142 = vpop.xlane.xlu0 %2141
        %2143 = vadd.xlane.f32.xlu0 %v2125
        %v2144 = vpop.xlane.xlu0 %2143
        %2145 = vadd.xlane.f32.xlu0 %v2126
        %v2146 = vpop.xlane.xlu0 %2145
        %2147 = vadd.xlane.f32.xlu0 %v2127
        %v2148 = vpop.xlane.xlu0 %2147
        %2149 = vadd.xlane.f32.xlu0 %v2128
        %v2150 = vpop.xlane.xlu0 %2149
        %2151 = vadd.xlane.f32.xlu0 %v2129
        %v2152 = vpop.xlane.xlu0 %2151
        %2153 = vadd.xlane.f32.xlu0 %v2130
        %v2154 = vpop.xlane.xlu0 %2153
        %2155 = vadd.xlane.f32.xlu0 %v2131
        %v2156 = vpop.xlane.xlu0 %2155
        %2157 = vadd.xlane.f32.xlu0 %v2132
        %v2158 = vpop.xlane.xlu0 %2157
        %2159 = vadd.xlane.f32.xlu0 %v2133
        %v2160 = vpop.xlane.xlu0 %2159
        %2161 = vadd.xlane.f32.xlu0 %v2134
        %v2162 = vpop.xlane.xlu0 %2161
        %2163 = vadd.xlane.f32.xlu0 %v2135
        %v2164 = vpop.xlane.xlu0 %2163
        %2165 = vadd.xlane.f32.xlu0 %v2136
        %v2166 = vpop.xlane.xlu0 %2165
        %2167 = vadd.xlane.f32.xlu0 %v2137
        %v2168 = vpop.xlane.xlu0 %2167
        %2169 = vadd.xlane.f32.xlu0 %v2138
        %v2170 = vpop.xlane.xlu0 %2169
        %v2171 = vmul.f32 %v2140, %v2090
        %v2172 = vmul.f32 %v2142, %v2090
        %v2173 = vmul.f32 %v2144, %v2090
        %v2174 = vmul.f32 %v2146, %v2090
        %v2175 = vmul.f32 %v2148, %v2090
        %v2176 = vmul.f32 %v2150, %v2090
        %v2177 = vmul.f32 %v2152, %v2090
        %v2178 = vmul.f32 %v2154, %v2090
        %v2179 = vmul.f32 %v2156, %v2090
        %v2180 = vmul.f32 %v2158, %v2090
        %v2181 = vmul.f32 %v2160, %v2090
        %v2182 = vmul.f32 %v2162, %v2090
        %v2183 = vmul.f32 %v2164, %v2090
        %v2184 = vmul.f32 %v2166, %v2090
        %v2185 = vmul.f32 %v2168, %v2090
        %v2186 = vmul.f32 %v2170, %v2090
        %v2187 = vadd.f32 %v2171, 1e-05
        %v2188 = vadd.f32 %v2172, 1e-05
        %v2189 = vadd.f32 %v2173, 1e-05
        %v2190 = vadd.f32 %v2174, 1e-05
        %v2191 = vadd.f32 %v2175, 1e-05
        %v2192 = vadd.f32 %v2176, 1e-05
        %v2193 = vadd.f32 %v2177, 1e-05
        %v2194 = vadd.f32 %v2178, 1e-05
        %v2195 = vadd.f32 %v2179, 1e-05
        %v2196 = vadd.f32 %v2180, 1e-05
        %v2197 = vadd.f32 %v2181, 1e-05
        %v2198 = vadd.f32 %v2182, 1e-05
        %v2199 = vadd.f32 %v2183, 1e-05
        %v2200 = vadd.f32 %v2184, 1e-05
        %v2201 = vadd.f32 %v2185, 1e-05
        %v2202 = vadd.f32 %v2186, 1e-05
        %v2203 = vrsqrt.pop %v2187
        %v2204 = vmul.f32 %v2203, %v2187
        %v2205 = vmul.f32 %v2204, %v2203
        %v2206 = vmul.f32 0.5, %v2205
        %v2207 = vsub.f32 1.5, %v2206
        %v2208 = vmul.f32 %v2203, %v2207
        %vm2209 = vweird.f32 %v2187
        %vm2210 = vweird.f32 %v2203
        %vm2211 = vmor %vm2209, %vm2210
        %v2212 = vsel %vm2211, %v2203, %v2208
        %v2213 = vrsqrt.pop %v2188
        %v2214 = vmul.f32 %v2213, %v2188
        %v2215 = vmul.f32 %v2214, %v2213
        %v2216 = vmul.f32 0.5, %v2215
        %v2217 = vsub.f32 1.5, %v2216
        %v2218 = vmul.f32 %v2213, %v2217
        %vm2219 = vweird.f32 %v2188
        %vm2220 = vweird.f32 %v2213
        %vm2221 = vmor %vm2219, %vm2220
        %v2222 = vsel %vm2221, %v2213, %v2218
        %v2223 = vrsqrt.pop %v2189
        %v2224 = vmul.f32 %v2223, %v2189
        %v2225 = vmul.f32 %v2224, %v2223
        %v2226 = vmul.f32 0.5, %v2225
        %v2227 = vsub.f32 1.5, %v2226
        %v2228 = vmul.f32 %v2223, %v2227
        %vm2229 = vweird.f32 %v2189
        %vm2230 = vweird.f32 %v2223
        %vm2231 = vmor %vm2229, %vm2230
        %v2232 = vsel %vm2231, %v2223, %v2228
        %v2233 = vrsqrt.pop %v2190
        %v2234 = vmul.f32 %v2233, %v2190
        %v2235 = vmul.f32 %v2234, %v2233
        %v2236 = vmul.f32 0.5, %v2235
        %v2237 = vsub.f32 1.5, %v2236
        %v2238 = vmul.f32 %v2233, %v2237
        %vm2239 = vweird.f32 %v2190
        %vm2240 = vweird.f32 %v2233
        %vm2241 = vmor %vm2239, %vm2240
        %v2242 = vsel %vm2241, %v2233, %v2238
        %v2243 = vrsqrt.pop %v2191
        %v2244 = vmul.f32 %v2243, %v2191
        %v2245 = vmul.f32 %v2244, %v2243
        %v2246 = vmul.f32 0.5, %v2245
        %v2247 = vsub.f32 1.5, %v2246
        %v2248 = vmul.f32 %v2243, %v2247
        %vm2249 = vweird.f32 %v2191
        %vm2250 = vweird.f32 %v2243
        %vm2251 = vmor %vm2249, %vm2250
        %v2252 = vsel %vm2251, %v2243, %v2248
        %v2253 = vrsqrt.pop %v2192
        %v2254 = vmul.f32 %v2253, %v2192
        %v2255 = vmul.f32 %v2254, %v2253
        %v2256 = vmul.f32 0.5, %v2255
        %v2257 = vsub.f32 1.5, %v2256
        %v2258 = vmul.f32 %v2253, %v2257
        %vm2259 = vweird.f32 %v2192
        %vm2260 = vweird.f32 %v2253
        %vm2261 = vmor %vm2259, %vm2260
        %v2262 = vsel %vm2261, %v2253, %v2258
        %v2263 = vrsqrt.pop %v2193
        %v2264 = vmul.f32 %v2263, %v2193
        %v2265 = vmul.f32 %v2264, %v2263
        %v2266 = vmul.f32 0.5, %v2265
        %v2267 = vsub.f32 1.5, %v2266
        %v2268 = vmul.f32 %v2263, %v2267
        %vm2269 = vweird.f32 %v2193
        %vm2270 = vweird.f32 %v2263
        %vm2271 = vmor %vm2269, %vm2270
        %v2272 = vsel %vm2271, %v2263, %v2268
        %v2273 = vrsqrt.pop %v2194
        %v2274 = vmul.f32 %v2273, %v2194
        %v2275 = vmul.f32 %v2274, %v2273
        %v2276 = vmul.f32 0.5, %v2275
        %v2277 = vsub.f32 1.5, %v2276
        %v2278 = vmul.f32 %v2273, %v2277
        %vm2279 = vweird.f32 %v2194
        %vm2280 = vweird.f32 %v2273
        %vm2281 = vmor %vm2279, %vm2280
        %v2282 = vsel %vm2281, %v2273, %v2278
        %v2283 = vrsqrt.pop %v2195
        %v2284 = vmul.f32 %v2283, %v2195
        %v2285 = vmul.f32 %v2284, %v2283
        %v2286 = vmul.f32 0.5, %v2285
        %v2287 = vsub.f32 1.5, %v2286
        %v2288 = vmul.f32 %v2283, %v2287
        %vm2289 = vweird.f32 %v2195
        %vm2290 = vweird.f32 %v2283
        %vm2291 = vmor %vm2289, %vm2290
        %v2292 = vsel %vm2291, %v2283, %v2288
        %v2293 = vrsqrt.pop %v2196
        %v2294 = vmul.f32 %v2293, %v2196
        %v2295 = vmul.f32 %v2294, %v2293
        %v2296 = vmul.f32 0.5, %v2295
        %v2297 = vsub.f32 1.5, %v2296
        %v2298 = vmul.f32 %v2293, %v2297
        %vm2299 = vweird.f32 %v2196
        %vm2300 = vweird.f32 %v2293
        %vm2301 = vmor %vm2299, %vm2300
        %v2302 = vsel %vm2301, %v2293, %v2298
        %v2303 = vrsqrt.pop %v2197
        %v2304 = vmul.f32 %v2303, %v2197
        %v2305 = vmul.f32 %v2304, %v2303
        %v2306 = vmul.f32 0.5, %v2305
        %v2307 = vsub.f32 1.5, %v2306
        %v2308 = vmul.f32 %v2303, %v2307
        %vm2309 = vweird.f32 %v2197
        %vm2310 = vweird.f32 %v2303
        %vm2311 = vmor %vm2309, %vm2310
        %v2312 = vsel %vm2311, %v2303, %v2308
        %v2313 = vrsqrt.pop %v2198
        %v2314 = vmul.f32 %v2313, %v2198
        %v2315 = vmul.f32 %v2314, %v2313
        %v2316 = vmul.f32 0.5, %v2315
        %v2317 = vsub.f32 1.5, %v2316
        %v2318 = vmul.f32 %v2313, %v2317
        %vm2319 = vweird.f32 %v2198
        %vm2320 = vweird.f32 %v2313
        %vm2321 = vmor %vm2319, %vm2320
        %v2322 = vsel %vm2321, %v2313, %v2318
        %v2323 = vrsqrt.pop %v2199
        %v2324 = vmul.f32 %v2323, %v2199
        %v2325 = vmul.f32 %v2324, %v2323
        %v2326 = vmul.f32 0.5, %v2325
        %v2327 = vsub.f32 1.5, %v2326
        %v2328 = vmul.f32 %v2323, %v2327
        %vm2329 = vweird.f32 %v2199
        %vm2330 = vweird.f32 %v2323
        %vm2331 = vmor %vm2329, %vm2330
        %v2332 = vsel %vm2331, %v2323, %v2328
        %v2333 = vrsqrt.pop %v2200
        %v2334 = vmul.f32 %v2333, %v2200
        %v2335 = vmul.f32 %v2334, %v2333
        %v2336 = vmul.f32 0.5, %v2335
        %v2337 = vsub.f32 1.5, %v2336
        %v2338 = vmul.f32 %v2333, %v2337
        %vm2339 = vweird.f32 %v2200
        %vm2340 = vweird.f32 %v2333
        %vm2341 = vmor %vm2339, %vm2340
        %v2342 = vsel %vm2341, %v2333, %v2338
        %v2343 = vrsqrt.pop %v2201
        %v2344 = vmul.f32 %v2343, %v2201
        %v2345 = vmul.f32 %v2344, %v2343
        %v2346 = vmul.f32 0.5, %v2345
        %v2347 = vsub.f32 1.5, %v2346
        %v2348 = vmul.f32 %v2343, %v2347
        %vm2349 = vweird.f32 %v2201
        %vm2350 = vweird.f32 %v2343
        %vm2351 = vmor %vm2349, %vm2350
        %v2352 = vsel %vm2351, %v2343, %v2348
        %v2353 = vrsqrt.pop %v2202
        %v2354 = vmul.f32 %v2353, %v2202
        %v2355 = vmul.f32 %v2354, %v2353
        %v2356 = vmul.f32 0.5, %v2355
        %v2357 = vsub.f32 1.5, %v2356
        %v2358 = vmul.f32 %v2353, %v2357
        %vm2359 = vweird.f32 %v2202
        %vm2360 = vweird.f32 %v2353
        %vm2361 = vmor %vm2359, %vm2360
        %v2362 = vsel %vm2361, %v2353, %v2358
        %v2363 = vmul.f32 %v2107, %v2212
        %v2364 = vmul.f32 %v2108, %v2222
        %v2365 = vmul.f32 %v2109, %v2232
        %v2366 = vmul.f32 %v2110, %v2242
        %v2367 = vmul.f32 %v2111, %v2252
        %v2368 = vmul.f32 %v2112, %v2262
        %v2369 = vmul.f32 %v2113, %v2272
        %v2370 = vmul.f32 %v2114, %v2282
        %v2371 = vmul.f32 %v2115, %v2292
        %v2372 = vmul.f32 %v2116, %v2302
        %v2373 = vmul.f32 %v2117, %v2312
        %v2374 = vmul.f32 %v2118, %v2322
        %v2375 = vmul.f32 %v2119, %v2332
        %v2376 = vmul.f32 %v2120, %v2342
        %v2377 = vmul.f32 %v2121, %v2352
        %v2378 = vmul.f32 %v2122, %v2362
        %v2379 = vld [vmem:[%s2] sm:$0x1]
        %v2381 = vperm.slane %v2379, 0
        %v2383 = vmul.f32 %v2363, %v2381
        %v2384 = vmul.f32 %v2364, %v2381
        %v2385 = vmul.f32 %v2365, %v2381
        %v2386 = vmul.f32 %v2366, %v2381
        %v2387 = vmul.f32 %v2367, %v2381
        %v2388 = vmul.f32 %v2368, %v2381
        %v2389 = vmul.f32 %v2369, %v2381
        %v2390 = vmul.f32 %v2370, %v2381
        %v2391 = vmul.f32 %v2371, %v2381
        %v2392 = vmul.f32 %v2372, %v2381
        %v2393 = vmul.f32 %v2373, %v2381
        %v2394 = vmul.f32 %v2374, %v2381
        %v2395 = vmul.f32 %v2375, %v2381
        %v2396 = vmul.f32 %v2376, %v2381
        %v2397 = vmul.f32 %v2377, %v2381
        %v2398 = vmul.f32 %v2378, %v2381
        %v2399 = vld [vmem:[#allocation10] sm:$0x1]
        %v2401 = vperm.slane %v2399, 0
        %v2403 = vadd.f32 %v2383, %v2401
        %v2404 = vadd.f32 %v2384, %v2401
        %v2405 = vadd.f32 %v2385, %v2401
        %v2406 = vadd.f32 %v2386, %v2401
        %v2407 = vadd.f32 %v2387, %v2401
        %v2408 = vadd.f32 %v2388, %v2401
        %v2409 = vadd.f32 %v2389, %v2401
        %v2410 = vadd.f32 %v2390, %v2401
        %v2411 = vadd.f32 %v2391, %v2401
        %v2412 = vadd.f32 %v2392, %v2401
        %v2413 = vadd.f32 %v2393, %v2401
        %v2414 = vadd.f32 %v2394, %v2401
        %v2415 = vadd.f32 %v2395, %v2401
        %v2416 = vadd.f32 %v2396, %v2401
        %v2417 = vadd.f32 %v2397, %v2401
        %v2418 = vadd.f32 %v2398, %v2401
        %v2419 = vpack.c.bf16 %v2404, %v2403
        %v2420 = vpack.c.bf16 %v2406, %v2405
        %v2421 = vpack.c.bf16 %v2408, %v2407
        %v2422 = vpack.c.bf16 %v2410, %v2409
        %v2423 = vpack.c.bf16 %v2412, %v2411
        %v2424 = vpack.c.bf16 %v2414, %v2413
        %v2425 = vpack.c.bf16 %v2416, %v2415
        %v2426 = vpack.c.bf16 %v2418, %v2417
        %v2427 = vld [vmem:[#allocation11] sm:$0xf]
        %v2428 = vld [vmem:[#allocation11 + $0x4] sm:$0xf]
        %v2429 = vld [vmem:[#allocation11 + $0x8] sm:$0xf]
        %v2430 = vld [vmem:[#allocation11 + $0xc] sm:$0xf]
        %v2431 = vld [vmem:[#allocation11 + $0x10] sm:$0xf]
        %v2432 = vld [vmem:[#allocation11 + $0x14] sm:$0xf]
        %v2433 = vld [vmem:[#allocation11 + $0x18] sm:$0xf]
        %v2434 = vld [vmem:[#allocation11 + $0x1c] sm:$0xf]
        %v2435 = vld [vmem:[#allocation11 + $0x20] sm:$0xf]
        %v2436 = vld [vmem:[#allocation11 + $0x24] sm:$0xf]
        %v2437 = vld [vmem:[#allocation11 + $0x28] sm:$0xf]
        %v2438 = vld [vmem:[#allocation11 + $0x2c] sm:$0xf]
        %v2439 = vld [vmem:[#allocation11 + $0x30] sm:$0xf]
        %v2440 = vld [vmem:[#allocation11 + $0x34] sm:$0xf]
        %v2441 = vld [vmem:[#allocation11 + $0x38] sm:$0xf]
        %v2442 = vld [vmem:[#allocation11 + $0x3c] sm:$0xf]
        %v2443 = vld [vmem:[%s5] sm:$0x1]
        %v2445 = vperm.slane %v2443, 0
        %v2463 = vunpack.c.l.b16 %v2427
        %v2464 = vunpack.c.l.b16 %v2428
        %v2465 = vunpack.c.l.b16 %v2429
        %v2466 = vunpack.c.l.b16 %v2430
        %v2467 = vunpack.c.l.b16 %v2431
        %v2468 = vunpack.c.l.b16 %v2432
        %v2469 = vunpack.c.l.b16 %v2433
        %v2470 = vunpack.c.l.b16 %v2434
        %v2471 = vunpack.c.l.b16 %v2435
        %v2472 = vunpack.c.l.b16 %v2436
        %v2473 = vunpack.c.l.b16 %v2437
        %v2474 = vunpack.c.l.b16 %v2438
        %v2475 = vunpack.c.l.b16 %v2439
        %v2476 = vunpack.c.l.b16 %v2440
        %v2477 = vunpack.c.l.b16 %v2441
        %v2478 = vunpack.c.l.b16 %v2442
        %v2479 = vpack.c.b16 %v2464, %v2463
        %v2480 = vpack.c.b16 %v2466, %v2465
        %v2481 = vpack.c.b16 %v2468, %v2467
        %v2482 = vpack.c.b16 %v2470, %v2469
        %v2483 = vpack.c.b16 %v2472, %v2471
        %v2484 = vpack.c.b16 %v2474, %v2473
        %v2485 = vpack.c.b16 %v2476, %v2475
        %v2486 = vpack.c.b16 %v2478, %v2477
        %2495 = vmatpush.bf16.msra.mxu0 %v2486
        %2496 = vmatpush.bf16.msra.mxu0 %v2485
        %2497 = vmatpush.bf16.msra.mxu0 %v2484
        %2498 = vmatpush.bf16.msra.mxu0 %v2483
        %2499 = vmatpush.bf16.msra.mxu0 %v2482
        %2500 = vmatpush.bf16.msra.mxu0 %v2481
        %2501 = vmatpush.bf16.msra.mxu0 %v2480
        %2502 = vmatpush.bf16.msra.mxu0 %v2479
        %2503 = vmatmul.bf16.gmra.mxu0 %v2419
        %v2504 = vpop.f32.mrf.mxu0
        %v2505 = vadd.f32 %v2445, %v2504
        %v2506 = vpop.f32.mrf.mxu0
        %v2507 = vadd.f32 %v2445, %v2506
        %2508 = vmatmul.bf16.gmra.mxu0 %v2420
        %v2509 = vpop.f32.mrf.mxu0
        %v2510 = vadd.f32 %v2445, %v2509
        %v2511 = vpop.f32.mrf.mxu0
        %v2512 = vadd.f32 %v2445, %v2511
        %2513 = vmatmul.bf16.gmra.mxu0 %v2421
        %v2514 = vpop.f32.mrf.mxu0
        %v2515 = vadd.f32 %v2445, %v2514
        %v2516 = vpop.f32.mrf.mxu0
        %v2517 = vadd.f32 %v2445, %v2516
        %2518 = vmatmul.bf16.gmra.mxu0 %v2422
        %v2519 = vpop.f32.mrf.mxu0
        %v2520 = vadd.f32 %v2445, %v2519
        %v2521 = vpop.f32.mrf.mxu0
        %v2522 = vadd.f32 %v2445, %v2521
        %2523 = vmatmul.bf16.gmra.mxu0 %v2423
        %v2524 = vpop.f32.mrf.mxu0
        %v2525 = vadd.f32 %v2445, %v2524
        %v2526 = vpop.f32.mrf.mxu0
        %v2527 = vadd.f32 %v2445, %v2526
        %2528 = vmatmul.bf16.gmra.mxu0 %v2424
        %v2529 = vpop.f32.mrf.mxu0
        %v2530 = vadd.f32 %v2445, %v2529
        %v2531 = vpop.f32.mrf.mxu0
        %v2532 = vadd.f32 %v2445, %v2531
        %2533 = vmatmul.bf16.gmra.mxu0 %v2425
        %v2534 = vpop.f32.mrf.mxu0
        %v2535 = vadd.f32 %v2445, %v2534
        %v2536 = vpop.f32.mrf.mxu0
        %v2537 = vadd.f32 %v2445, %v2536
        %2538 = vmatmul.bf16.gmra.mxu0 %v2426
        %v2539 = vpop.f32.mrf.mxu0
        %v2540 = vadd.f32 %v2445, %v2539
        %v2541 = vpop.f32.mrf.mxu0
        %v2542 = vadd.f32 %v2445, %v2541
        %2543 = vdwg.mxu0
        %v2544 = vmul.f32 %v2505, 0.125
        %v2545 = vmul.f32 %v2507, 0.125
        %v2546 = vmul.f32 %v2510, 0.125
        %v2547 = vmul.f32 %v2512, 0.125
        %v2548 = vmul.f32 %v2515, 0.125
        %v2549 = vmul.f32 %v2517, 0.125
        %v2550 = vmul.f32 %v2520, 0.125
        %v2551 = vmul.f32 %v2522, 0.125
        %v2552 = vmul.f32 %v2525, 0.125
        %v2553 = vmul.f32 %v2527, 0.125
        %v2554 = vmul.f32 %v2530, 0.125
        %v2555 = vmul.f32 %v2532, 0.125
        %v2556 = vmul.f32 %v2535, 0.125
        %v2557 = vmul.f32 %v2537, 0.125
        %v2558 = vmul.f32 %v2540, 0.125
        %v2559 = vmul.f32 %v2542, 0.125
        %v2560 = vpack.c.bf16 %v2544, %v2544
        %v2561 = vpack.c.bf16 %v2545, %v2545
        %v2562 = vpack.c.bf16 %v2546, %v2546
        %v2563 = vpack.c.bf16 %v2547, %v2547
        %v2564 = vpack.c.bf16 %v2548, %v2548
        %v2565 = vpack.c.bf16 %v2549, %v2549
        %v2566 = vpack.c.bf16 %v2550, %v2550
        %v2567 = vpack.c.bf16 %v2551, %v2551
        %v2568 = vpack.c.bf16 %v2552, %v2552
        %v2569 = vpack.c.bf16 %v2553, %v2553
        %v2570 = vpack.c.bf16 %v2554, %v2554
        %v2571 = vpack.c.bf16 %v2555, %v2555
        %v2572 = vpack.c.bf16 %v2556, %v2556
        %v2573 = vpack.c.bf16 %v2557, %v2557
        %v2574 = vpack.c.bf16 %v2558, %v2558
        %v2575 = vpack.c.bf16 %v2559, %v2559
        %vm2576 = vcmask 519168
        %2577 = vst.msk [vmem:[#allocation4] sm:$0xf] %vm2576, %v2560
        %2578 = vst.msk [vmem:[#allocation4 + $0x4] sm:$0xf] %vm2576, %v2561
        %2579 = vst.msk [vmem:[#allocation4 + $0x8] sm:$0xf] %vm2576, %v2562
        %2580 = vst.msk [vmem:[#allocation4 + $0xc] sm:$0xf] %vm2576, %v2563
        %2581 = vst.msk [vmem:[#allocation4 + $0x10] sm:$0xf] %vm2576, %v2564
        %2582 = vst.msk [vmem:[#allocation4 + $0x14] sm:$0xf] %vm2576, %v2565
        %2583 = vst.msk [vmem:[#allocation4 + $0x18] sm:$0xf] %vm2576, %v2566
        %2584 = vst.msk [vmem:[#allocation4 + $0x1c] sm:$0xf] %vm2576, %v2567
        %2585 = vst.msk [vmem:[#allocation4 + $0x20] sm:$0xf] %vm2576, %v2568
        %2586 = vst.msk [vmem:[#allocation4 + $0x24] sm:$0xf] %vm2576, %v2569
        %2587 = vst.msk [vmem:[#allocation4 + $0x28] sm:$0xf] %vm2576, %v2570
        %2588 = vst.msk [vmem:[#allocation4 + $0x2c] sm:$0xf] %vm2576, %v2571
        %2589 = vst.msk [vmem:[#allocation4 + $0x30] sm:$0xf] %vm2576, %v2572
        %2590 = vst.msk [vmem:[#allocation4 + $0x34] sm:$0xf] %vm2576, %v2573
        %2591 = vst.msk [vmem:[#allocation4 + $0x38] sm:$0xf] %vm2576, %v2574
        %2592 = vst.msk [vmem:[#allocation4 + $0x3c] sm:$0xf] %vm2576, %v2575
        %2609 = vrot.lane.b32.xlu0 %v2560, 64
        %v2610 = vpop.permute.xlu0 %2609
        %2611 = vrot.lane.b32.xlu0 %v2561, 64
        %v2612 = vpop.permute.xlu0 %2611
        %2613 = vrot.lane.b32.xlu0 %v2562, 64
        %v2614 = vpop.permute.xlu0 %2613
        %2615 = vrot.lane.b32.xlu0 %v2563, 64
        %v2616 = vpop.permute.xlu0 %2615
        %2617 = vrot.lane.b32.xlu0 %v2564, 64
        %v2618 = vpop.permute.xlu0 %2617
        %2619 = vrot.lane.b32.xlu0 %v2565, 64
        %v2620 = vpop.permute.xlu0 %2619
        %2621 = vrot.lane.b32.xlu0 %v2566, 64
        %v2622 = vpop.permute.xlu0 %2621
        %2623 = vrot.lane.b32.xlu0 %v2567, 64
        %v2624 = vpop.permute.xlu0 %2623
        %2625 = vrot.lane.b32.xlu0 %v2568, 64
        %v2626 = vpop.permute.xlu0 %2625
        %2627 = vrot.lane.b32.xlu0 %v2569, 64
        %v2628 = vpop.permute.xlu0 %2627
        %2629 = vrot.lane.b32.xlu0 %v2570, 64
        %v2630 = vpop.permute.xlu0 %2629
        %2631 = vrot.lane.b32.xlu0 %v2571, 64
        %v2632 = vpop.permute.xlu0 %2631
        %2633 = vrot.lane.b32.xlu0 %v2572, 64
        %v2634 = vpop.permute.xlu0 %2633
        %2635 = vrot.lane.b32.xlu0 %v2573, 64
        %v2636 = vpop.permute.xlu0 %2635
        %2637 = vrot.lane.b32.xlu0 %v2574, 64
        %v2638 = vpop.permute.xlu0 %2637
        %2639 = vrot.lane.b32.xlu0 %v2575, 64
        %v2640 = vpop.permute.xlu0 %2639
        %s2657 = scalar_lea.vmem [#allocation4], 64
        %2658 = vst.msk [vmem:[%s2657] sm:$0xf] %vm2576, %v2610
        %2659 = vst.msk [vmem:[%s2657 + $0x4] sm:$0xf] %vm2576, %v2612
        %2660 = vst.msk [vmem:[%s2657 + $0x8] sm:$0xf] %vm2576, %v2614
        %2661 = vst.msk [vmem:[%s2657 + $0xc] sm:$0xf] %vm2576, %v2616
        %2662 = vst.msk [vmem:[%s2657 + $0x10] sm:$0xf] %vm2576, %v2618
        %2663 = vst.msk [vmem:[%s2657 + $0x14] sm:$0xf] %vm2576, %v2620
        %2664 = vst.msk [vmem:[%s2657 + $0x18] sm:$0xf] %vm2576, %v2622
        %2665 = vst.msk [vmem:[%s2657 + $0x1c] sm:$0xf] %vm2576, %v2624
        %2666 = vst.msk [vmem:[%s2657 + $0x20] sm:$0xf] %vm2576, %v2626
        %2667 = vst.msk [vmem:[%s2657 + $0x24] sm:$0xf] %vm2576, %v2628
        %2668 = vst.msk [vmem:[%s2657 + $0x28] sm:$0xf] %vm2576, %v2630
        %2669 = vst.msk [vmem:[%s2657 + $0x2c] sm:$0xf] %vm2576, %v2632
        %2670 = vst.msk [vmem:[%s2657 + $0x30] sm:$0xf] %vm2576, %v2634
        %2671 = vst.msk [vmem:[%s2657 + $0x34] sm:$0xf] %vm2576, %v2636
        %2672 = vst.msk [vmem:[%s2657 + $0x38] sm:$0xf] %vm2576, %v2638
        %2673 = vst.msk [vmem:[%s2657 + $0x3c] sm:$0xf] %vm2576, %v2640
        %v2674 = vld [vmem:[#allocation4] sm:$0xf]
        %v2675 = vld [vmem:[#allocation4 + $0x4] sm:$0xf]
        %v2676 = vld [vmem:[#allocation4 + $0x8] sm:$0xf]
        %v2677 = vld [vmem:[#allocation4 + $0xc] sm:$0xf]
        %v2678 = vld [vmem:[#allocation4 + $0x10] sm:$0xf]
        %v2679 = vld [vmem:[#allocation4 + $0x14] sm:$0xf]
        %v2680 = vld [vmem:[#allocation4 + $0x18] sm:$0xf]
        %v2681 = vld [vmem:[#allocation4 + $0x1c] sm:$0xf]
        %v2682 = vld [vmem:[#allocation4 + $0x20] sm:$0xf]
        %v2683 = vld [vmem:[#allocation4 + $0x24] sm:$0xf]
        %v2684 = vld [vmem:[#allocation4 + $0x28] sm:$0xf]
        %v2685 = vld [vmem:[#allocation4 + $0x2c] sm:$0xf]
        %v2686 = vld [vmem:[#allocation4 + $0x30] sm:$0xf]
        %v2687 = vld [vmem:[#allocation4 + $0x34] sm:$0xf]
        %v2688 = vld [vmem:[#allocation4 + $0x38] sm:$0xf]
        %v2689 = vld [vmem:[#allocation4 + $0x3c] sm:$0xf]
        %v2690 = vld [vmem:[#allocation4 + $0x40] sm:$0xf]
        %v2691 = vld [vmem:[#allocation4 + $0x44] sm:$0xf]
        %v2692 = vld [vmem:[#allocation4 + $0x48] sm:$0xf]
        %v2693 = vld [vmem:[#allocation4 + $0x4c] sm:$0xf]
        %v2694 = vld [vmem:[#allocation4 + $0x50] sm:$0xf]
        %v2695 = vld [vmem:[#allocation4 + $0x54] sm:$0xf]
        %v2696 = vld [vmem:[#allocation4 + $0x58] sm:$0xf]
        %v2697 = vld [vmem:[#allocation4 + $0x5c] sm:$0xf]
        %v2698 = vld [vmem:[#allocation4 + $0x60] sm:$0xf]
        %v2699 = vld [vmem:[#allocation4 + $0x64] sm:$0xf]
        %v2700 = vld [vmem:[#allocation4 + $0x68] sm:$0xf]
        %v2701 = vld [vmem:[#allocation4 + $0x6c] sm:$0xf]
        %v2702 = vld [vmem:[#allocation4 + $0x70] sm:$0xf]
        %v2703 = vld [vmem:[#allocation4 + $0x74] sm:$0xf]
        %v2704 = vld [vmem:[#allocation4 + $0x78] sm:$0xf]
        %v2705 = vld [vmem:[#allocation4 + $0x7c] sm:$0xf]
        %v2706 = vld [vmem:[#allocation2] sm:$0xf]
        %v2707 = vld [vmem:[#allocation2 + $0x4] sm:$0xf]
        %v2708 = vld [vmem:[#allocation2 + $0x8] sm:$0xf]
        %v2709 = vld [vmem:[#allocation2 + $0xc] sm:$0xf]
        %v2710 = vld [vmem:[#allocation2 + $0x10] sm:$0xf]
        %v2711 = vld [vmem:[#allocation2 + $0x14] sm:$0xf]
        %v2712 = vld [vmem:[#allocation2 + $0x18] sm:$0xf]
        %v2713 = vld [vmem:[#allocation2 + $0x1c] sm:$0xf]
        %v2714 = vld [vmem:[#allocation2 + $0x20] sm:$0xf]
        %v2715 = vld [vmem:[#allocation2 + $0x24] sm:$0xf]
        %v2716 = vld [vmem:[#allocation2 + $0x28] sm:$0xf]
        %v2717 = vld [vmem:[#allocation2 + $0x2c] sm:$0xf]
        %v2718 = vld [vmem:[#allocation2 + $0x30] sm:$0xf]
        %v2719 = vld [vmem:[#allocation2 + $0x34] sm:$0xf]
        %v2720 = vld [vmem:[#allocation2 + $0x38] sm:$0xf]
        %v2721 = vld [vmem:[#allocation2 + $0x3c] sm:$0xf]
        %v2722 = vld [vmem:[#allocation2 + $0x40] sm:$0xf]
        %v2723 = vld [vmem:[#allocation2 + $0x44] sm:$0xf]
        %v2724 = vld [vmem:[#allocation2 + $0x48] sm:$0xf]
        %v2725 = vld [vmem:[#allocation2 + $0x4c] sm:$0xf]
        %v2726 = vld [vmem:[#allocation2 + $0x50] sm:$0xf]
        %v2727 = vld [vmem:[#allocation2 + $0x54] sm:$0xf]
        %v2728 = vld [vmem:[#allocation2 + $0x58] sm:$0xf]
        %v2729 = vld [vmem:[#allocation2 + $0x5c] sm:$0xf]
        %v2730 = vld [vmem:[#allocation2 + $0x60] sm:$0xf]
        %v2731 = vld [vmem:[#allocation2 + $0x64] sm:$0xf]
        %v2732 = vld [vmem:[#allocation2 + $0x68] sm:$0xf]
        %v2733 = vld [vmem:[#allocation2 + $0x6c] sm:$0xf]
        %v2734 = vld [vmem:[#allocation2 + $0x70] sm:$0xf]
        %v2735 = vld [vmem:[#allocation2 + $0x74] sm:$0xf]
        %v2736 = vld [vmem:[#allocation2 + $0x78] sm:$0xf]
        %v2737 = vld [vmem:[#allocation2 + $0x7c] sm:$0xf]
        %v2738 = vld [vmem:[#allocation2 + $0x80] sm:$0xf]
        %v2739 = vld [vmem:[#allocation2 + $0x84] sm:$0xf]
        %v2740 = vld [vmem:[#allocation2 + $0x88] sm:$0xf]
        %v2741 = vld [vmem:[#allocation2 + $0x8c] sm:$0xf]
        %v2742 = vld [vmem:[#allocation2 + $0x90] sm:$0xf]
        %v2743 = vld [vmem:[#allocation2 + $0x94] sm:$0xf]
        %v2744 = vld [vmem:[#allocation2 + $0x98] sm:$0xf]
        %v2745 = vld [vmem:[#allocation2 + $0x9c] sm:$0xf]
        %v2746 = vld [vmem:[#allocation2 + $0xa0] sm:$0xf]
        %v2747 = vld [vmem:[#allocation2 + $0xa4] sm:$0xf]
        %v2748 = vld [vmem:[#allocation2 + $0xa8] sm:$0xf]
        %v2749 = vld [vmem:[#allocation2 + $0xac] sm:$0xf]
        %v2750 = vld [vmem:[#allocation2 + $0xb0] sm:$0xf]
        %v2751 = vld [vmem:[#allocation2 + $0xb4] sm:$0xf]
        %v2752 = vld [vmem:[#allocation2 + $0xb8] sm:$0xf]
        %v2753 = vld [vmem:[#allocation2 + $0xbc] sm:$0xf]
        %v2754 = vld [vmem:[#allocation2 + $0xc0] sm:$0xf]
        %v2755 = vld [vmem:[#allocation2 + $0xc4] sm:$0xf]
        %v2756 = vld [vmem:[#allocation2 + $0xc8] sm:$0xf]
        %v2757 = vld [vmem:[#allocation2 + $0xcc] sm:$0xf]
        %v2758 = vld [vmem:[#allocation2 + $0xd0] sm:$0xf]
        %v2759 = vld [vmem:[#allocation2 + $0xd4] sm:$0xf]
        %v2760 = vld [vmem:[#allocation2 + $0xd8] sm:$0xf]
        %v2761 = vld [vmem:[#allocation2 + $0xdc] sm:$0xf]
        %v2762 = vld [vmem:[#allocation2 + $0xe0] sm:$0xf]
        %v2763 = vld [vmem:[#allocation2 + $0xe4] sm:$0xf]
        %v2764 = vld [vmem:[#allocation2 + $0xe8] sm:$0xf]
        %v2765 = vld [vmem:[#allocation2 + $0xec] sm:$0xf]
        %v2766 = vld [vmem:[#allocation2 + $0xf0] sm:$0xf]
        %v2767 = vld [vmem:[#allocation2 + $0xf4] sm:$0xf]
        %v2768 = vld [vmem:[#allocation2 + $0xf8] sm:$0xf]
        %v2769 = vld [vmem:[#allocation2 + $0xfc] sm:$0xf]
        %v2770 = vld [vmem:[#allocation3] sm:$0xf]
        %v2771 = vld [vmem:[#allocation3 + $0x4] sm:$0xf]
        %v2772 = vld [vmem:[#allocation3 + $0x8] sm:$0xf]
        %v2773 = vld [vmem:[#allocation3 + $0xc] sm:$0xf]
        %v2774 = vld [vmem:[#allocation3 + $0x10] sm:$0xf]
        %v2775 = vld [vmem:[#allocation3 + $0x14] sm:$0xf]
        %v2776 = vld [vmem:[#allocation3 + $0x18] sm:$0xf]
        %v2777 = vld [vmem:[#allocation3 + $0x1c] sm:$0xf]
        %v2778 = vld [vmem:[#allocation3 + $0x20] sm:$0xf]
        %v2779 = vld [vmem:[#allocation3 + $0x24] sm:$0xf]
        %v2780 = vld [vmem:[#allocation3 + $0x28] sm:$0xf]
        %v2781 = vld [vmem:[#allocation3 + $0x2c] sm:$0xf]
        %v2782 = vld [vmem:[#allocation3 + $0x30] sm:$0xf]
        %v2783 = vld [vmem:[#allocation3 + $0x34] sm:$0xf]
        %v2784 = vld [vmem:[#allocation3 + $0x38] sm:$0xf]
        %v2785 = vld [vmem:[#allocation3 + $0x3c] sm:$0xf]
        %v2786 = vld [vmem:[#allocation3 + $0x40] sm:$0xf]
        %v2787 = vld [vmem:[#allocation3 + $0x44] sm:$0xf]
        %v2788 = vld [vmem:[#allocation3 + $0x48] sm:$0xf]
        %v2789 = vld [vmem:[#allocation3 + $0x4c] sm:$0xf]
        %v2790 = vld [vmem:[#allocation3 + $0x50] sm:$0xf]
        %v2791 = vld [vmem:[#allocation3 + $0x54] sm:$0xf]
        %v2792 = vld [vmem:[#allocation3 + $0x58] sm:$0xf]
        %v2793 = vld [vmem:[#allocation3 + $0x5c] sm:$0xf]
        %v2794 = vld [vmem:[#allocation3 + $0x60] sm:$0xf]
        %v2795 = vld [vmem:[#allocation3 + $0x64] sm:$0xf]
        %v2796 = vld [vmem:[#allocation3 + $0x68] sm:$0xf]
        %v2797 = vld [vmem:[#allocation3 + $0x6c] sm:$0xf]
        %v2798 = vld [vmem:[#allocation3 + $0x70] sm:$0xf]
        %v2799 = vld [vmem:[#allocation3 + $0x74] sm:$0xf]
        %v2800 = vld [vmem:[#allocation3 + $0x78] sm:$0xf]
        %v2801 = vld [vmem:[#allocation3 + $0x7c] sm:$0xf]
        %v2802 = vld [vmem:[#allocation3 + $0x80] sm:$0xf]
        %v2803 = vld [vmem:[#allocation3 + $0x84] sm:$0xf]
        %v2804 = vld [vmem:[#allocation3 + $0x88] sm:$0xf]
        %v2805 = vld [vmem:[#allocation3 + $0x8c] sm:$0xf]
        %v2806 = vld [vmem:[#allocation3 + $0x90] sm:$0xf]
        %v2807 = vld [vmem:[#allocation3 + $0x94] sm:$0xf]
        %v2808 = vld [vmem:[#allocation3 + $0x98] sm:$0xf]
        %v2809 = vld [vmem:[#allocation3 + $0x9c] sm:$0xf]
        %v2810 = vld [vmem:[#allocation3 + $0xa0] sm:$0xf]
        %v2811 = vld [vmem:[#allocation3 + $0xa4] sm:$0xf]
        %v2812 = vld [vmem:[#allocation3 + $0xa8] sm:$0xf]
        %v2813 = vld [vmem:[#allocation3 + $0xac] sm:$0xf]
        %v2814 = vld [vmem:[#allocation3 + $0xb0] sm:$0xf]
        %v2815 = vld [vmem:[#allocation3 + $0xb4] sm:$0xf]
        %v2816 = vld [vmem:[#allocation3 + $0xb8] sm:$0xf]
        %v2817 = vld [vmem:[#allocation3 + $0xbc] sm:$0xf]
        %v2818 = vld [vmem:[#allocation3 + $0xc0] sm:$0xf]
        %v2819 = vld [vmem:[#allocation3 + $0xc4] sm:$0xf]
        %v2820 = vld [vmem:[#allocation3 + $0xc8] sm:$0xf]
        %v2821 = vld [vmem:[#allocation3 + $0xcc] sm:$0xf]
        %v2822 = vld [vmem:[#allocation3 + $0xd0] sm:$0xf]
        %v2823 = vld [vmem:[#allocation3 + $0xd4] sm:$0xf]
        %v2824 = vld [vmem:[#allocation3 + $0xd8] sm:$0xf]
        %v2825 = vld [vmem:[#allocation3 + $0xdc] sm:$0xf]
        %v2826 = vld [vmem:[#allocation3 + $0xe0] sm:$0xf]
        %v2827 = vld [vmem:[#allocation3 + $0xe4] sm:$0xf]
        %v2828 = vld [vmem:[#allocation3 + $0xe8] sm:$0xf]
        %v2829 = vld [vmem:[#allocation3 + $0xec] sm:$0xf]
        %v2830 = vld [vmem:[#allocation3 + $0xf0] sm:$0xf]
        %v2831 = vld [vmem:[#allocation3 + $0xf4] sm:$0xf]
        %v2832 = vld [vmem:[#allocation3 + $0xf8] sm:$0xf]
        %v2833 = vld [vmem:[#allocation3 + $0xfc] sm:$0xf]
        %v2850 = vunpack.c.l.b16 %v2674
        %v2851 = vunpack.c.l.b16 %v2675
        %v2852 = vunpack.c.l.b16 %v2676
        %v2853 = vunpack.c.l.b16 %v2677
        %v2854 = vunpack.c.l.b16 %v2678
        %v2855 = vunpack.c.l.b16 %v2679
        %v2856 = vunpack.c.l.b16 %v2680
        %v2857 = vunpack.c.l.b16 %v2681
        %v2858 = vunpack.c.l.b16 %v2682
        %v2859 = vunpack.c.l.b16 %v2683
        %v2860 = vunpack.c.l.b16 %v2684
        %v2861 = vunpack.c.l.b16 %v2685
        %v2862 = vunpack.c.l.b16 %v2686
        %v2863 = vunpack.c.l.b16 %v2687
        %v2864 = vunpack.c.l.b16 %v2688
        %v2865 = vunpack.c.l.b16 %v2689
        %v2866 = vpack.c.b16 %v2851, %v2850
        %v2867 = vpack.c.b16 %v2853, %v2852
        %v2868 = vpack.c.b16 %v2855, %v2854
        %v2869 = vpack.c.b16 %v2857, %v2856
        %v2870 = vpack.c.b16 %v2859, %v2858
        %v2871 = vpack.c.b16 %v2861, %v2860
        %v2872 = vpack.c.b16 %v2863, %v2862
        %v2873 = vpack.c.b16 %v2865, %v2864
        %v2906 = vunpack.c.l.b16 %v2706
        %v2907 = vunpack.c.l.b16 %v2707
        %v2908 = vunpack.c.l.b16 %v2708
        %v2909 = vunpack.c.l.b16 %v2709
        %v2910 = vunpack.c.l.b16 %v2710
        %v2911 = vunpack.c.l.b16 %v2711
        %v2912 = vunpack.c.l.b16 %v2712
        %v2913 = vunpack.c.l.b16 %v2713
        %v2914 = vunpack.c.l.b16 %v2714
        %v2915 = vunpack.c.l.b16 %v2715
        %v2916 = vunpack.c.l.b16 %v2716
        %v2917 = vunpack.c.l.b16 %v2717
        %v2918 = vunpack.c.l.b16 %v2718
        %v2919 = vunpack.c.l.b16 %v2719
        %v2920 = vunpack.c.l.b16 %v2720
        %v2921 = vunpack.c.l.b16 %v2721
        %v2922 = vunpack.c.l.b16 %v2722
        %v2923 = vunpack.c.l.b16 %v2723
        %v2924 = vunpack.c.l.b16 %v2724
        %v2925 = vunpack.c.l.b16 %v2725
        %v2926 = vunpack.c.l.b16 %v2726
        %v2927 = vunpack.c.l.b16 %v2727
        %v2928 = vunpack.c.l.b16 %v2728
        %v2929 = vunpack.c.l.b16 %v2729
        %v2930 = vunpack.c.l.b16 %v2730
        %v2931 = vunpack.c.l.b16 %v2731
        %v2932 = vunpack.c.l.b16 %v2732
        %v2933 = vunpack.c.l.b16 %v2733
        %v2934 = vunpack.c.l.b16 %v2734
        %v2935 = vunpack.c.l.b16 %v2735
        %v2936 = vunpack.c.l.b16 %v2736
        %v2937 = vunpack.c.l.b16 %v2737
        %v2938 = vpack.c.b16 %v2907, %v2906
        %v2939 = vpack.c.b16 %v2909, %v2908
        %v2940 = vpack.c.b16 %v2911, %v2910
        %v2941 = vpack.c.b16 %v2913, %v2912
        %v2942 = vpack.c.b16 %v2915, %v2914
        %v2943 = vpack.c.b16 %v2917, %v2916
        %v2944 = vpack.c.b16 %v2919, %v2918
        %v2945 = vpack.c.b16 %v2921, %v2920
        %v2946 = vpack.c.b16 %v2923, %v2922
        %v2947 = vpack.c.b16 %v2925, %v2924
        %v2948 = vpack.c.b16 %v2927, %v2926
        %v2949 = vpack.c.b16 %v2929, %v2928
        %v2950 = vpack.c.b16 %v2931, %v2930
        %v2951 = vpack.c.b16 %v2933, %v2932
        %v2952 = vpack.c.b16 %v2935, %v2934
        %v2953 = vpack.c.b16 %v2937, %v2936
        %vm2954 = vcmask 523264
        %v2956 = vsel %vm2954, %v2866, 0
        %v2959 = vsel %vm2954, %v2867, 0
        %v2962 = vsel %vm2954, %v2868, 0
        %v2965 = vsel %vm2954, %v2869, 0
        %v2968 = vsel %vm2954, %v2870, 0
        %v2971 = vsel %vm2954, %v2871, 0
        %v2974 = vsel %vm2954, %v2872, 0
        %v2977 = vsel %vm2954, %v2873, 0
        %v2980 = vsel %vm2954, %v2938, 0
        %v2983 = vsel %vm2954, %v2939, 0
        %v2986 = vsel %vm2954, %v2940, 0
        %v2989 = vsel %vm2954, %v2941, 0
        %v2992 = vsel %vm2954, %v2942, 0
        %v2995 = vsel %vm2954, %v2943, 0
        %v2998 = vsel %vm2954, %v2944, 0
        %v3001 = vsel %vm2954, %v2945, 0
        %v3004 = vsel %vm2954, %v2946, 0
        %v3007 = vsel %vm2954, %v2947, 0
        %v3010 = vsel %vm2954, %v2948, 0
        %v3013 = vsel %vm2954, %v2949, 0
        %v3016 = vsel %vm2954, %v2950, 0
        %v3019 = vsel %vm2954, %v2951, 0
        %v3022 = vsel %vm2954, %v2952, 0
        %v3025 = vsel %vm2954, %v2953, 0
        %3027 = vmatpush.bf16.xpose.msra.mxu0 %v3001
        %3028 = vmatpush.bf16.xpose.msra.mxu0 %v2998
        %3029 = vmatpush.bf16.xpose.msra.mxu0 %v2995
        %3030 = vmatpush.bf16.xpose.msra.mxu0 %v2992
        %3031 = vmatpush.bf16.xpose.msra.mxu0 %v2989
        %3032 = vmatpush.bf16.xpose.msra.mxu0 %v2986
        %3033 = vmatpush.bf16.xpose.msra.mxu0 %v2983
        %3034 = vmatpush.bf16.xpose.msra.mxu0 %v2980
        %3035 = vmatmul.bf16.gmra.mxu0 %v2956
        %v3036 = vpop.f32.mrf.mxu0
        %v3037 = vadd.f32 0.0, %v3036
        %v3038 = vpop.f32.mrf.mxu0
        %v3039 = vadd.f32 0.0, %v3038
        %3040 = vmatmul.bf16.gmra.mxu0 %v2959
        %v3041 = vpop.f32.mrf.mxu0
        %v3042 = vadd.f32 0.0, %v3041
        %v3043 = vpop.f32.mrf.mxu0
        %v3044 = vadd.f32 0.0, %v3043
        %3045 = vmatmul.bf16.gmra.mxu0 %v2962
        %v3046 = vpop.f32.mrf.mxu0
        %v3047 = vadd.f32 0.0, %v3046
        %v3048 = vpop.f32.mrf.mxu0
        %v3049 = vadd.f32 0.0, %v3048
        %3050 = vmatmul.bf16.gmra.mxu0 %v2965
        %v3051 = vpop.f32.mrf.mxu0
        %v3052 = vadd.f32 0.0, %v3051
        %v3053 = vpop.f32.mrf.mxu0
        %v3054 = vadd.f32 0.0, %v3053
        %3055 = vmatmul.bf16.gmra.mxu0 %v2968
        %v3056 = vpop.f32.mrf.mxu0
        %v3057 = vadd.f32 0.0, %v3056
        %v3058 = vpop.f32.mrf.mxu0
        %v3059 = vadd.f32 0.0, %v3058
        %3060 = vmatmul.bf16.gmra.mxu0 %v2971
        %v3061 = vpop.f32.mrf.mxu0
        %v3062 = vadd.f32 0.0, %v3061
        %v3063 = vpop.f32.mrf.mxu0
        %v3064 = vadd.f32 0.0, %v3063
        %3065 = vmatmul.bf16.gmra.mxu0 %v2974
        %v3066 = vpop.f32.mrf.mxu0
        %v3067 = vadd.f32 0.0, %v3066
        %v3068 = vpop.f32.mrf.mxu0
        %v3069 = vadd.f32 0.0, %v3068
        %3070 = vmatmul.bf16.gmra.mxu0 %v2977
        %v3071 = vpop.f32.mrf.mxu0
        %v3072 = vadd.f32 0.0, %v3071
        %v3073 = vpop.f32.mrf.mxu0
        %v3074 = vadd.f32 0.0, %v3073
        %3075 = vdwg.mxu0
        %3076 = vmatpush.bf16.xpose.msra.mxu0 %v3025
        %3077 = vmatpush.bf16.xpose.msra.mxu0 %v3022
        %3078 = vmatpush.bf16.xpose.msra.mxu0 %v3019
        %3079 = vmatpush.bf16.xpose.msra.mxu0 %v3016
        %3080 = vmatpush.bf16.xpose.msra.mxu0 %v3013
        %3081 = vmatpush.bf16.xpose.msra.mxu0 %v3010
        %3082 = vmatpush.bf16.xpose.msra.mxu0 %v3007
        %3083 = vmatpush.bf16.xpose.msra.mxu0 %v3004
        %3084 = vmatmul.bf16.gmra.mxu0 %v2956
        %v3085 = vpop.f32.mrf.mxu0
        %v3086 = vadd.f32 0.0, %v3085
        %v3087 = vpop.f32.mrf.mxu0
        %v3088 = vadd.f32 0.0, %v3087
        %3089 = vmatmul.bf16.gmra.mxu0 %v2959
        %v3090 = vpop.f32.mrf.mxu0
        %v3091 = vadd.f32 0.0, %v3090
        %v3092 = vpop.f32.mrf.mxu0
        %v3093 = vadd.f32 0.0, %v3092
        %3094 = vmatmul.bf16.gmra.mxu0 %v2962
        %v3095 = vpop.f32.mrf.mxu0
        %v3096 = vadd.f32 0.0, %v3095
        %v3097 = vpop.f32.mrf.mxu0
        %v3098 = vadd.f32 0.0, %v3097
        %3099 = vmatmul.bf16.gmra.mxu0 %v2965
        %v3100 = vpop.f32.mrf.mxu0
        %v3101 = vadd.f32 0.0, %v3100
        %v3102 = vpop.f32.mrf.mxu0
        %v3103 = vadd.f32 0.0, %v3102
        %3104 = vmatmul.bf16.gmra.mxu0 %v2968
        %v3105 = vpop.f32.mrf.mxu0
        %v3106 = vadd.f32 0.0, %v3105
        %v3107 = vpop.f32.mrf.mxu0
        %v3108 = vadd.f32 0.0, %v3107
        %3109 = vmatmul.bf16.gmra.mxu0 %v2971
        %v3110 = vpop.f32.mrf.mxu0
        %v3111 = vadd.f32 0.0, %v3110
        %v3112 = vpop.f32.mrf.mxu0
        %v3113 = vadd.f32 0.0, %v3112
        %3114 = vmatmul.bf16.gmra.mxu0 %v2974
        %v3115 = vpop.f32.mrf.mxu0
        %v3116 = vadd.f32 0.0, %v3115
        %v3117 = vpop.f32.mrf.mxu0
        %v3118 = vadd.f32 0.0, %v3117
        %3119 = vmatmul.bf16.gmra.mxu0 %v2977
        %v3120 = vpop.f32.mrf.mxu0
        %v3121 = vadd.f32 0.0, %v3120
        %v3122 = vpop.f32.mrf.mxu0
        %v3123 = vadd.f32 0.0, %v3122
        %3124 = vdwg.mxu0
        %v3141 = vunpack.c.l.b16 %v2690
        %v3142 = vunpack.c.l.b16 %v2691
        %v3143 = vunpack.c.l.b16 %v2692
        %v3144 = vunpack.c.l.b16 %v2693
        %v3145 = vunpack.c.l.b16 %v2694
        %v3146 = vunpack.c.l.b16 %v2695
        %v3147 = vunpack.c.l.b16 %v2696
        %v3148 = vunpack.c.l.b16 %v2697
        %v3149 = vunpack.c.l.b16 %v2698
        %v3150 = vunpack.c.l.b16 %v2699
        %v3151 = vunpack.c.l.b16 %v2700
        %v3152 = vunpack.c.l.b16 %v2701
        %v3153 = vunpack.c.l.b16 %v2702
        %v3154 = vunpack.c.l.b16 %v2703
        %v3155 = vunpack.c.l.b16 %v2704
        %v3156 = vunpack.c.l.b16 %v2705
        %v3157 = vpack.c.b16 %v3142, %v3141
        %v3158 = vpack.c.b16 %v3144, %v3143
        %v3159 = vpack.c.b16 %v3146, %v3145
        %v3160 = vpack.c.b16 %v3148, %v3147
        %v3161 = vpack.c.b16 %v3150, %v3149
        %v3162 = vpack.c.b16 %v3152, %v3151
        %v3163 = vpack.c.b16 %v3154, %v3153
        %v3164 = vpack.c.b16 %v3156, %v3155
        %v3197 = vunpack.c.l.b16 %v2738
        %v3198 = vunpack.c.l.b16 %v2739
        %v3199 = vunpack.c.l.b16 %v2740
        %v3200 = vunpack.c.l.b16 %v2741
        %v3201 = vunpack.c.l.b16 %v2742
        %v3202 = vunpack.c.l.b16 %v2743
        %v3203 = vunpack.c.l.b16 %v2744
        %v3204 = vunpack.c.l.b16 %v2745
        %v3205 = vunpack.c.l.b16 %v2746
        %v3206 = vunpack.c.l.b16 %v2747
        %v3207 = vunpack.c.l.b16 %v2748
        %v3208 = vunpack.c.l.b16 %v2749
        %v3209 = vunpack.c.l.b16 %v2750
        %v3210 = vunpack.c.l.b16 %v2751
        %v3211 = vunpack.c.l.b16 %v2752
        %v3212 = vunpack.c.l.b16 %v2753
        %v3213 = vunpack.c.l.b16 %v2754
        %v3214 = vunpack.c.l.b16 %v2755
        %v3215 = vunpack.c.l.b16 %v2756
        %v3216 = vunpack.c.l.b16 %v2757
        %v3217 = vunpack.c.l.b16 %v2758
        %v3218 = vunpack.c.l.b16 %v2759
        %v3219 = vunpack.c.l.b16 %v2760
        %v3220 = vunpack.c.l.b16 %v2761
        %v3221 = vunpack.c.l.b16 %v2762
        %v3222 = vunpack.c.l.b16 %v2763
        %v3223 = vunpack.c.l.b16 %v2764
        %v3224 = vunpack.c.l.b16 %v2765
        %v3225 = vunpack.c.l.b16 %v2766
        %v3226 = vunpack.c.l.b16 %v2767
        %v3227 = vunpack.c.l.b16 %v2768
        %v3228 = vunpack.c.l.b16 %v2769
        %v3229 = vpack.c.b16 %v3198, %v3197
        %v3230 = vpack.c.b16 %v3200, %v3199
        %v3231 = vpack.c.b16 %v3202, %v3201
        %v3232 = vpack.c.b16 %v3204, %v3203
        %v3233 = vpack.c.b16 %v3206, %v3205
        %v3234 = vpack.c.b16 %v3208, %v3207
        %v3235 = vpack.c.b16 %v3210, %v3209
        %v3236 = vpack.c.b16 %v3212, %v3211
        %v3237 = vpack.c.b16 %v3214, %v3213
        %v3238 = vpack.c.b16 %v3216, %v3215
        %v3239 = vpack.c.b16 %v3218, %v3217
        %v3240 = vpack.c.b16 %v3220, %v3219
        %v3241 = vpack.c.b16 %v3222, %v3221
        %v3242 = vpack.c.b16 %v3224, %v3223
        %v3243 = vpack.c.b16 %v3226, %v3225
        %v3244 = vpack.c.b16 %v3228, %v3227
        %v3246 = vsel %vm2954, %v3157, 0
        %v3249 = vsel %vm2954, %v3158, 0
        %v3252 = vsel %vm2954, %v3159, 0
        %v3255 = vsel %vm2954, %v3160, 0
        %v3258 = vsel %vm2954, %v3161, 0
        %v3261 = vsel %vm2954, %v3162, 0
        %v3264 = vsel %vm2954, %v3163, 0
        %v3267 = vsel %vm2954, %v3164, 0
        %v3270 = vsel %vm2954, %v3229, 0
        %v3273 = vsel %vm2954, %v3230, 0
        %v3276 = vsel %vm2954, %v3231, 0
        %v3279 = vsel %vm2954, %v3232, 0
        %v3282 = vsel %vm2954, %v3233, 0
        %v3285 = vsel %vm2954, %v3234, 0
        %v3288 = vsel %vm2954, %v3235, 0
        %v3291 = vsel %vm2954, %v3236, 0
        %v3294 = vsel %vm2954, %v3237, 0
        %v3297 = vsel %vm2954, %v3238, 0
        %v3300 = vsel %vm2954, %v3239, 0
        %v3303 = vsel %vm2954, %v3240, 0
        %v3306 = vsel %vm2954, %v3241, 0
        %v3309 = vsel %vm2954, %v3242, 0
        %v3312 = vsel %vm2954, %v3243, 0
        %v3315 = vsel %vm2954, %v3244, 0
        %3317 = vmatpush.bf16.xpose.msra.mxu0 %v3291
        %3318 = vmatpush.bf16.xpose.msra.mxu0 %v3288
        %3319 = vmatpush.bf16.xpose.msra.mxu0 %v3285
        %3320 = vmatpush.bf16.xpose.msra.mxu0 %v3282
        %3321 = vmatpush.bf16.xpose.msra.mxu0 %v3279
        %3322 = vmatpush.bf16.xpose.msra.mxu0 %v3276
        %3323 = vmatpush.bf16.xpose.msra.mxu0 %v3273
        %3324 = vmatpush.bf16.xpose.msra.mxu0 %v3270
        %3325 = vmatmul.bf16.gmra.mxu0 %v3246
        %v3326 = vpop.f32.mrf.mxu0
        %v3327 = vadd.f32 0.0, %v3326
        %v3328 = vpop.f32.mrf.mxu0
        %v3329 = vadd.f32 0.0, %v3328
        %3330 = vmatmul.bf16.gmra.mxu0 %v3249
        %v3331 = vpop.f32.mrf.mxu0
        %v3332 = vadd.f32 0.0, %v3331
        %v3333 = vpop.f32.mrf.mxu0
        %v3334 = vadd.f32 0.0, %v3333
        %3335 = vmatmul.bf16.gmra.mxu0 %v3252
        %v3336 = vpop.f32.mrf.mxu0
        %v3337 = vadd.f32 0.0, %v3336
        %v3338 = vpop.f32.mrf.mxu0
        %v3339 = vadd.f32 0.0, %v3338
        %3340 = vmatmul.bf16.gmra.mxu0 %v3255
        %v3341 = vpop.f32.mrf.mxu0
        %v3342 = vadd.f32 0.0, %v3341
        %v3343 = vpop.f32.mrf.mxu0
        %v3344 = vadd.f32 0.0, %v3343
        %3345 = vmatmul.bf16.gmra.mxu0 %v3258
        %v3346 = vpop.f32.mrf.mxu0
        %v3347 = vadd.f32 0.0, %v3346
        %v3348 = vpop.f32.mrf.mxu0
        %v3349 = vadd.f32 0.0, %v3348
        %3350 = vmatmul.bf16.gmra.mxu0 %v3261
        %v3351 = vpop.f32.mrf.mxu0
        %v3352 = vadd.f32 0.0, %v3351
        %v3353 = vpop.f32.mrf.mxu0
        %v3354 = vadd.f32 0.0, %v3353
        %3355 = vmatmul.bf16.gmra.mxu0 %v3264
        %v3356 = vpop.f32.mrf.mxu0
        %v3357 = vadd.f32 0.0, %v3356
        %v3358 = vpop.f32.mrf.mxu0
        %v3359 = vadd.f32 0.0, %v3358
        %3360 = vmatmul.bf16.gmra.mxu0 %v3267
        %v3361 = vpop.f32.mrf.mxu0
        %v3362 = vadd.f32 0.0, %v3361
        %v3363 = vpop.f32.mrf.mxu0
        %v3364 = vadd.f32 0.0, %v3363
        %3365 = vdwg.mxu0
        %3366 = vmatpush.bf16.xpose.msra.mxu0 %v3315
        %3367 = vmatpush.bf16.xpose.msra.mxu0 %v3312
        %3368 = vmatpush.bf16.xpose.msra.mxu0 %v3309
        %3369 = vmatpush.bf16.xpose.msra.mxu0 %v3306
        %3370 = vmatpush.bf16.xpose.msra.mxu0 %v3303
        %3371 = vmatpush.bf16.xpose.msra.mxu0 %v3300
        %3372 = vmatpush.bf16.xpose.msra.mxu0 %v3297
        %3373 = vmatpush.bf16.xpose.msra.mxu0 %v3294
        %3374 = vmatmul.bf16.gmra.mxu0 %v3246
        %v3375 = vpop.f32.mrf.mxu0
        %v3376 = vadd.f32 0.0, %v3375
        %v3377 = vpop.f32.mrf.mxu0
        %v3378 = vadd.f32 0.0, %v3377
        %3379 = vmatmul.bf16.gmra.mxu0 %v3249
        %v3380 = vpop.f32.mrf.mxu0
        %v3381 = vadd.f32 0.0, %v3380
        %v3382 = vpop.f32.mrf.mxu0
        %v3383 = vadd.f32 0.0, %v3382
        %3384 = vmatmul.bf16.gmra.mxu0 %v3252
        %v3385 = vpop.f32.mrf.mxu0
        %v3386 = vadd.f32 0.0, %v3385
        %v3387 = vpop.f32.mrf.mxu0
        %v3388 = vadd.f32 0.0, %v3387
        %3389 = vmatmul.bf16.gmra.mxu0 %v3255
        %v3390 = vpop.f32.mrf.mxu0
        %v3391 = vadd.f32 0.0, %v3390
        %v3392 = vpop.f32.mrf.mxu0
        %v3393 = vadd.f32 0.0, %v3392
        %3394 = vmatmul.bf16.gmra.mxu0 %v3258
        %v3395 = vpop.f32.mrf.mxu0
        %v3396 = vadd.f32 0.0, %v3395
        %v3397 = vpop.f32.mrf.mxu0
        %v3398 = vadd.f32 0.0, %v3397
        %3399 = vmatmul.bf16.gmra.mxu0 %v3261
        %v3400 = vpop.f32.mrf.mxu0
        %v3401 = vadd.f32 0.0, %v3400
        %v3402 = vpop.f32.mrf.mxu0
        %v3403 = vadd.f32 0.0, %v3402
        %3404 = vmatmul.bf16.gmra.mxu0 %v3264
        %v3405 = vpop.f32.mrf.mxu0
        %v3406 = vadd.f32 0.0, %v3405
        %v3407 = vpop.f32.mrf.mxu0
        %v3408 = vadd.f32 0.0, %v3407
        %3409 = vmatmul.bf16.gmra.mxu0 %v3267
        %v3410 = vpop.f32.mrf.mxu0
        %v3411 = vadd.f32 0.0, %v3410
        %v3412 = vpop.f32.mrf.mxu0
        %v3413 = vadd.f32 0.0, %v3412
        %3414 = vdwg.mxu0
        %v3415 = vmax.f32 %v3037, %v3086
        %3416 = vmax.xlane.f32.xlu0 %v3415
        %v3417 = vpop.xlane.xlu0 %3416
        %v3418 = vmax.f32 %v3039, %v3088
        %3419 = vmax.xlane.f32.xlu0 %v3418
        %v3420 = vpop.xlane.xlu0 %3419
        %v3421 = vmax.f32 %v3042, %v3091
        %3422 = vmax.xlane.f32.xlu0 %v3421
        %v3423 = vpop.xlane.xlu0 %3422
        %v3424 = vmax.f32 %v3044, %v3093
        %3425 = vmax.xlane.f32.xlu0 %v3424
        %v3426 = vpop.xlane.xlu0 %3425
        %v3427 = vmax.f32 %v3047, %v3096
        %3428 = vmax.xlane.f32.xlu0 %v3427
        %v3429 = vpop.xlane.xlu0 %3428
        %v3430 = vmax.f32 %v3049, %v3098
        %3431 = vmax.xlane.f32.xlu0 %v3430
        %v3432 = vpop.xlane.xlu0 %3431
        %v3433 = vmax.f32 %v3052, %v3101
        %3434 = vmax.xlane.f32.xlu0 %v3433
        %v3435 = vpop.xlane.xlu0 %3434
        %v3436 = vmax.f32 %v3054, %v3103
        %3437 = vmax.xlane.f32.xlu0 %v3436
        %v3438 = vpop.xlane.xlu0 %3437
        %v3439 = vmax.f32 %v3057, %v3106
        %3440 = vmax.xlane.f32.xlu0 %v3439
        %v3441 = vpop.xlane.xlu0 %3440
        %v3442 = vmax.f32 %v3059, %v3108
        %3443 = vmax.xlane.f32.xlu0 %v3442
        %v3444 = vpop.xlane.xlu0 %3443
        %v3445 = vmax.f32 %v3062, %v3111
        %3446 = vmax.xlane.f32.xlu0 %v3445
        %v3447 = vpop.xlane.xlu0 %3446
        %v3448 = vmax.f32 %v3064, %v3113
        %3449 = vmax.xlane.f32.xlu0 %v3448
        %v3450 = vpop.xlane.xlu0 %3449
        %v3451 = vmax.f32 %v3067, %v3116
        %3452 = vmax.xlane.f32.xlu0 %v3451
        %v3453 = vpop.xlane.xlu0 %3452
        %v3454 = vmax.f32 %v3069, %v3118
        %3455 = vmax.xlane.f32.xlu0 %v3454
        %v3456 = vpop.xlane.xlu0 %3455
        %v3457 = vmax.f32 %v3072, %v3121
        %3458 = vmax.xlane.f32.xlu0 %v3457
        %v3459 = vpop.xlane.xlu0 %3458
        %v3460 = vmax.f32 %v3074, %v3123
        %3461 = vmax.xlane.f32.xlu0 %v3460
        %v3462 = vpop.xlane.xlu0 %3461
        %v3463 = vmax.f32 %v3327, %v3376
        %3464 = vmax.xlane.f32.xlu0 %v3463
        %v3465 = vpop.xlane.xlu0 %3464
        %v3466 = vmax.f32 %v3329, %v3378
        %3467 = vmax.xlane.f32.xlu0 %v3466
        %v3468 = vpop.xlane.xlu0 %3467
        %v3469 = vmax.f32 %v3332, %v3381
        %3470 = vmax.xlane.f32.xlu0 %v3469
        %v3471 = vpop.xlane.xlu0 %3470
        %v3472 = vmax.f32 %v3334, %v3383
        %3473 = vmax.xlane.f32.xlu0 %v3472
        %v3474 = vpop.xlane.xlu0 %3473
        %v3475 = vmax.f32 %v3337, %v3386
        %3476 = vmax.xlane.f32.xlu0 %v3475
        %v3477 = vpop.xlane.xlu0 %3476
        %v3478 = vmax.f32 %v3339, %v3388
        %3479 = vmax.xlane.f32.xlu0 %v3478
        %v3480 = vpop.xlane.xlu0 %3479
        %v3481 = vmax.f32 %v3342, %v3391
        %3482 = vmax.xlane.f32.xlu0 %v3481
        %v3483 = vpop.xlane.xlu0 %3482
        %v3484 = vmax.f32 %v3344, %v3393
        %3485 = vmax.xlane.f32.xlu0 %v3484
        %v3486 = vpop.xlane.xlu0 %3485
        %v3487 = vmax.f32 %v3347, %v3396
        %3488 = vmax.xlane.f32.xlu0 %v3487
        %v3489 = vpop.xlane.xlu0 %3488
        %v3490 = vmax.f32 %v3349, %v3398
        %3491 = vmax.xlane.f32.xlu0 %v3490
        %v3492 = vpop.xlane.xlu0 %3491
        %v3493 = vmax.f32 %v3352, %v3401
        %3494 = vmax.xlane.f32.xlu0 %v3493
        %v3495 = vpop.xlane.xlu0 %3494
        %v3496 = vmax.f32 %v3354, %v3403
        %3497 = vmax.xlane.f32.xlu0 %v3496
        %v3498 = vpop.xlane.xlu0 %3497
        %v3499 = vmax.f32 %v3357, %v3406
        %3500 = vmax.xlane.f32.xlu0 %v3499
        %v3501 = vpop.xlane.xlu0 %3500
        %v3502 = vmax.f32 %v3359, %v3408
        %3503 = vmax.xlane.f32.xlu0 %v3502
        %v3504 = vpop.xlane.xlu0 %3503
        %v3505 = vmax.f32 %v3362, %v3411
        %3506 = vmax.xlane.f32.xlu0 %v3505
        %v3507 = vpop.xlane.xlu0 %3506
        %v3508 = vmax.f32 %v3364, %v3413
        %3509 = vmax.xlane.f32.xlu0 %v3508
        %v3510 = vpop.xlane.xlu0 %3509
        %v3511 = vsub.f32 %v3037, %v3417
        %v3512 = vsub.f32 %v3086, %v3417
        %v3513 = vsub.f32 %v3039, %v3420
        %v3514 = vsub.f32 %v3088, %v3420
        %v3515 = vsub.f32 %v3042, %v3423
        %v3516 = vsub.f32 %v3091, %v3423
        %v3517 = vsub.f32 %v3044, %v3426
        %v3518 = vsub.f32 %v3093, %v3426
        %v3519 = vsub.f32 %v3047, %v3429
        %v3520 = vsub.f32 %v3096, %v3429
        %v3521 = vsub.f32 %v3049, %v3432
        %v3522 = vsub.f32 %v3098, %v3432
        %v3523 = vsub.f32 %v3052, %v3435
        %v3524 = vsub.f32 %v3101, %v3435
        %v3525 = vsub.f32 %v3054, %v3438
        %v3526 = vsub.f32 %v3103, %v3438
        %v3527 = vsub.f32 %v3057, %v3441
        %v3528 = vsub.f32 %v3106, %v3441
        %v3529 = vsub.f32 %v3059, %v3444
        %v3530 = vsub.f32 %v3108, %v3444
        %v3531 = vsub.f32 %v3062, %v3447
        %v3532 = vsub.f32 %v3111, %v3447
        %v3533 = vsub.f32 %v3064, %v3450
        %v3534 = vsub.f32 %v3113, %v3450
        %v3535 = vsub.f32 %v3067, %v3453
        %v3536 = vsub.f32 %v3116, %v3453
        %v3537 = vsub.f32 %v3069, %v3456
        %v3538 = vsub.f32 %v3118, %v3456
        %v3539 = vsub.f32 %v3072, %v3459
        %v3540 = vsub.f32 %v3121, %v3459
        %v3541 = vsub.f32 %v3074, %v3462
        %v3542 = vsub.f32 %v3123, %v3462
        %v3543 = vsub.f32 %v3327, %v3465
        %v3544 = vsub.f32 %v3376, %v3465
        %v3545 = vsub.f32 %v3329, %v3468
        %v3546 = vsub.f32 %v3378, %v3468
        %v3547 = vsub.f32 %v3332, %v3471
        %v3548 = vsub.f32 %v3381, %v3471
        %v3549 = vsub.f32 %v3334, %v3474
        %v3550 = vsub.f32 %v3383, %v3474
        %v3551 = vsub.f32 %v3337, %v3477
        %v3552 = vsub.f32 %v3386, %v3477
        %v3553 = vsub.f32 %v3339, %v3480
        %v3554 = vsub.f32 %v3388, %v3480
        %v3555 = vsub.f32 %v3342, %v3483
        %v3556 = vsub.f32 %v3391, %v3483
        %v3557 = vsub.f32 %v3344, %v3486
        %v3558 = vsub.f32 %v3393, %v3486
        %v3559 = vsub.f32 %v3347, %v3489
        %v3560 = vsub.f32 %v3396, %v3489
        %v3561 = vsub.f32 %v3349, %v3492
        %v3562 = vsub.f32 %v3398, %v3492
        %v3563 = vsub.f32 %v3352, %v3495
        %v3564 = vsub.f32 %v3401, %v3495
        %v3565 = vsub.f32 %v3354, %v3498
        %v3566 = vsub.f32 %v3403, %v3498
        %v3567 = vsub.f32 %v3357, %v3501
        %v3568 = vsub.f32 %v3406, %v3501
        %v3569 = vsub.f32 %v3359, %v3504
        %v3570 = vsub.f32 %v3408, %v3504
        %v3571 = vsub.f32 %v3362, %v3507
        %v3572 = vsub.f32 %v3411, %v3507
        %v3573 = vsub.f32 %v3364, %v3510
        %v3574 = vsub.f32 %v3413, %v3510
        %v3575 = vmul.f32 %v3511, 1.442695
        %v3576 = vpow.pop %v3575
        %v3577 = vmul.f32 %v3512, 1.442695
        %v3578 = vpow.pop %v3577
        %v3579 = vmul.f32 %v3513, 1.442695
        %v3580 = vpow.pop %v3579
        %v3581 = vmul.f32 %v3514, 1.442695
        %v3582 = vpow.pop %v3581
        %v3583 = vmul.f32 %v3515, 1.442695
        %v3584 = vpow.pop %v3583
        %v3585 = vmul.f32 %v3516, 1.442695
        %v3586 = vpow.pop %v3585
        %v3587 = vmul.f32 %v3517, 1.442695
        %v3588 = vpow.pop %v3587
        %v3589 = vmul.f32 %v3518, 1.442695
        %v3590 = vpow.pop %v3589
        %v3591 = vmul.f32 %v3519, 1.442695
        %v3592 = vpow.pop %v3591
        %v3593 = vmul.f32 %v3520, 1.442695
        %v3594 = vpow.pop %v3593
        %v3595 = vmul.f32 %v3521, 1.442695
        %v3596 = vpow.pop %v3595
        %v3597 = vmul.f32 %v3522, 1.442695
        %v3598 = vpow.pop %v3597
        %v3599 = vmul.f32 %v3523, 1.442695
        %v3600 = vpow.pop %v3599
        %v3601 = vmul.f32 %v3524, 1.442695
        %v3602 = vpow.pop %v3601
        %v3603 = vmul.f32 %v3525, 1.442695
        %v3604 = vpow.pop %v3603
        %v3605 = vmul.f32 %v3526, 1.442695
        %v3606 = vpow.pop %v3605
        %v3607 = vmul.f32 %v3527, 1.442695
        %v3608 = vpow.pop %v3607
        %v3609 = vmul.f32 %v3528, 1.442695
        %v3610 = vpow.pop %v3609
        %v3611 = vmul.f32 %v3529, 1.442695
        %v3612 = vpow.pop %v3611
        %v3613 = vmul.f32 %v3530, 1.442695
        %v3614 = vpow.pop %v3613
        %v3615 = vmul.f32 %v3531, 1.442695
        %v3616 = vpow.pop %v3615
        %v3617 = vmul.f32 %v3532, 1.442695
        %v3618 = vpow.pop %v3617
        %v3619 = vmul.f32 %v3533, 1.442695
        %v3620 = vpow.pop %v3619
        %v3621 = vmul.f32 %v3534, 1.442695
        %v3622 = vpow.pop %v3621
        %v3623 = vmul.f32 %v3535, 1.442695
        %v3624 = vpow.pop %v3623
        %v3625 = vmul.f32 %v3536, 1.442695
        %v3626 = vpow.pop %v3625
        %v3627 = vmul.f32 %v3537, 1.442695
        %v3628 = vpow.pop %v3627
        %v3629 = vmul.f32 %v3538, 1.442695
        %v3630 = vpow.pop %v3629
        %v3631 = vmul.f32 %v3539, 1.442695
        %v3632 = vpow.pop %v3631
        %v3633 = vmul.f32 %v3540, 1.442695
        %v3634 = vpow.pop %v3633
        %v3635 = vmul.f32 %v3541, 1.442695
        %v3636 = vpow.pop %v3635
        %v3637 = vmul.f32 %v3542, 1.442695
        %v3638 = vpow.pop %v3637
        %v3639 = vmul.f32 %v3543, 1.442695
        %v3640 = vpow.pop %v3639
        %v3641 = vmul.f32 %v3544, 1.442695
        %v3642 = vpow.pop %v3641
        %v3643 = vmul.f32 %v3545, 1.442695
        %v3644 = vpow.pop %v3643
        %v3645 = vmul.f32 %v3546, 1.442695
        %v3646 = vpow.pop %v3645
        %v3647 = vmul.f32 %v3547, 1.442695
        %v3648 = vpow.pop %v3647
        %v3649 = vmul.f32 %v3548, 1.442695
        %v3650 = vpow.pop %v3649
        %v3651 = vmul.f32 %v3549, 1.442695
        %v3652 = vpow.pop %v3651
        %v3653 = vmul.f32 %v3550, 1.442695
        %v3654 = vpow.pop %v3653
        %v3655 = vmul.f32 %v3551, 1.442695
        %v3656 = vpow.pop %v3655
        %v3657 = vmul.f32 %v3552, 1.442695
        %v3658 = vpow.pop %v3657
        %v3659 = vmul.f32 %v3553, 1.442695
        %v3660 = vpow.pop %v3659
        %v3661 = vmul.f32 %v3554, 1.442695
        %v3662 = vpow.pop %v3661
        %v3663 = vmul.f32 %v3555, 1.442695
        %v3664 = vpow.pop %v3663
        %v3665 = vmul.f32 %v3556, 1.442695
        %v3666 = vpow.pop %v3665
        %v3667 = vmul.f32 %v3557, 1.442695
        %v3668 = vpow.pop %v3667
        %v3669 = vmul.f32 %v3558, 1.442695
        %v3670 = vpow.pop %v3669
        %v3671 = vmul.f32 %v3559, 1.442695
        %v3672 = vpow.pop %v3671
        %v3673 = vmul.f32 %v3560, 1.442695
        %v3674 = vpow.pop %v3673
        %v3675 = vmul.f32 %v3561, 1.442695
        %v3676 = vpow.pop %v3675
        %v3677 = vmul.f32 %v3562, 1.442695
        %v3678 = vpow.pop %v3677
        %v3679 = vmul.f32 %v3563, 1.442695
        %v3680 = vpow.pop %v3679
        %v3681 = vmul.f32 %v3564, 1.442695
        %v3682 = vpow.pop %v3681
        %v3683 = vmul.f32 %v3565, 1.442695
        %v3684 = vpow.pop %v3683
        %v3685 = vmul.f32 %v3566, 1.442695
        %v3686 = vpow.pop %v3685
        %v3687 = vmul.f32 %v3567, 1.442695
        %v3688 = vpow.pop %v3687
        %v3689 = vmul.f32 %v3568, 1.442695
        %v3690 = vpow.pop %v3689
        %v3691 = vmul.f32 %v3569, 1.442695
        %v3692 = vpow.pop %v3691
        %v3693 = vmul.f32 %v3570, 1.442695
        %v3694 = vpow.pop %v3693
        %v3695 = vmul.f32 %v3571, 1.442695
        %v3696 = vpow.pop %v3695
        %v3697 = vmul.f32 %v3572, 1.442695
        %v3698 = vpow.pop %v3697
        %v3699 = vmul.f32 %v3573, 1.442695
        %v3700 = vpow.pop %v3699
        %v3701 = vmul.f32 %v3574, 1.442695
        %v3702 = vpow.pop %v3701
        %v3703 = vadd.f32 %v3576, %v3578
        %3704 = vadd.xlane.f32.xlu0 %v3703
        %v3705 = vpop.xlane.xlu0 %3704
        %v3706 = vadd.f32 %v3580, %v3582
        %3707 = vadd.xlane.f32.xlu0 %v3706
        %v3708 = vpop.xlane.xlu0 %3707
        %v3709 = vadd.f32 %v3584, %v3586
        %3710 = vadd.xlane.f32.xlu0 %v3709
        %v3711 = vpop.xlane.xlu0 %3710
        %v3712 = vadd.f32 %v3588, %v3590
        %3713 = vadd.xlane.f32.xlu0 %v3712
        %v3714 = vpop.xlane.xlu0 %3713
        %v3715 = vadd.f32 %v3592, %v3594
        %3716 = vadd.xlane.f32.xlu0 %v3715
        %v3717 = vpop.xlane.xlu0 %3716
        %v3718 = vadd.f32 %v3596, %v3598
        %3719 = vadd.xlane.f32.xlu0 %v3718
        %v3720 = vpop.xlane.xlu0 %3719
        %v3721 = vadd.f32 %v3600, %v3602
        %3722 = vadd.xlane.f32.xlu0 %v3721
        %v3723 = vpop.xlane.xlu0 %3722
        %v3724 = vadd.f32 %v3604, %v3606
        %3725 = vadd.xlane.f32.xlu0 %v3724
        %v3726 = vpop.xlane.xlu0 %3725
        %v3727 = vadd.f32 %v3608, %v3610
        %3728 = vadd.xlane.f32.xlu0 %v3727
        %v3729 = vpop.xlane.xlu0 %3728
        %v3730 = vadd.f32 %v3612, %v3614
        %3731 = vadd.xlane.f32.xlu0 %v3730
        %v3732 = vpop.xlane.xlu0 %3731
        %v3733 = vadd.f32 %v3616, %v3618
        %3734 = vadd.xlane.f32.xlu0 %v3733
        %v3735 = vpop.xlane.xlu0 %3734
        %v3736 = vadd.f32 %v3620, %v3622
        %3737 = vadd.xlane.f32.xlu0 %v3736
        %v3738 = vpop.xlane.xlu0 %3737
        %v3739 = vadd.f32 %v3624, %v3626
        %3740 = vadd.xlane.f32.xlu0 %v3739
        %v3741 = vpop.xlane.xlu0 %3740
        %v3742 = vadd.f32 %v3628, %v3630
        %3743 = vadd.xlane.f32.xlu0 %v3742
        %v3744 = vpop.xlane.xlu0 %3743
        %v3745 = vadd.f32 %v3632, %v3634
        %3746 = vadd.xlane.f32.xlu0 %v3745
        %v3747 = vpop.xlane.xlu0 %3746
        %v3748 = vadd.f32 %v3636, %v3638
        %3749 = vadd.xlane.f32.xlu0 %v3748
        %v3750 = vpop.xlane.xlu0 %3749
        %v3751 = vadd.f32 %v3640, %v3642
        %3752 = vadd.xlane.f32.xlu0 %v3751
        %v3753 = vpop.xlane.xlu0 %3752
        %v3754 = vadd.f32 %v3644, %v3646
        %3755 = vadd.xlane.f32.xlu0 %v3754
        %v3756 = vpop.xlane.xlu0 %3755
        %v3757 = vadd.f32 %v3648, %v3650
        %3758 = vadd.xlane.f32.xlu0 %v3757
        %v3759 = vpop.xlane.xlu0 %3758
        %v3760 = vadd.f32 %v3652, %v3654
        %3761 = vadd.xlane.f32.xlu0 %v3760
        %v3762 = vpop.xlane.xlu0 %3761
        %v3763 = vadd.f32 %v3656, %v3658
        %3764 = vadd.xlane.f32.xlu0 %v3763
        %v3765 = vpop.xlane.xlu0 %3764
        %v3766 = vadd.f32 %v3660, %v3662
        %3767 = vadd.xlane.f32.xlu0 %v3766
        %v3768 = vpop.xlane.xlu0 %3767
        %v3769 = vadd.f32 %v3664, %v3666
        %3770 = vadd.xlane.f32.xlu0 %v3769
        %v3771 = vpop.xlane.xlu0 %3770
        %v3772 = vadd.f32 %v3668, %v3670
        %3773 = vadd.xlane.f32.xlu0 %v3772
        %v3774 = vpop.xlane.xlu0 %3773
        %v3775 = vadd.f32 %v3672, %v3674
        %3776 = vadd.xlane.f32.xlu0 %v3775
        %v3777 = vpop.xlane.xlu0 %3776
        %v3778 = vadd.f32 %v3676, %v3678
        %3779 = vadd.xlane.f32.xlu0 %v3778
        %v3780 = vpop.xlane.xlu0 %3779
        %v3781 = vadd.f32 %v3680, %v3682
        %3782 = vadd.xlane.f32.xlu0 %v3781
        %v3783 = vpop.xlane.xlu0 %3782
        %v3784 = vadd.f32 %v3684, %v3686
        %3785 = vadd.xlane.f32.xlu0 %v3784
        %v3786 = vpop.xlane.xlu0 %3785
        %v3787 = vadd.f32 %v3688, %v3690
        %3788 = vadd.xlane.f32.xlu0 %v3787
        %v3789 = vpop.xlane.xlu0 %3788
        %v3790 = vadd.f32 %v3692, %v3694
        %3791 = vadd.xlane.f32.xlu0 %v3790
        %v3792 = vpop.xlane.xlu0 %3791
        %v3793 = vadd.f32 %v3696, %v3698
        %3794 = vadd.xlane.f32.xlu0 %v3793
        %v3795 = vpop.xlane.xlu0 %3794
        %v3796 = vadd.f32 %v3700, %v3702
        %3797 = vadd.xlane.f32.xlu0 %v3796
        %v3798 = vpop.xlane.xlu0 %3797
        %v3799 = vpack.c.bf16 %v3578, %v3576
        %v3800 = vpack.c.bf16 %v3582, %v3580
        %v3801 = vpack.c.bf16 %v3586, %v3584
        %v3802 = vpack.c.bf16 %v3590, %v3588
        %v3803 = vpack.c.bf16 %v3594, %v3592
        %v3804 = vpack.c.bf16 %v3598, %v3596
        %v3805 = vpack.c.bf16 %v3602, %v3600
        %v3806 = vpack.c.bf16 %v3606, %v3604
        %v3807 = vpack.c.bf16 %v3610, %v3608
        %v3808 = vpack.c.bf16 %v3614, %v3612
        %v3809 = vpack.c.bf16 %v3618, %v3616
        %v3810 = vpack.c.bf16 %v3622, %v3620
        %v3811 = vpack.c.bf16 %v3626, %v3624
        %v3812 = vpack.c.bf16 %v3630, %v3628
        %v3813 = vpack.c.bf16 %v3634, %v3632
        %v3814 = vpack.c.bf16 %v3638, %v3636
        %v3815 = vpack.c.bf16 %v3642, %v3640
        %v3816 = vpack.c.bf16 %v3646, %v3644
        %v3817 = vpack.c.bf16 %v3650, %v3648
        %v3818 = vpack.c.bf16 %v3654, %v3652
        %v3819 = vpack.c.bf16 %v3658, %v3656
        %v3820 = vpack.c.bf16 %v3662, %v3660
        %v3821 = vpack.c.bf16 %v3666, %v3664
        %v3822 = vpack.c.bf16 %v3670, %v3668
        %v3823 = vpack.c.bf16 %v3674, %v3672
        %v3824 = vpack.c.bf16 %v3678, %v3676
        %v3825 = vpack.c.bf16 %v3682, %v3680
        %v3826 = vpack.c.bf16 %v3686, %v3684
        %v3827 = vpack.c.bf16 %v3690, %v3688
        %v3828 = vpack.c.bf16 %v3694, %v3692
        %v3829 = vpack.c.bf16 %v3698, %v3696
        %v3830 = vpack.c.bf16 %v3702, %v3700
        %v3847 = vunpack.c.l.b16 %v3799
        %v3848 = vunpack.c.h.b16 %v3799
        %v3849 = vunpack.c.l.b16 %v3800
        %v3850 = vunpack.c.h.b16 %v3800
        %v3851 = vunpack.c.l.b16 %v3801
        %v3852 = vunpack.c.h.b16 %v3801
        %v3853 = vunpack.c.l.b16 %v3802
        %v3854 = vunpack.c.h.b16 %v3802
        %v3855 = vunpack.c.l.b16 %v3803
        %v3856 = vunpack.c.h.b16 %v3803
        %v3857 = vunpack.c.l.b16 %v3804
        %v3858 = vunpack.c.h.b16 %v3804
        %v3859 = vunpack.c.l.b16 %v3805
        %v3860 = vunpack.c.h.b16 %v3805
        %v3861 = vunpack.c.l.b16 %v3806
        %v3862 = vunpack.c.h.b16 %v3806
        %v3863 = vunpack.c.l.b16 %v3807
        %v3864 = vunpack.c.h.b16 %v3807
        %v3865 = vunpack.c.l.b16 %v3808
        %v3866 = vunpack.c.h.b16 %v3808
        %v3867 = vunpack.c.l.b16 %v3809
        %v3868 = vunpack.c.h.b16 %v3809
        %v3869 = vunpack.c.l.b16 %v3810
        %v3870 = vunpack.c.h.b16 %v3810
        %v3871 = vunpack.c.l.b16 %v3811
        %v3872 = vunpack.c.h.b16 %v3811
        %v3873 = vunpack.c.l.b16 %v3812
        %v3874 = vunpack.c.h.b16 %v3812
        %v3875 = vunpack.c.l.b16 %v3813
        %v3876 = vunpack.c.h.b16 %v3813
        %v3877 = vunpack.c.l.b16 %v3814
        %v3878 = vunpack.c.h.b16 %v3814
        %v3879 = vpack.c.b16 %v3849, %v3847
        %v3880 = vpack.c.b16 %v3850, %v3848
        %v3881 = vpack.c.b16 %v3853, %v3851
        %v3882 = vpack.c.b16 %v3854, %v3852
        %v3883 = vpack.c.b16 %v3857, %v3855
        %v3884 = vpack.c.b16 %v3858, %v3856
        %v3885 = vpack.c.b16 %v3861, %v3859
        %v3886 = vpack.c.b16 %v3862, %v3860
        %v3887 = vpack.c.b16 %v3865, %v3863
        %v3888 = vpack.c.b16 %v3866, %v3864
        %v3889 = vpack.c.b16 %v3869, %v3867
        %v3890 = vpack.c.b16 %v3870, %v3868
        %v3891 = vpack.c.b16 %v3873, %v3871
        %v3892 = vpack.c.b16 %v3874, %v3872
        %v3893 = vpack.c.b16 %v3877, %v3875
        %v3894 = vpack.c.b16 %v3878, %v3876
        %v3943 = vunpack.c.l.b16 %v2770
        %v3944 = vunpack.c.l.b16 %v2771
        %v3945 = vunpack.c.l.b16 %v2772
        %v3946 = vunpack.c.l.b16 %v2773
        %v3947 = vunpack.c.l.b16 %v2774
        %v3948 = vunpack.c.l.b16 %v2775
        %v3949 = vunpack.c.l.b16 %v2776
        %v3950 = vunpack.c.l.b16 %v2777
        %v3951 = vunpack.c.l.b16 %v2778
        %v3952 = vunpack.c.l.b16 %v2779
        %v3953 = vunpack.c.l.b16 %v2780
        %v3954 = vunpack.c.l.b16 %v2781
        %v3955 = vunpack.c.l.b16 %v2782
        %v3956 = vunpack.c.l.b16 %v2783
        %v3957 = vunpack.c.l.b16 %v2784
        %v3958 = vunpack.c.l.b16 %v2785
        %v3959 = vunpack.c.l.b16 %v2786
        %v3960 = vunpack.c.l.b16 %v2787
        %v3961 = vunpack.c.l.b16 %v2788
        %v3962 = vunpack.c.l.b16 %v2789
        %v3963 = vunpack.c.l.b16 %v2790
        %v3964 = vunpack.c.l.b16 %v2791
        %v3965 = vunpack.c.l.b16 %v2792
        %v3966 = vunpack.c.l.b16 %v2793
        %v3967 = vunpack.c.l.b16 %v2794
        %v3968 = vunpack.c.l.b16 %v2795
        %v3969 = vunpack.c.l.b16 %v2796
        %v3970 = vunpack.c.l.b16 %v2797
        %v3971 = vunpack.c.l.b16 %v2798
        %v3972 = vunpack.c.l.b16 %v2799
        %v3973 = vunpack.c.l.b16 %v2800
        %v3974 = vunpack.c.l.b16 %v2801
        %v3975 = vpack.c.b16 %v3944, %v3943
        %v3976 = vpack.c.b16 %v3946, %v3945
        %v3977 = vpack.c.b16 %v3948, %v3947
        %v3978 = vpack.c.b16 %v3950, %v3949
        %v3979 = vpack.c.b16 %v3952, %v3951
        %v3980 = vpack.c.b16 %v3954, %v3953
        %v3981 = vpack.c.b16 %v3956, %v3955
        %v3982 = vpack.c.b16 %v3958, %v3957
        %v3983 = vpack.c.b16 %v3960, %v3959
        %v3984 = vpack.c.b16 %v3962, %v3961
        %v3985 = vpack.c.b16 %v3964, %v3963
        %v3986 = vpack.c.b16 %v3966, %v3965
        %v3987 = vpack.c.b16 %v3968, %v3967
        %v3988 = vpack.c.b16 %v3970, %v3969
        %v3989 = vpack.c.b16 %v3972, %v3971
        %v3990 = vpack.c.b16 %v3974, %v3973
        %4007 = vmatpush.bf16.msra.mxu0 %v3982
        %4008 = vmatpush.bf16.msra.mxu0 %v3981
        %4009 = vmatpush.bf16.msra.mxu0 %v3980
        %4010 = vmatpush.bf16.msra.mxu0 %v3979
        %4011 = vmatpush.bf16.msra.mxu0 %v3978
        %4012 = vmatpush.bf16.msra.mxu0 %v3977
        %4013 = vmatpush.bf16.msra.mxu0 %v3976
        %4014 = vmatpush.bf16.msra.mxu0 %v3975
        %4015 = vmatmul.bf16.gmra.mxu0 %v3879
        %v4016 = vpop.f32.mrf.mxu0
        %v4017 = vadd.f32 0.0, %v4016
        %v4018 = vpop.f32.mrf.mxu0
        %v4019 = vadd.f32 0.0, %v4018
        %4020 = vmatmul.bf16.gmra.mxu0 %v3881
        %v4021 = vpop.f32.mrf.mxu0
        %v4022 = vadd.f32 0.0, %v4021
        %v4023 = vpop.f32.mrf.mxu0
        %v4024 = vadd.f32 0.0, %v4023
        %4025 = vmatmul.bf16.gmra.mxu0 %v3883
        %v4026 = vpop.f32.mrf.mxu0
        %v4027 = vadd.f32 0.0, %v4026
        %v4028 = vpop.f32.mrf.mxu0
        %v4029 = vadd.f32 0.0, %v4028
        %4030 = vmatmul.bf16.gmra.mxu0 %v3885
        %v4031 = vpop.f32.mrf.mxu0
        %v4032 = vadd.f32 0.0, %v4031
        %v4033 = vpop.f32.mrf.mxu0
        %v4034 = vadd.f32 0.0, %v4033
        %4035 = vmatmul.bf16.gmra.mxu0 %v3887
        %v4036 = vpop.f32.mrf.mxu0
        %v4037 = vadd.f32 0.0, %v4036
        %v4038 = vpop.f32.mrf.mxu0
        %v4039 = vadd.f32 0.0, %v4038
        %4040 = vmatmul.bf16.gmra.mxu0 %v3889
        %v4041 = vpop.f32.mrf.mxu0
        %v4042 = vadd.f32 0.0, %v4041
        %v4043 = vpop.f32.mrf.mxu0
        %v4044 = vadd.f32 0.0, %v4043
        %4045 = vmatmul.bf16.gmra.mxu0 %v3891
        %v4046 = vpop.f32.mrf.mxu0
        %v4047 = vadd.f32 0.0, %v4046
        %v4048 = vpop.f32.mrf.mxu0
        %v4049 = vadd.f32 0.0, %v4048
        %4050 = vmatmul.bf16.gmra.mxu0 %v3893
        %v4051 = vpop.f32.mrf.mxu0
        %v4052 = vadd.f32 0.0, %v4051
        %v4053 = vpop.f32.mrf.mxu0
        %v4054 = vadd.f32 0.0, %v4053
        %4055 = vdwg.mxu0
        %4056 = vmatpush.bf16.msra.mxu0 %v3990
        %4057 = vmatpush.bf16.msra.mxu0 %v3989
        %4058 = vmatpush.bf16.msra.mxu0 %v3988
        %4059 = vmatpush.bf16.msra.mxu0 %v3987
        %4060 = vmatpush.bf16.msra.mxu0 %v3986
        %4061 = vmatpush.bf16.msra.mxu0 %v3985
        %4062 = vmatpush.bf16.msra.mxu0 %v3984
        %4063 = vmatpush.bf16.msra.mxu0 %v3983
        %4064 = vmatmul.bf16.gmra.mxu0 %v3880
        %v4065 = vpop.f32.mrf.mxu0
        %v4066 = vadd.f32 %v4017, %v4065
        %v4067 = vpop.f32.mrf.mxu0
        %v4068 = vadd.f32 %v4019, %v4067
        %4069 = vmatmul.bf16.gmra.mxu0 %v3882
        %v4070 = vpop.f32.mrf.mxu0
        %v4071 = vadd.f32 %v4022, %v4070
        %v4072 = vpop.f32.mrf.mxu0
        %v4073 = vadd.f32 %v4024, %v4072
        %4074 = vmatmul.bf16.gmra.mxu0 %v3884
        %v4075 = vpop.f32.mrf.mxu0
        %v4076 = vadd.f32 %v4027, %v4075
        %v4077 = vpop.f32.mrf.mxu0
        %v4078 = vadd.f32 %v4029, %v4077
        %4079 = vmatmul.bf16.gmra.mxu0 %v3886
        %v4080 = vpop.f32.mrf.mxu0
        %v4081 = vadd.f32 %v4032, %v4080
        %v4082 = vpop.f32.mrf.mxu0
        %v4083 = vadd.f32 %v4034, %v4082
        %4084 = vmatmul.bf16.gmra.mxu0 %v3888
        %v4085 = vpop.f32.mrf.mxu0
        %v4086 = vadd.f32 %v4037, %v4085
        %v4087 = vpop.f32.mrf.mxu0
        %v4088 = vadd.f32 %v4039, %v4087
        %4089 = vmatmul.bf16.gmra.mxu0 %v3890
        %v4090 = vpop.f32.mrf.mxu0
        %v4091 = vadd.f32 %v4042, %v4090
        %v4092 = vpop.f32.mrf.mxu0
        %v4093 = vadd.f32 %v4044, %v4092
        %4094 = vmatmul.bf16.gmra.mxu0 %v3892
        %v4095 = vpop.f32.mrf.mxu0
        %v4096 = vadd.f32 %v4047, %v4095
        %v4097 = vpop.f32.mrf.mxu0
        %v4098 = vadd.f32 %v4049, %v4097
        %4099 = vmatmul.bf16.gmra.mxu0 %v3894
        %v4100 = vpop.f32.mrf.mxu0
        %v4101 = vadd.f32 %v4052, %v4100
        %v4102 = vpop.f32.mrf.mxu0
        %v4103 = vadd.f32 %v4054, %v4102
        %4104 = vdwg.mxu0
        %v4121 = vunpack.c.l.b16 %v3815
        %v4122 = vunpack.c.h.b16 %v3815
        %v4123 = vunpack.c.l.b16 %v3816
        %v4124 = vunpack.c.h.b16 %v3816
        %v4125 = vunpack.c.l.b16 %v3817
        %v4126 = vunpack.c.h.b16 %v3817
        %v4127 = vunpack.c.l.b16 %v3818
        %v4128 = vunpack.c.h.b16 %v3818
        %v4129 = vunpack.c.l.b16 %v3819
        %v4130 = vunpack.c.h.b16 %v3819
        %v4131 = vunpack.c.l.b16 %v3820
        %v4132 = vunpack.c.h.b16 %v3820
        %v4133 = vunpack.c.l.b16 %v3821
        %v4134 = vunpack.c.h.b16 %v3821
        %v4135 = vunpack.c.l.b16 %v3822
        %v4136 = vunpack.c.h.b16 %v3822
        %v4137 = vunpack.c.l.b16 %v3823
        %v4138 = vunpack.c.h.b16 %v3823
        %v4139 = vunpack.c.l.b16 %v3824
        %v4140 = vunpack.c.h.b16 %v3824
        %v4141 = vunpack.c.l.b16 %v3825
        %v4142 = vunpack.c.h.b16 %v3825
        %v4143 = vunpack.c.l.b16 %v3826
        %v4144 = vunpack.c.h.b16 %v3826
        %v4145 = vunpack.c.l.b16 %v3827
        %v4146 = vunpack.c.h.b16 %v3827
        %v4147 = vunpack.c.l.b16 %v3828
        %v4148 = vunpack.c.h.b16 %v3828
        %v4149 = vunpack.c.l.b16 %v3829
        %v4150 = vunpack.c.h.b16 %v3829
        %v4151 = vunpack.c.l.b16 %v3830
        %v4152 = vunpack.c.h.b16 %v3830
        %v4153 = vpack.c.b16 %v4123, %v4121
        %v4154 = vpack.c.b16 %v4124, %v4122
        %v4155 = vpack.c.b16 %v4127, %v4125
        %v4156 = vpack.c.b16 %v4128, %v4126
        %v4157 = vpack.c.b16 %v4131, %v4129
        %v4158 = vpack.c.b16 %v4132, %v4130
        %v4159 = vpack.c.b16 %v4135, %v4133
        %v4160 = vpack.c.b16 %v4136, %v4134
        %v4161 = vpack.c.b16 %v4139, %v4137
        %v4162 = vpack.c.b16 %v4140, %v4138
        %v4163 = vpack.c.b16 %v4143, %v4141
        %v4164 = vpack.c.b16 %v4144, %v4142
        %v4165 = vpack.c.b16 %v4147, %v4145
        %v4166 = vpack.c.b16 %v4148, %v4146
        %v4167 = vpack.c.b16 %v4151, %v4149
        %v4168 = vpack.c.b16 %v4152, %v4150
        %v4217 = vunpack.c.l.b16 %v2802
        %v4218 = vunpack.c.l.b16 %v2803
        %v4219 = vunpack.c.l.b16 %v2804
        %v4220 = vunpack.c.l.b16 %v2805
        %v4221 = vunpack.c.l.b16 %v2806
        %v4222 = vunpack.c.l.b16 %v2807
        %v4223 = vunpack.c.l.b16 %v2808
        %v4224 = vunpack.c.l.b16 %v2809
        %v4225 = vunpack.c.l.b16 %v2810
        %v4226 = vunpack.c.l.b16 %v2811
        %v4227 = vunpack.c.l.b16 %v2812
        %v4228 = vunpack.c.l.b16 %v2813
        %v4229 = vunpack.c.l.b16 %v2814
        %v4230 = vunpack.c.l.b16 %v2815
        %v4231 = vunpack.c.l.b16 %v2816
        %v4232 = vunpack.c.l.b16 %v2817
        %v4233 = vunpack.c.l.b16 %v2818
        %v4234 = vunpack.c.l.b16 %v2819
        %v4235 = vunpack.c.l.b16 %v2820
        %v4236 = vunpack.c.l.b16 %v2821
        %v4237 = vunpack.c.l.b16 %v2822
        %v4238 = vunpack.c.l.b16 %v2823
        %v4239 = vunpack.c.l.b16 %v2824
        %v4240 = vunpack.c.l.b16 %v2825
        %v4241 = vunpack.c.l.b16 %v2826
        %v4242 = vunpack.c.l.b16 %v2827
        %v4243 = vunpack.c.l.b16 %v2828
        %v4244 = vunpack.c.l.b16 %v2829
        %v4245 = vunpack.c.l.b16 %v2830
        %v4246 = vunpack.c.l.b16 %v2831
        %v4247 = vunpack.c.l.b16 %v2832
        %v4248 = vunpack.c.l.b16 %v2833
        %v4249 = vpack.c.b16 %v4218, %v4217
        %v4250 = vpack.c.b16 %v4220, %v4219
        %v4251 = vpack.c.b16 %v4222, %v4221
        %v4252 = vpack.c.b16 %v4224, %v4223
        %v4253 = vpack.c.b16 %v4226, %v4225
        %v4254 = vpack.c.b16 %v4228, %v4227
        %v4255 = vpack.c.b16 %v4230, %v4229
        %v4256 = vpack.c.b16 %v4232, %v4231
        %v4257 = vpack.c.b16 %v4234, %v4233
        %v4258 = vpack.c.b16 %v4236, %v4235
        %v4259 = vpack.c.b16 %v4238, %v4237
        %v4260 = vpack.c.b16 %v4240, %v4239
        %v4261 = vpack.c.b16 %v4242, %v4241
        %v4262 = vpack.c.b16 %v4244, %v4243
        %v4263 = vpack.c.b16 %v4246, %v4245
        %v4264 = vpack.c.b16 %v4248, %v4247
        %4281 = vmatpush.bf16.msra.mxu0 %v4256
        %4282 = vmatpush.bf16.msra.mxu0 %v4255
        %4283 = vmatpush.bf16.msra.mxu0 %v4254
        %4284 = vmatpush.bf16.msra.mxu0 %v4253
        %4285 = vmatpush.bf16.msra.mxu0 %v4252
        %4286 = vmatpush.bf16.msra.mxu0 %v4251
        %4287 = vmatpush.bf16.msra.mxu0 %v4250
        %4288 = vmatpush.bf16.msra.mxu0 %v4249
        %4289 = vmatmul.bf16.gmra.mxu0 %v4153
        %v4290 = vpop.f32.mrf.mxu0
        %v4291 = vadd.f32 0.0, %v4290
        %v4292 = vpop.f32.mrf.mxu0
        %v4293 = vadd.f32 0.0, %v4292
        %4294 = vmatmul.bf16.gmra.mxu0 %v4155
        %v4295 = vpop.f32.mrf.mxu0
        %v4296 = vadd.f32 0.0, %v4295
        %v4297 = vpop.f32.mrf.mxu0
        %v4298 = vadd.f32 0.0, %v4297
        %4299 = vmatmul.bf16.gmra.mxu0 %v4157
        %v4300 = vpop.f32.mrf.mxu0
        %v4301 = vadd.f32 0.0, %v4300
        %v4302 = vpop.f32.mrf.mxu0
        %v4303 = vadd.f32 0.0, %v4302
        %4304 = vmatmul.bf16.gmra.mxu0 %v4159
        %v4305 = vpop.f32.mrf.mxu0
        %v4306 = vadd.f32 0.0, %v4305
        %v4307 = vpop.f32.mrf.mxu0
        %v4308 = vadd.f32 0.0, %v4307
        %4309 = vmatmul.bf16.gmra.mxu0 %v4161
        %v4310 = vpop.f32.mrf.mxu0
        %v4311 = vadd.f32 0.0, %v4310
        %v4312 = vpop.f32.mrf.mxu0
        %v4313 = vadd.f32 0.0, %v4312
        %4314 = vmatmul.bf16.gmra.mxu0 %v4163
        %v4315 = vpop.f32.mrf.mxu0
        %v4316 = vadd.f32 0.0, %v4315
        %v4317 = vpop.f32.mrf.mxu0
        %v4318 = vadd.f32 0.0, %v4317
        %4319 = vmatmul.bf16.gmra.mxu0 %v4165
        %v4320 = vpop.f32.mrf.mxu0
        %v4321 = vadd.f32 0.0, %v4320
        %v4322 = vpop.f32.mrf.mxu0
        %v4323 = vadd.f32 0.0, %v4322
        %4324 = vmatmul.bf16.gmra.mxu0 %v4167
        %v4325 = vpop.f32.mrf.mxu0
        %v4326 = vadd.f32 0.0, %v4325
        %v4327 = vpop.f32.mrf.mxu0
        %v4328 = vadd.f32 0.0, %v4327
        %4329 = vdwg.mxu0
        %4330 = vmatpush.bf16.msra.mxu0 %v4264
        %4331 = vmatpush.bf16.msra.mxu0 %v4263
        %4332 = vmatpush.bf16.msra.mxu0 %v4262
        %4333 = vmatpush.bf16.msra.mxu0 %v4261
        %4334 = vmatpush.bf16.msra.mxu0 %v4260
        %4335 = vmatpush.bf16.msra.mxu0 %v4259
        %4336 = vmatpush.bf16.msra.mxu0 %v4258
        %4337 = vmatpush.bf16.msra.mxu0 %v4257
        %4338 = vmatmul.bf16.gmra.mxu0 %v4154
        %v4339 = vpop.f32.mrf.mxu0
        %v4340 = vadd.f32 %v4291, %v4339
        %v4341 = vpop.f32.mrf.mxu0
        %v4342 = vadd.f32 %v4293, %v4341
        %4343 = vmatmul.bf16.gmra.mxu0 %v4156
        %v4344 = vpop.f32.mrf.mxu0
        %v4345 = vadd.f32 %v4296, %v4344
        %v4346 = vpop.f32.mrf.mxu0
        %v4347 = vadd.f32 %v4298, %v4346
        %4348 = vmatmul.bf16.gmra.mxu0 %v4158
        %v4349 = vpop.f32.mrf.mxu0
        %v4350 = vadd.f32 %v4301, %v4349
        %v4351 = vpop.f32.mrf.mxu0
        %v4352 = vadd.f32 %v4303, %v4351
        %4353 = vmatmul.bf16.gmra.mxu0 %v4160
        %v4354 = vpop.f32.mrf.mxu0
        %v4355 = vadd.f32 %v4306, %v4354
        %v4356 = vpop.f32.mrf.mxu0
        %v4357 = vadd.f32 %v4308, %v4356
        %4358 = vmatmul.bf16.gmra.mxu0 %v4162
        %v4359 = vpop.f32.mrf.mxu0
        %v4360 = vadd.f32 %v4311, %v4359
        %v4361 = vpop.f32.mrf.mxu0
        %v4362 = vadd.f32 %v4313, %v4361
        %4363 = vmatmul.bf16.gmra.mxu0 %v4164
        %v4364 = vpop.f32.mrf.mxu0
        %v4365 = vadd.f32 %v4316, %v4364
        %v4366 = vpop.f32.mrf.mxu0
        %v4367 = vadd.f32 %v4318, %v4366
        %4368 = vmatmul.bf16.gmra.mxu0 %v4166
        %v4369 = vpop.f32.mrf.mxu0
        %v4370 = vadd.f32 %v4321, %v4369
        %v4371 = vpop.f32.mrf.mxu0
        %v4372 = vadd.f32 %v4323, %v4371
        %4373 = vmatmul.bf16.gmra.mxu0 %v4168
        %v4374 = vpop.f32.mrf.mxu0
        %v4375 = vadd.f32 %v4326, %v4374
        %v4376 = vpop.f32.mrf.mxu0
        %v4377 = vadd.f32 %v4328, %v4376
        %4378 = vdwg.mxu0
        %v4379 = vrcp.pop %v3705
        %v4380 = vrcp.pop %v3708
        %v4381 = vrcp.pop %v3711
        %v4382 = vrcp.pop %v3714
        %v4383 = vrcp.pop %v3717
        %v4384 = vrcp.pop %v3720
        %v4385 = vrcp.pop %v3723
        %v4386 = vrcp.pop %v3726
        %v4387 = vrcp.pop %v3729
        %v4388 = vrcp.pop %v3732
        %v4389 = vrcp.pop %v3735
        %v4390 = vrcp.pop %v3738
        %v4391 = vrcp.pop %v3741
        %v4392 = vrcp.pop %v3744
        %v4393 = vrcp.pop %v3747
        %v4394 = vrcp.pop %v3750
        %v4395 = vrcp.pop %v3753
        %v4396 = vrcp.pop %v3756
        %v4397 = vrcp.pop %v3759
        %v4398 = vrcp.pop %v3762
        %v4399 = vrcp.pop %v3765
        %v4400 = vrcp.pop %v3768
        %v4401 = vrcp.pop %v3771
        %v4402 = vrcp.pop %v3774
        %v4403 = vrcp.pop %v3777
        %v4404 = vrcp.pop %v3780
        %v4405 = vrcp.pop %v3783
        %v4406 = vrcp.pop %v3786
        %v4407 = vrcp.pop %v3789
        %v4408 = vrcp.pop %v3792
        %v4409 = vrcp.pop %v3795
        %v4410 = vrcp.pop %v3798
        %v4411 = vmul.f32 %v4066, %v4379
        %v4412 = vmul.f32 %v4068, %v4380
        %v4413 = vmul.f32 %v4071, %v4381
        %v4414 = vmul.f32 %v4073, %v4382
        %v4415 = vmul.f32 %v4076, %v4383
        %v4416 = vmul.f32 %v4078, %v4384
        %v4417 = vmul.f32 %v4081, %v4385
        %v4418 = vmul.f32 %v4083, %v4386
        %v4419 = vmul.f32 %v4086, %v4387
        %v4420 = vmul.f32 %v4088, %v4388
        %v4421 = vmul.f32 %v4091, %v4389
        %v4422 = vmul.f32 %v4093, %v4390
        %v4423 = vmul.f32 %v4096, %v4391
        %v4424 = vmul.f32 %v4098, %v4392
        %v4425 = vmul.f32 %v4101, %v4393
        %v4426 = vmul.f32 %v4103, %v4394
        %v4427 = vmul.f32 %v4340, %v4395
        %v4428 = vmul.f32 %v4342, %v4396
        %v4429 = vmul.f32 %v4345, %v4397
        %v4430 = vmul.f32 %v4347, %v4398
        %v4431 = vmul.f32 %v4350, %v4399
        %v4432 = vmul.f32 %v4352, %v4400
        %v4433 = vmul.f32 %v4355, %v4401
        %v4434 = vmul.f32 %v4357, %v4402
        %v4435 = vmul.f32 %v4360, %v4403
        %v4436 = vmul.f32 %v4362, %v4404
        %v4437 = vmul.f32 %v4365, %v4405
        %v4438 = vmul.f32 %v4367, %v4406
        %v4439 = vmul.f32 %v4370, %v4407
        %v4440 = vmul.f32 %v4372, %v4408
        %v4441 = vmul.f32 %v4375, %v4409
        %v4442 = vmul.f32 %v4377, %v4410
        %v4443 = vpack.c.bf16 %v4411, %v4411
        %v4444 = vpack.c.bf16 %v4412, %v4412
        %v4445 = vpack.c.bf16 %v4413, %v4413
        %v4446 = vpack.c.bf16 %v4414, %v4414
        %v4447 = vpack.c.bf16 %v4415, %v4415
        %v4448 = vpack.c.bf16 %v4416, %v4416
        %v4449 = vpack.c.bf16 %v4417, %v4417
        %v4450 = vpack.c.bf16 %v4418, %v4418
        %v4451 = vpack.c.bf16 %v4419, %v4419
        %v4452 = vpack.c.bf16 %v4420, %v4420
        %v4453 = vpack.c.bf16 %v4421, %v4421
        %v4454 = vpack.c.bf16 %v4422, %v4422
        %v4455 = vpack.c.bf16 %v4423, %v4423
        %v4456 = vpack.c.bf16 %v4424, %v4424
        %v4457 = vpack.c.bf16 %v4425, %v4425
        %v4458 = vpack.c.bf16 %v4426, %v4426
        %v4459 = vpack.c.bf16 %v4427, %v4427
        %v4460 = vpack.c.bf16 %v4428, %v4428
        %v4461 = vpack.c.bf16 %v4429, %v4429
        %v4462 = vpack.c.bf16 %v4430, %v4430
        %v4463 = vpack.c.bf16 %v4431, %v4431
        %v4464 = vpack.c.bf16 %v4432, %v4432
        %v4465 = vpack.c.bf16 %v4433, %v4433
        %v4466 = vpack.c.bf16 %v4434, %v4434
        %v4467 = vpack.c.bf16 %v4435, %v4435
        %v4468 = vpack.c.bf16 %v4436, %v4436
        %v4469 = vpack.c.bf16 %v4437, %v4437
        %v4470 = vpack.c.bf16 %v4438, %v4438
        %v4471 = vpack.c.bf16 %v4439, %v4439
        %v4472 = vpack.c.bf16 %v4440, %v4440
        %v4473 = vpack.c.bf16 %v4441, %v4441
        %v4474 = vpack.c.bf16 %v4442, %v4442
        %v4475 = vld [vmem:[#allocation14] sm:$0xf]
        %v4476 = vld [vmem:[#allocation14 + $0x4] sm:$0xf]
        %v4477 = vld [vmem:[#allocation14 + $0x8] sm:$0xf]
        %v4478 = vld [vmem:[#allocation14 + $0xc] sm:$0xf]
        %v4479 = vld [vmem:[#allocation14 + $0x10] sm:$0xf]
        %v4480 = vld [vmem:[#allocation14 + $0x14] sm:$0xf]
        %v4481 = vld [vmem:[#allocation14 + $0x18] sm:$0xf]
        %v4482 = vld [vmem:[#allocation14 + $0x1c] sm:$0xf]
        %v4483 = vld [vmem:[#allocation14 + $0x20] sm:$0xf]
        %v4484 = vld [vmem:[#allocation14 + $0x24] sm:$0xf]
        %v4485 = vld [vmem:[#allocation14 + $0x28] sm:$0xf]
        %v4486 = vld [vmem:[#allocation14 + $0x2c] sm:$0xf]
        %v4487 = vld [vmem:[#allocation14 + $0x30] sm:$0xf]
        %v4488 = vld [vmem:[#allocation14 + $0x34] sm:$0xf]
        %v4489 = vld [vmem:[#allocation14 + $0x38] sm:$0xf]
        %v4490 = vld [vmem:[#allocation14 + $0x3c] sm:$0xf]
        %v4507 = vunpack.c.l.b16 %v4443
        %v4508 = vunpack.c.l.b16 %v4444
        %v4509 = vunpack.c.l.b16 %v4445
        %v4510 = vunpack.c.l.b16 %v4446
        %v4511 = vunpack.c.l.b16 %v4447
        %v4512 = vunpack.c.l.b16 %v4448
        %v4513 = vunpack.c.l.b16 %v4449
        %v4514 = vunpack.c.l.b16 %v4450
        %v4515 = vunpack.c.l.b16 %v4451
        %v4516 = vunpack.c.l.b16 %v4452
        %v4517 = vunpack.c.l.b16 %v4453
        %v4518 = vunpack.c.l.b16 %v4454
        %v4519 = vunpack.c.l.b16 %v4455
        %v4520 = vunpack.c.l.b16 %v4456
        %v4521 = vunpack.c.l.b16 %v4457
        %v4522 = vunpack.c.l.b16 %v4458
        %v4523 = vpack.c.b16 %v4508, %v4507
        %v4524 = vpack.c.b16 %v4510, %v4509
        %v4525 = vpack.c.b16 %v4512, %v4511
        %v4526 = vpack.c.b16 %v4514, %v4513
        %v4527 = vpack.c.b16 %v4516, %v4515
        %v4528 = vpack.c.b16 %v4518, %v4517
        %v4529 = vpack.c.b16 %v4520, %v4519
        %v4530 = vpack.c.b16 %v4522, %v4521
        %v4539 = vunpack.c.l.b16 %v4475
        %v4540 = vunpack.c.l.b16 %v4476
        %v4541 = vunpack.c.l.b16 %v4477
        %v4542 = vunpack.c.l.b16 %v4478
        %v4543 = vunpack.c.l.b16 %v4479
        %v4544 = vunpack.c.l.b16 %v4480
        %v4545 = vunpack.c.l.b16 %v4481
        %v4546 = vunpack.c.l.b16 %v4482
        %v4547 = vpack.c.b16 %v4540, %v4539
        %v4548 = vpack.c.b16 %v4542, %v4541
        %v4549 = vpack.c.b16 %v4544, %v4543
        %v4550 = vpack.c.b16 %v4546, %v4545
        %v4556 = vsel %vm2954, %v4523, 0
        %v4559 = vsel %vm2954, %v4524, 0
        %v4562 = vsel %vm2954, %v4525, 0
        %v4565 = vsel %vm2954, %v4526, 0
        %v4568 = vsel %vm2954, %v4527, 0
        %v4571 = vsel %vm2954, %v4528, 0
        %v4574 = vsel %vm2954, %v4529, 0
        %v4577 = vsel %vm2954, %v4530, 0
        %4579 = vmatpush.bf16.msra.mxu0 0
        %4580 = vmatpush.bf16.msra.mxu0 0
        %4581 = vmatpush.bf16.msra.mxu0 0
        %4582 = vmatpush.bf16.msra.mxu0 0
        %4583 = vmatpush.bf16.msra.mxu0 %v4550
        %4584 = vmatpush.bf16.msra.mxu0 %v4549
        %4585 = vmatpush.bf16.msra.mxu0 %v4548
        %4586 = vmatpush.bf16.msra.mxu0 %v4547
        %4587 = vmatmul.bf16.gmra.mxu0 %v4556
        %v4588 = vpop.f32.mrf.mxu0
        %v4589 = vadd.f32 0.0, %v4588
        %v4590 = vpop.f32.mrf.mxu0
        %v4591 = vadd.f32 0.0, %v4590
        %4592 = vmatmul.bf16.gmra.mxu0 %v4559
        %v4593 = vpop.f32.mrf.mxu0
        %v4594 = vadd.f32 0.0, %v4593
        %v4595 = vpop.f32.mrf.mxu0
        %v4596 = vadd.f32 0.0, %v4595
        %4597 = vmatmul.bf16.gmra.mxu0 %v4562
        %v4598 = vpop.f32.mrf.mxu0
        %v4599 = vadd.f32 0.0, %v4598
        %v4600 = vpop.f32.mrf.mxu0
        %v4601 = vadd.f32 0.0, %v4600
        %4602 = vmatmul.bf16.gmra.mxu0 %v4565
        %v4603 = vpop.f32.mrf.mxu0
        %v4604 = vadd.f32 0.0, %v4603
        %v4605 = vpop.f32.mrf.mxu0
        %v4606 = vadd.f32 0.0, %v4605
        %4607 = vmatmul.bf16.gmra.mxu0 %v4568
        %v4608 = vpop.f32.mrf.mxu0
        %v4609 = vadd.f32 0.0, %v4608
        %v4610 = vpop.f32.mrf.mxu0
        %v4611 = vadd.f32 0.0, %v4610
        %4612 = vmatmul.bf16.gmra.mxu0 %v4571
        %v4613 = vpop.f32.mrf.mxu0
        %v4614 = vadd.f32 0.0, %v4613
        %v4615 = vpop.f32.mrf.mxu0
        %v4616 = vadd.f32 0.0, %v4615
        %4617 = vmatmul.bf16.gmra.mxu0 %v4574
        %v4618 = vpop.f32.mrf.mxu0
        %v4619 = vadd.f32 0.0, %v4618
        %v4620 = vpop.f32.mrf.mxu0
        %v4621 = vadd.f32 0.0, %v4620
        %4622 = vmatmul.bf16.gmra.mxu0 %v4577
        %v4623 = vpop.f32.mrf.mxu0
        %v4624 = vadd.f32 0.0, %v4623
        %v4625 = vpop.f32.mrf.mxu0
        %v4626 = vadd.f32 0.0, %v4625
        %4627 = vdwg.mxu0
        %v4644 = vunpack.c.l.b16 %v4459
        %v4645 = vunpack.c.l.b16 %v4460
        %v4646 = vunpack.c.l.b16 %v4461
        %v4647 = vunpack.c.l.b16 %v4462
        %v4648 = vunpack.c.l.b16 %v4463
        %v4649 = vunpack.c.l.b16 %v4464
        %v4650 = vunpack.c.l.b16 %v4465
        %v4651 = vunpack.c.l.b16 %v4466
        %v4652 = vunpack.c.l.b16 %v4467
        %v4653 = vunpack.c.l.b16 %v4468
        %v4654 = vunpack.c.l.b16 %v4469
        %v4655 = vunpack.c.l.b16 %v4470
        %v4656 = vunpack.c.l.b16 %v4471
        %v4657 = vunpack.c.l.b16 %v4472
        %v4658 = vunpack.c.l.b16 %v4473
        %v4659 = vunpack.c.l.b16 %v4474
        %v4660 = vpack.c.b16 %v4645, %v4644
        %v4661 = vpack.c.b16 %v4647, %v4646
        %v4662 = vpack.c.b16 %v4649, %v4648
        %v4663 = vpack.c.b16 %v4651, %v4650
        %v4664 = vpack.c.b16 %v4653, %v4652
        %v4665 = vpack.c.b16 %v4655, %v4654
        %v4666 = vpack.c.b16 %v4657, %v4656
        %v4667 = vpack.c.b16 %v4659, %v4658
        %v4676 = vunpack.c.l.b16 %v4483
        %v4677 = vunpack.c.l.b16 %v4484
        %v4678 = vunpack.c.l.b16 %v4485
        %v4679 = vunpack.c.l.b16 %v4486
        %v4680 = vunpack.c.l.b16 %v4487
        %v4681 = vunpack.c.l.b16 %v4488
        %v4682 = vunpack.c.l.b16 %v4489
        %v4683 = vunpack.c.l.b16 %v4490
        %v4684 = vpack.c.b16 %v4677, %v4676
        %v4685 = vpack.c.b16 %v4679, %v4678
        %v4686 = vpack.c.b16 %v4681, %v4680
        %v4687 = vpack.c.b16 %v4683, %v4682
        %v4693 = vsel %vm2954, %v4660, 0
        %v4696 = vsel %vm2954, %v4661, 0
        %v4699 = vsel %vm2954, %v4662, 0
        %v4702 = vsel %vm2954, %v4663, 0
        %v4705 = vsel %vm2954, %v4664, 0
        %v4708 = vsel %vm2954, %v4665, 0
        %v4711 = vsel %vm2954, %v4666, 0
        %v4714 = vsel %vm2954, %v4667, 0
        %4716 = vmatpush.bf16.msra.mxu0 0
        %4717 = vmatpush.bf16.msra.mxu0 0
        %4718 = vmatpush.bf16.msra.mxu0 0
        %4719 = vmatpush.bf16.msra.mxu0 0
        %4720 = vmatpush.bf16.msra.mxu0 %v4687
        %4721 = vmatpush.bf16.msra.mxu0 %v4686
        %4722 = vmatpush.bf16.msra.mxu0 %v4685
        %4723 = vmatpush.bf16.msra.mxu0 %v4684
        %4724 = vmatmul.bf16.gmra.mxu0 %v4693
        %v4725 = vpop.f32.mrf.mxu0
        %v4726 = vadd.f32 0.0, %v4725
        %v4727 = vpop.f32.mrf.mxu0
        %v4728 = vadd.f32 0.0, %v4727
        %4729 = vmatmul.bf16.gmra.mxu0 %v4696
        %v4730 = vpop.f32.mrf.mxu0
        %v4731 = vadd.f32 0.0, %v4730
        %v4732 = vpop.f32.mrf.mxu0
        %v4733 = vadd.f32 0.0, %v4732
        %4734 = vmatmul.bf16.gmra.mxu0 %v4699
        %v4735 = vpop.f32.mrf.mxu0
        %v4736 = vadd.f32 0.0, %v4735
        %v4737 = vpop.f32.mrf.mxu0
        %v4738 = vadd.f32 0.0, %v4737
        %4739 = vmatmul.bf16.gmra.mxu0 %v4702
        %v4740 = vpop.f32.mrf.mxu0
        %v4741 = vadd.f32 0.0, %v4740
        %v4742 = vpop.f32.mrf.mxu0
        %v4743 = vadd.f32 0.0, %v4742
        %4744 = vmatmul.bf16.gmra.mxu0 %v4705
        %v4745 = vpop.f32.mrf.mxu0
        %v4746 = vadd.f32 0.0, %v4745
        %v4747 = vpop.f32.mrf.mxu0
        %v4748 = vadd.f32 0.0, %v4747
        %4749 = vmatmul.bf16.gmra.mxu0 %v4708
        %v4750 = vpop.f32.mrf.mxu0
        %v4751 = vadd.f32 0.0, %v4750
        %v4752 = vpop.f32.mrf.mxu0
        %v4753 = vadd.f32 0.0, %v4752
        %4754 = vmatmul.bf16.gmra.mxu0 %v4711
        %v4755 = vpop.f32.mrf.mxu0
        %v4756 = vadd.f32 0.0, %v4755
        %v4757 = vpop.f32.mrf.mxu0
        %v4758 = vadd.f32 0.0, %v4757
        %4759 = vmatmul.bf16.gmra.mxu0 %v4714
        %v4760 = vpop.f32.mrf.mxu0
        %v4761 = vadd.f32 0.0, %v4760
        %v4762 = vpop.f32.mrf.mxu0
        %v4763 = vadd.f32 0.0, %v4762
        %4764 = vdwg.mxu0
        %v4765 = vadd.f32 %v4589, %v4726
        %v4766 = vadd.f32 %v4591, %v4728
        %v4767 = vadd.f32 %v4594, %v4731
        %v4768 = vadd.f32 %v4596, %v4733
        %v4769 = vadd.f32 %v4599, %v4736
        %v4770 = vadd.f32 %v4601, %v4738
        %v4771 = vadd.f32 %v4604, %v4741
        %v4772 = vadd.f32 %v4606, %v4743
        %v4773 = vadd.f32 %v4609, %v4746
        %v4774 = vadd.f32 %v4611, %v4748
        %v4775 = vadd.f32 %v4614, %v4751
        %v4776 = vadd.f32 %v4616, %v4753
        %v4777 = vadd.f32 %v4619, %v4756
        %v4778 = vadd.f32 %v4621, %v4758
        %v4779 = vadd.f32 %v4624, %v4761
        %v4780 = vadd.f32 %v4626, %v4763
        %v4781 = vld [vmem:[%s9] sm:$0x1]
        %v4783 = vperm.slane %v4781, 0
        %v4785 = vadd.f32 %v4765, %v4783
        %v4786 = vadd.f32 %v4766, %v4783
        %v4787 = vadd.f32 %v4767, %v4783
        %v4788 = vadd.f32 %v4768, %v4783
        %v4789 = vadd.f32 %v4769, %v4783
        %v4790 = vadd.f32 %v4770, %v4783
        %v4791 = vadd.f32 %v4771, %v4783
        %v4792 = vadd.f32 %v4772, %v4783
        %v4793 = vadd.f32 %v4773, %v4783
        %v4794 = vadd.f32 %v4774, %v4783
        %v4795 = vadd.f32 %v4775, %v4783
        %v4796 = vadd.f32 %v4776, %v4783
        %v4797 = vadd.f32 %v4777, %v4783
        %v4798 = vadd.f32 %v4778, %v4783
        %v4799 = vadd.f32 %v4779, %v4783
        %v4800 = vadd.f32 %v4780, %v4783
        %v4801 = vld [vmem:[%s10] sm:$0x1]
        %v4803 = vperm.slane %v4801, 0
        %v4805 = vmul.f32 %v4785, %v4803
        %v4806 = vmul.f32 %v4786, %v4803
        %v4807 = vmul.f32 %v4787, %v4803
        %v4808 = vmul.f32 %v4788, %v4803
        %v4809 = vmul.f32 %v4789, %v4803
        %v4810 = vmul.f32 %v4790, %v4803
        %v4811 = vmul.f32 %v4791, %v4803
        %v4812 = vmul.f32 %v4792, %v4803
        %v4813 = vmul.f32 %v4793, %v4803
        %v4814 = vmul.f32 %v4794, %v4803
        %v4815 = vmul.f32 %v4795, %v4803
        %v4816 = vmul.f32 %v4796, %v4803
        %v4817 = vmul.f32 %v4797, %v4803
        %v4818 = vmul.f32 %v4798, %v4803
        %v4819 = vmul.f32 %v4799, %v4803
        %v4820 = vmul.f32 %v4800, %v4803
        %v4821 = vadd.f32 %v2036, %v4805
        %v4822 = vadd.f32 %v2037, %v4806
        %v4823 = vadd.f32 %v2038, %v4807
        %v4824 = vadd.f32 %v2039, %v4808
        %v4825 = vadd.f32 %v2040, %v4809
        %v4826 = vadd.f32 %v2041, %v4810
        %v4827 = vadd.f32 %v2042, %v4811
        %v4828 = vadd.f32 %v2043, %v4812
        %v4829 = vadd.f32 %v2044, %v4813
        %v4830 = vadd.f32 %v2045, %v4814
        %v4831 = vadd.f32 %v2046, %v4815
        %v4832 = vadd.f32 %v2047, %v4816
        %v4833 = vadd.f32 %v2048, %v4817
        %v4834 = vadd.f32 %v2049, %v4818
        %v4835 = vadd.f32 %v2050, %v4819
        %v4836 = vadd.f32 %v2051, %v4820
        %4837 = vst [vmem:[%s530] sm:$0xff] %v4821
        %4838 = vst [vmem:[%s530 + $0x8] sm:$0xff] %v4822
        %4839 = vst [vmem:[%s530 + $0x10] sm:$0xff] %v4823
        %4840 = vst [vmem:[%s530 + $0x18] sm:$0xff] %v4824
        %4841 = vst [vmem:[%s530 + $0x20] sm:$0xff] %v4825
        %4842 = vst [vmem:[%s530 + $0x28] sm:$0xff] %v4826
        %4843 = vst [vmem:[%s530 + $0x30] sm:$0xff] %v4827
        %4844 = vst [vmem:[%s530 + $0x38] sm:$0xff] %v4828
        %4845 = vst [vmem:[%s530 + $0x40] sm:$0xff] %v4829
        %4846 = vst [vmem:[%s530 + $0x48] sm:$0xff] %v4830
        %4847 = vst [vmem:[%s530 + $0x50] sm:$0xff] %v4831
        %4848 = vst [vmem:[%s530 + $0x58] sm:$0xff] %v4832
        %4849 = vst [vmem:[%s530 + $0x60] sm:$0xff] %v4833
        %4850 = vst [vmem:[%s530 + $0x68] sm:$0xff] %v4834
        %4851 = vst [vmem:[%s530 + $0x70] sm:$0xff] %v4835
        %4852 = vst [vmem:[%s530 + $0x78] sm:$0xff] %v4836
        %s4853 = sand.u32 %s298, 1
        %s4854 = scalar_lea.sflag [#allocation7], %s4853
        %s4855 = sand.u32 %s298, 1
        %s4856 = smul.addr %s4855, 128
        %s4857 = scalar_lea.vmem [#allocation16], %s4856
        // Predicated region
        $region93: #{tpu_custom_call.1} parent=63 // pred_check
          %p4858 = pneg %p308
        $region94: #{tpu_custom_call.1} parent=63 // pred_check_branch
          %4860 = sbr.rel (%p4858) target = $region96
        $region95: #{tpu_custom_call.1} parent=63 // pred_region
          %s4861 = smul.u32 16, %s38
          %4863 = vsyncadd %s4854, 0
          %s4864 = smul.addr %s37, 32
          %s4865 = sadd.s32 %s4861, %s4864
          %s4866 = smul.addr %s4865, 8
          %s4867 = scalar_lea.hbm %s11, %s4866
          %s4868 = sshll.u32 %s4857, 4
          %s4869 = int_to_ptr.vmem [resolvable:$true] %s4868
          %s4870 = sshll.u32 %s4867, 4
          %s4871 = int_to_ptr.hbm [resolvable:$true] %s4870
          %4876 = dma.vmem_to_hbm [thread:$0]  %s4869, 2048, %s4871, %s4854, 128, 128, 8
        $region96: #{tpu_custom_call.1} parent=63 // pred_fallthru
          _
      $region64: #{tpu_custom_call.1} parent=5 // pred_fallthru
        _
      %p4877 = scmp.le.s32.totalorder 2, %s28
      // Predicated region
      $region97: #{tpu_custom_call.1} parent=5 // pred_check
        %p4878 = pneg %p4877
      $region98: #{tpu_custom_call.1} parent=5 // pred_check_branch
        %4880 = sbr.rel (%p4878) target = $region100
      $region99: #{tpu_custom_call.1} parent=5 // pred_region
        %s4881 = ssub.s32 %s28, 2
        // Predicated region
        $region101: #{tpu_custom_call.1} parent=99 // pred_check
          %p4882 = pneg %p314
        $region102: #{tpu_custom_call.1} parent=99 // pred_check_branch
          %4884 = sbr.rel (%p4882) target = $region104
        $region103: #{tpu_custom_call.1} parent=99 // pred_region
          %s4885 = sand.u32 %s299, 1
          %s4886 = scalar_lea.sflag [#allocation7], %s4885
          %s4887 = sand.u32 %s299, 1
          %s4888 = smul.addr %s4887, 128
          %s4889 = scalar_lea.vmem [#allocation16], %s4888
          %4891 = dma.done %s4886, 2048
        $region104: #{tpu_custom_call.1} parent=99 // pred_fallthru
          _
      $region100: #{tpu_custom_call.1} parent=5 // pred_fallthru
        _
    $region6: #{tpu_custom_call.1} parent=1 // loop_footer
      %s32 = sadd.s32 1, %s28
    $region7: #{tpu_custom_call.1} parent=1 // loop_footer_branch
      %27 = sbr.rel target = $region3
    $region8: #{tpu_custom_call.1} parent=1 // loop_exit
      _
    %4892 = vsyncpa [#allocation6], 1
    %s4893 = scalar_lea.sflag [#allocation6], 1
    %4894 = vsyncpa %s4893, 1
    %4895 = vsyncpa [#allocation9], 1
    %s4896 = scalar_lea.sflag [#allocation9], 1
    %4897 = vsyncpa %s4896, 1
    %4898 = vsyncpa [#allocation12], 1
    %4899 = vsyncpa [#allocation15], 1
    %4900 = vsyncpa [#allocation7], 1
    %s4901 = scalar_lea.sflag [#allocation7], 1
    %4902 = vsyncpa %s4901, 1

</llo_original>
